<compile_context>
chip_gen: v6e
topology: v6e:2x2x1
jax: 0.10.0
libtpu: 0.0.40
codegen_flags: <defaults>
</compile_context>

<pallas_src>
import functools

import jax
import jax.numpy as jnp
import numpy as np
from jax import lax
from jax.experimental import pallas as pl
from jax.experimental.pallas import tpu as pltpu

_LANE = 128
_VMEM_LIMIT_BYTES = 64 * 1024 * 1024


# ----------------------------------------------------------------------------
# Small helpers
# ----------------------------------------------------------------------------
def _round_up(x, m):
    return (x + m - 1) // m * m


def _choose_row_tile(m, row_bytes, *, vmem_budget=8 << 20, min_steps=4,
                     max_tile=512):
    """Row tile: multiple of 8, bounded by a VMEM budget, small enough to give
    a multi-step 'parallel' grid (>= 2 keeps both v7x TensorCores busy)."""
    cap = max(8, (vmem_budget // max(row_bytes, 1)) // 8 * 8)
    tm = min(max_tile, cap, _round_up(m, 8))
    while tm > 8 and pl.cdiv(m, tm) < min_steps:
        tm //= 2
    return max(8, (tm // 8) * 8)


def _pad_rows(a, rows):
    return jnp.pad(a, ((0, rows - a.shape[0]), (0, 0)))


def _pad2(a, rows, cols):
    return jnp.pad(a, ((0, rows - a.shape[0]), (0, cols - a.shape[1])))


def _pad_channels(x, c):
    pads = [(0, 0)] * (x.ndim - 1) + [(0, c - x.shape[-1])]
    return jnp.pad(x, pads)


def _compiler_params(grid_rank):
    return pltpu.CompilerParams(
        dimension_semantics=("parallel",) * grid_rank,
        vmem_limit_bytes=_VMEM_LIMIT_BYTES)


def _fold_bn(gamma, beta, mean, var, eps=1e-5):
    scale = gamma / jnp.sqrt(var + eps)
    return scale, beta - mean * scale


# ----------------------------------------------------------------------------
# Pallas kernels
# ----------------------------------------------------------------------------
def _matmul_bias_kernel(x_ref, w_ref, b_ref, o_ref, *, relu):
    # bf16 x / w -> f32 MXU accumulate -> +bias (BN folded) -> ReLU
    y = jnp.dot(x_ref[...], w_ref[...], preferred_element_type=jnp.float32)
    y = y + b_ref[...]
    if relu:
        y = jnp.maximum(y, 0.0)
    o_ref[...] = y.astype(o_ref.dtype)


def _conv3_downsample_kernel(y_ref, w3_ref, b3_ref, xs_ref, wd_ref, bd_ref,
                             o_ref):
    # conv3 1x1 + bn3, plus the downsample 1x1 + bn fused in the same tile,
    # residual add and ReLU -- the identity never touches HBM.
    main = jnp.dot(y_ref[...], w3_ref[...],
                   preferred_element_type=jnp.float32) + b3_ref[...]
    iden = jnp.dot(xs_ref[...], wd_ref[...],
                   preferred_element_type=jnp.float32) + bd_ref[...]
    o_ref[...] = jnp.maximum(main + iden, 0.0).astype(o_ref.dtype)


def _conv3_identity_kernel(y_ref, w3_ref, b3_ref, r_ref, o_ref):
    main = jnp.dot(y_ref[...], w3_ref[...],
                   preferred_element_type=jnp.float32) + b3_ref[...]
    o_ref[...] = jnp.maximum(main + r_ref[...].astype(jnp.float32),
                             0.0).astype(o_ref.dtype)


def _conv3x3_kernel(y_ref, w_ref, b_ref, o_ref, *, stride, ho, wo):
    # y_ref: (1, s*s, Hpp, Wpp, C) stride-phase-decomposed padded activation.
    # w_ref: (9, C, Cout) per-tap BN-folded weights.
    # The 9-tap reduction is accumulated in registers (f32); no im2col tensor
    # is ever materialized in HBM.
    c_out = w_ref.shape[2]
    acc = jnp.zeros((ho * wo, c_out), jnp.float32)
    for dy in range(3):
        for dx in range(3):
            phase = (dy % stride) * stride + (dx % stride)
            i0 = dy // stride
            j0 = dx // stride
            patch = y_ref[0, phase, i0:i0 + ho, j0:j0 + wo, :]     # (ho, wo, C)
            acc = acc + jnp.dot(patch.reshape(ho * wo, patch.shape[-1]),
                                w_ref[dy * 3 + dx],
                                preferred_element_type=jnp.float32)
    o_ref[0] = jnp.maximum(acc + b_ref[...], 0.0).astype(o_ref.dtype)


# ----------------------------------------------------------------------------
# pallas_call wrappers
# ----------------------------------------------------------------------------
def fused_matmul_bias(x2d, w, bias, *, relu, out_dtype):
    """(M,K)@(K,N) + bias [ReLU]. K, N multiples of 128; bf16 in, f32 acc."""
    m, k = x2d.shape
    n = w.shape[1]
    row_bytes = 2 * (2 * k + 4 * n)          # double-buffered x row + out row
    tm = _choose_row_tile(m, row_bytes)
    m_pad = _round_up(m, tm)
    out = pl.pallas_call(
        functools.partial(_matmul_bias_kernel, relu=relu),
        out_shape=jax.ShapeDtypeStruct((m_pad, n), out_dtype),
        grid_spec=pltpu.PrefetchScalarGridSpec(
            num_scalar_prefetch=0,
            grid=(m_pad // tm,),
            in_specs=[
                pl.BlockSpec((tm, k), lambda i: (i, 0)),
                pl.BlockSpec((k, n), lambda i: (0, 0)),
                pl.BlockSpec((1, n), lambda i: (0, 0)),
            ],
            out_specs=pl.BlockSpec((tm, n), lambda i: (i, 0)),
        ),
        compiler_params=_compiler_params(1),
    )(_pad_rows(x2d, m_pad), w, bias)
    return out[:m]


def fused_conv3_downsample(y2d, w3, b3, xs2d, wd, bd, *, out_dtype):
    m, k = y2d.shape
    n = w3.shape[1]
    kd = xs2d.shape[1]
    row_bytes = 2 * (2 * k + 2 * kd + 4 * n)
    tm = _choose_row_tile(m, row_bytes)
    m_pad = _round_up(m, tm)
    out = pl.pallas_call(
        _conv3_downsample_kernel,
        out_shape=jax.ShapeDtypeStruct((m_pad, n), out_dtype),
        grid_spec=pltpu.PrefetchScalarGridSpec(
            num_scalar_prefetch=0,
            grid=(m_pad // tm,),
            in_specs=[
                pl.BlockSpec((tm, k), lambda i: (i, 0)),
                pl.BlockSpec((k, n), lambda i: (0, 0)),
                pl.BlockSpec((1, n), lambda i: (0, 0)),
                pl.BlockSpec((tm, kd), lambda i: (i, 0)),
                pl.BlockSpec((kd, n), lambda i: (0, 0)),
                pl.BlockSpec((1, n), lambda i: (0, 0)),
            ],
            out_specs=pl.BlockSpec((tm, n), lambda i: (i, 0)),
        ),
        compiler_params=_compiler_params(1),
    )(_pad_rows(y2d, m_pad), w3, b3, _pad_rows(xs2d, m_pad), wd, bd)
    return out[:m]


def fused_conv3_identity(y2d, w3, b3, res2d, *, out_dtype):
    m, k = y2d.shape
    n = w3.shape[1]
    row_bytes = 2 * (2 * k + 2 * n + 4 * n)
    tm = _choose_row_tile(m, row_bytes)
    m_pad = _round_up(m, tm)
    out = pl.pallas_call(
        _conv3_identity_kernel,
        out_shape=jax.ShapeDtypeStruct((m_pad, n), out_dtype),
        grid_spec=pltpu.PrefetchScalarGridSpec(
            num_scalar_prefetch=0,
            grid=(m_pad // tm,),
            in_specs=[
                pl.BlockSpec((tm, k), lambda i: (i, 0)),
                pl.BlockSpec((k, n), lambda i: (0, 0)),
                pl.BlockSpec((1, n), lambda i: (0, 0)),
                pl.BlockSpec((tm, n), lambda i: (i, 0)),
            ],
            out_specs=pl.BlockSpec((tm, n), lambda i: (i, 0)),
        ),
        compiler_params=_compiler_params(1),
    )(_pad_rows(y2d, m_pad), w3, b3, _pad_rows(res2d, m_pad))
    return out[:m]


def fused_conv3x3(y_nhwc, w_taps, bias, *, stride, out_dtype):
    """3x3 conv (pad=1, stride) + folded BN + ReLU; 9-tap reduction in-kernel.

    y_nhwc: (N,H,W,C) bf16, C multiple of 128.  w_taps: (9,C,Cout) bf16.
    Returns (N, Ho*Wo, Cout).
    """
    n, h, w, c = y_nhwc.shape
    c_out = w_taps.shape[2]
    s = stride
    ho = (h - 1) // s + 1
    wo = (w - 1) // s + 1
    # pad=1 halo on each side, then pad H/W so they split cleanly into `s`
    # phases with room for every tap offset.
    hpp = max(-(-(h + 2) // s), 2 // s + ho)
    wpp = max(-(-(w + 2) // s), 2 // s + wo)
    yp = jnp.pad(y_nhwc,
                 ((0, 0), (1, s * hpp - h - 1), (1, s * wpp - w - 1), (0, 0)))
    # phase decomposition: y_ph[n, p*s+q, i, j, c] == yp[n, i*s+p, j*s+q, c]
    y_ph = yp.reshape(n, hpp, s, wpp, s, c)
    y_ph = jnp.transpose(y_ph, (0, 2, 4, 1, 3, 5)).reshape(n, s * s, hpp, wpp, c)

    out = pl.pallas_call(
        functools.partial(_conv3x3_kernel, stride=s, ho=ho, wo=wo),
        out_shape=jax.ShapeDtypeStruct((n, ho * wo, c_out), out_dtype),
        grid_spec=pltpu.PrefetchScalarGridSpec(
            num_scalar_prefetch=0,
            grid=(n,),
            in_specs=[
                pl.BlockSpec((1, s * s, hpp, wpp, c),
                             lambda b: (b, 0, 0, 0, 0)),
                pl.BlockSpec((9, c, c_out), lambda b: (0, 0, 0)),
                pl.BlockSpec((1, c_out), lambda b: (0, 0)),
            ],
            out_specs=pl.BlockSpec((1, ho * wo, c_out), lambda b: (b, 0, 0)),
        ),
        compiler_params=_compiler_params(1),
    )(y_ph, w_taps, bias)
    return out


# ----------------------------------------------------------------------------
# Parameter init (matches the PyTorch module's shapes)
# ----------------------------------------------------------------------------
def init_params(key, in_channels, width, out_channels, downsample):
    ks = list(jax.random.split(key, 8))

    def conv_w(k, cout, cin, kh, kw):
        return 0.2 * jax.random.normal(k, (cout, cin, kh, kw), jnp.float32)

    def bn(k, c):
        k1, k2, k3, k4 = jax.random.split(k, 4)
        gamma = 0.5 + jax.random.uniform(k1, (c,), jnp.float32)
        beta = 0.1 * jax.random.normal(k2, (c,), jnp.float32)
        mean = 0.1 * jax.random.normal(k3, (c,), jnp.float32)
        var = 0.5 + jax.random.uniform(k4, (c,), jnp.float32)
        return gamma, beta, mean, var

    p = {
        "w1": conv_w(ks[0], width, in_channels, 1, 1),
        "bn1": bn(ks[1], width),
        "w2": conv_w(ks[2], width, width, 3, 3),
        "bn2": bn(ks[3], width),
        "w3": conv_w(ks[4], out_channels, width, 1, 1),
        "bn3": bn(ks[5], out_channels),
    }
    if downsample:
        p["wd"] = conv_w(ks[6], out_channels, in_channels, 1, 1)
        p["bnd"] = bn(ks[7], out_channels)
    return p


# ----------------------------------------------------------------------------
# Bottleneck forward (Pallas hot path)
# ----------------------------------------------------------------------------
def bottleneck_forward(x_nchw, params, stride, has_downsample):
    if not has_downsample:
        assert stride == 1 and params["w1"].shape[1] == params["w3"].shape[0], (
            "identity residual requires stride==1 and in_channels==out_channels")

    x = jnp.transpose(x_nchw, (0, 2, 3, 1)).astype(jnp.float32)   # NCHW->NHWC
    n, h, w, cin = x.shape
    width = params["w1"].shape[0]
    cout = params["w3"].shape[0]
    cin_p = _round_up(cin, _LANE)
    wid_p = _round_up(width, _LANE)
    cout_p = _round_up(cout, _LANE)
    ho = (h - 1) // stride + 1
    wo = (w - 1) // stride + 1

    xp = _pad_channels(x, cin_p)                                  # (N,H,W,cin_p)
    x2d = xp.reshape(-1, cin_p).astype(jnp.bfloat16)

    # --- conv1 (1x1) + bn1 + relu ---
    s1, b1 = _fold_bn(*params["bn1"])
    w1 = params["w1"][:, :, 0, 0].T * s1[None, :]                 # (cin, width)
    w1 = _pad2(w1, cin_p, wid_p).astype(jnp.bfloat16)
    b1 = _pad2(b1.reshape(1, -1), 1, wid_p).astype(jnp.float32)
    y1 = fused_matmul_bias(x2d, w1, b1, relu=True, out_dtype=jnp.bfloat16)
    y1 = y1.reshape(n, h, w, wid_p)

    # --- conv2 (3x3, stride, pad=1) + bn2 + relu : 9-tap reduction in-kernel ---
    s2, b2 = _fold_bn(*params["bn2"])
    w2 = jnp.transpose(params["w2"], (2, 3, 1, 0)) * s2[None, None, None, :]
    w2 = w2.reshape(9, width, width)
    w2 = jnp.pad(w2, ((0, 0), (0, wid_p - width), (0, wid_p - width)))
    w2 = w2.astype(jnp.bfloat16)
    b2 = _pad2(b2.reshape(1, -1), 1, wid_p).astype(jnp.float32)
    y2 = fused_conv3x3(y1, w2, b2, stride=stride, out_dtype=jnp.bfloat16)
    y2 = y2.reshape(-1, wid_p)                                    # (N*Ho*Wo, wid_p)

    # --- conv3 (1x1) + bn3 + residual + relu (downsample fused in-kernel) ---
    s3, b3 = _fold_bn(*params["bn3"])
    w3 = params["w3"][:, :, 0, 0].T * s3[None, :]
    w3 = _pad2(w3, wid_p, cout_p).astype(jnp.bfloat16)
    b3 = _pad2(b3.reshape(1, -1), 1, cout_p).astype(jnp.float32)

    if has_downsample:
        sd, bd = _fold_bn(*params["bnd"])
        wd = params["wd"][:, :, 0, 0].T * sd[None, :]
        wd = _pad2(wd, cin_p, cout_p).astype(jnp.bfloat16)
        bd = _pad2(bd.reshape(1, -1), 1, cout_p).astype(jnp.float32)
        xs2d = xp[:, ::stride, ::stride, :].reshape(-1, cin_p).astype(jnp.bfloat16)
        out2d = fused_conv3_downsample(y2, w3, b3, xs2d, wd, bd,
                                       out_dtype=jnp.float32)
    else:
        out2d = fused_conv3_identity(y2, w3, b3, x2d, out_dtype=jnp.float32)

    out = out2d.reshape(n, ho, wo, cout_p)[..., :cout]
    return jnp.transpose(out, (0, 3, 1, 2))                       # NHWC->NCHW


# ----------------------------------------------------------------------------
# Pure-JAX reference (lax.conv, f32) for verification
# ----------------------------------------------------------------------------
def reference_forward(x_nchw, params, stride, has_downsample):
    x = jnp.transpose(x_nchw, (0, 2, 3, 1)).astype(jnp.float32)
    dn = ("NHWC", "HWIO", "NHWC")

    def conv(v, w_pt, stride, pad):
        w = jnp.transpose(w_pt, (2, 3, 1, 0))
        return lax.conv_general_dilated(v, w, (stride, stride),
                                        [(pad, pad), (pad, pad)],
                                        dimension_numbers=dn)

    def bn(v, p):
        s, b = _fold_bn(*p)
        return v * s + b

    y = jnp.maximum(bn(conv(x, params["w1"], 1, 0), params["bn1"]), 0.0)
    y = jnp.maximum(bn(conv(y, params["w2"], stride, 1), params["bn2"]), 0.0)
    y = bn(conv(y, params["w3"], 1, 0), params["bn3"])
    if has_downsample:
        ident = bn(conv(x, params["wd"], stride, 0), params["bnd"])
    else:
        ident = x
    out = jnp.maximum(y + ident, 0.0)
    return jnp.transpose(out, (0, 3, 1, 2))


# ----------------------------------------------------------------------------
if __name__ == "__main__":
    key = jax.random.PRNGKey(0)
    kp, kx = jax.random.split(key)

    in_channels, width, out_channels, stride = 4, 4, 8, 2
    has_downsample = True          # stride != 1 forces the downsample branch

    params = init_params(kp, in_channels, width, out_channels, has_downsample)
    x = jax.random.normal(kx, (2, in_channels, 16, 16), jnp.float32)

    fwd = jax.jit(functools.partial(bottleneck_forward, stride=stride,
                                    has_downsample=has_downsample))
    out = jax.block_until_ready(fwd(x, params))

    ref = reference_forward(x, params, stride, has_downsample)
    np.testing.assert_allclose(np.asarray(out), np.asarray(ref),
                               rtol=5e-2, atol=5e-2)
    assert out.shape == (2, out_channels, 8, 8)
    print("KERNEL_OK")
</pallas_src>

<mosaic_0001>
module attributes {stable_mosaic.version = 11 : i64} {
  func.func @_matmul_bias_kernel(%arg0: i32, %arg1: memref<128x128xbf16, #tpu.memory_space<vmem>>, %arg2: memref<128x128xbf16, #tpu.memory_space<vmem>>, %arg3: memref<1x128xf32, #tpu.memory_space<vmem>>, %arg4: memref<128x128xbf16, #tpu.memory_space<vmem>>) attributes {dimension_semantics = [#tpu.dimension_semantics<parallel>], iteration_bounds = array<i64: 4>, scalar_prefetch = 0 : i64, scratch_operands = 0 : i64, tpu.core_type = #tpu.core_type<tc>, window_params = [{transform_indices = @transform_0, window_bounds = array<i64: 128, 128>}, {pipeline_mode = #tpu.pipeline_mode<synchronous>, transform_indices = @transform_1, window_bounds = array<i64: 128, 128>}, {pipeline_mode = #tpu.pipeline_mode<synchronous>, transform_indices = @transform_2, window_bounds = array<i64: 1, 128>}, {transform_indices = @transform_3, window_bounds = array<i64: 128, 128>}]} {
    %c0 = arith.constant 0 : index
    %c0_0 = arith.constant 0 : index
    %0 = vector.load %arg1[%c0, %c0_0] : memref<128x128xbf16, #tpu.memory_space<vmem>>, vector<128x128xbf16>
    %c0_1 = arith.constant 0 : index
    %c0_2 = arith.constant 0 : index
    %1 = vector.load %arg2[%c0_1, %c0_2] : memref<128x128xbf16, #tpu.memory_space<vmem>>, vector<128x128xbf16>
    %cst = arith.constant dense<0.000000e+00> : vector<128x128xf32>
    %2 = tpu.matmul %0, %1, %cst {dimension_numbers = #tpu.dot_dimension_numbers<[1], [0], [0], [1], [0, 0, 1, 1], [], []>} : vector<128x128xbf16>, vector<128x128xbf16>, vector<128x128xf32> -> vector<128x128xf32>
    %c0_3 = arith.constant 0 : index
    %c0_4 = arith.constant 0 : index
    %3 = vector.load %arg3[%c0_3, %c0_4] : memref<1x128xf32, #tpu.memory_space<vmem>>, vector<1x128xf32>
    %4 = vector.broadcast %3 : vector<1x128xf32> to vector<128x128xf32>
    %5 = arith.addf %2, %4 : vector<128x128xf32>
    %cst_5 = arith.constant 0.000000e+00 : f32
    %6 = vector.broadcast %cst_5 : f32 to vector<128x128xf32>
    %7 = arith.maximumf %5, %6 : vector<128x128xf32>
    %8 = arith.truncf %7 : vector<128x128xf32> to vector<128x128xbf16>
    %c0_6 = arith.constant 0 : index
    %c0_7 = arith.constant 0 : index
    %9 = vector.load %arg4[%c0_6, %c0_7] : memref<128x128xbf16, #tpu.memory_space<vmem>>, vector<128x128xbf16>
    tpu.vector_store %arg4[%c0_6, %c0_7], %8 {strides = array<i32>} : memref<128x128xbf16, #tpu.memory_space<vmem>>, vector<128x128xbf16>,
    return
  }
  func.func @transform_0(%arg0: i32) -> (i32, i32) {
    %c0_i32 = arith.constant 0 : i32
    %c0_i32_0 = arith.constant 0 : i32
    return %arg0, %c0_i32 : i32, i32
  }
  func.func @transform_1(%arg0: i32) -> (i32, i32) {
    %c0_i32 = arith.constant 0 : i32
    %c0_i32_0 = arith.constant 0 : i32
    %c0_i32_1 = arith.constant 0 : i32
    return %c0_i32, %c0_i32_0 : i32, i32
  }
  func.func @transform_2(%arg0: i32) -> (i32, i32) {
    %c0_i32 = arith.constant 0 : i32
    %c0_i32_0 = arith.constant 0 : i32
    %c0_i32_1 = arith.constant 0 : i32
    return %c0_i32, %c0_i32_0 : i32, i32
  }
  func.func @transform_3(%arg0: i32) -> (i32, i32) {
    %c0_i32 = arith.constant 0 : i32
    %c0_i32_0 = arith.constant 0 : i32
    return %arg0, %c0_i32 : i32, i32
  }
}

module attributes {stable_mosaic.version = 11 : i64} {
  func.func @_conv3x3_kernel(%arg0: i32, %arg1: memref<1x4x9x9x128xbf16, #tpu.memory_space<vmem>>, %arg2: memref<9x128x128xbf16, #tpu.memory_space<vmem>>, %arg3: memref<1x128xf32, #tpu.memory_space<vmem>>, %arg4: memref<1x64x128xbf16, #tpu.memory_space<vmem>>) attributes {dimension_semantics = [#tpu.dimension_semantics<parallel>], iteration_bounds = array<i64: 2>, scalar_prefetch = 0 : i64, scratch_operands = 0 : i64, tpu.core_type = #tpu.core_type<tc>, window_params = [{transform_indices = @transform_0, window_bounds = array<i64: 1, 4, 9, 9, 128>}, {pipeline_mode = #tpu.pipeline_mode<synchronous>, transform_indices = @transform_1, window_bounds = array<i64: 9, 128, 128>}, {pipeline_mode = #tpu.pipeline_mode<synchronous>, transform_indices = @transform_2, window_bounds = array<i64: 1, 128>}, {transform_indices = @transform_3, window_bounds = array<i64: 1, 64, 128>}]} {
    %cst = arith.constant 0.000000e+00 : f32
    %0 = vector.broadcast %cst : f32 to vector<64x128xf32>
    %c0 = arith.constant 0 : index
    %c0_0 = arith.constant 0 : index
    %c0_1 = arith.constant 0 : index
    %c0_2 = arith.constant 0 : index
    %c0_3 = arith.constant 0 : index
    %1 = vector.load %arg1[%c0, %c0_0, %c0_1, %c0_2, %c0_3] : memref<1x4x9x9x128xbf16, #tpu.memory_space<vmem>>, vector<1x1x8x8x128xbf16>
    %2 = vector.shape_cast %1 : vector<1x1x8x8x128xbf16> to vector<8x8x128xbf16>
    %3 = vector.shape_cast %2 : vector<8x8x128xbf16> to vector<64x128xbf16>
    %c0_4 = arith.constant 0 : index
    %c0_5 = arith.constant 0 : index
    %c0_6 = arith.constant 0 : index
    %4 = vector.load %arg2[%c0_4, %c0_5, %c0_6] : memref<9x128x128xbf16, #tpu.memory_space<vmem>>, vector<1x128x128xbf16>
    %5 = vector.shape_cast %4 : vector<1x128x128xbf16> to vector<128x128xbf16>
    %cst_7 = arith.constant dense<0.000000e+00> : vector<64x128xf32>
    %6 = tpu.matmul %3, %5, %cst_7 {dimension_numbers = #tpu.dot_dimension_numbers<[1], [0], [0], [1], [0, 0, 1, 1], [], []>} : vector<64x128xbf16>, vector<128x128xbf16>, vector<64x128xf32> -> vector<64x128xf32>
    %7 = arith.addf %0, %6 : vector<64x128xf32>
    %c0_8 = arith.constant 0 : index
    %c1 = arith.constant 1 : index
    %c0_9 = arith.constant 0 : index
    %c0_10 = arith.constant 0 : index
    %c0_11 = arith.constant 0 : index
    %8 = vector.load %arg1[%c0_8, %c1, %c0_9, %c0_10, %c0_11] : memref<1x4x9x9x128xbf16, #tpu.memory_space<vmem>>, vector<1x1x8x8x128xbf16>
    %9 = vector.shape_cast %8 : vector<1x1x8x8x128xbf16> to vector<8x8x128xbf16>
    %10 = vector.shape_cast %9 : vector<8x8x128xbf16> to vector<64x128xbf16>
    %c1_12 = arith.constant 1 : index
    %c0_13 = arith.constant 0 : index
    %c0_14 = arith.constant 0 : index
    %11 = vector.load %arg2[%c1_12, %c0_13, %c0_14] : memref<9x128x128xbf16, #tpu.memory_space<vmem>>, vector<1x128x128xbf16>
    %12 = vector.shape_cast %11 : vector<1x128x128xbf16> to vector<128x128xbf16>
    %cst_15 = arith.constant dense<0.000000e+00> : vector<64x128xf32>
    %13 = tpu.matmul %10, %12, %cst_15 {dimension_numbers = #tpu.dot_dimension_numbers<[1], [0], [0], [1], [0, 0, 1, 1], [], []>} : vector<64x128xbf16>, vector<128x128xbf16>, vector<64x128xf32> -> vector<64x128xf32>
    %14 = arith.addf %7, %13 : vector<64x128xf32>
    %c0_16 = arith.constant 0 : index
    %c0_17 = arith.constant 0 : index
    %c0_18 = arith.constant 0 : index
    %c1_19 = arith.constant 1 : index
    %c0_20 = arith.constant 0 : index
    %15 = vector.load %arg1[%c0_16, %c0_17, %c0_18, %c1_19, %c0_20] : memref<1x4x9x9x128xbf16, #tpu.memory_space<vmem>>, vector<1x1x8x8x128xbf16>
    %16 = vector.shape_cast %15 : vector<1x1x8x8x128xbf16> to vector<8x8x128xbf16>
    %17 = vector.shape_cast %16 : vector<8x8x128xbf16> to vector<64x128xbf16>
    %c2 = arith.constant 2 : index
    %c0_21 = arith.constant 0 : index
    %c0_22 = arith.constant 0 : index
    %18 = vector.load %arg2[%c2, %c0_21, %c0_22] : memref<9x128x128xbf16, #tpu.memory_space<vmem>>, vector<1x128x128xbf16>
    %19 = vector.shape_cast %18 : vector<1x128x128xbf16> to vector<128x128xbf16>
    %cst_23 = arith.constant dense<0.000000e+00> : vector<64x128xf32>
    %20 = tpu.matmul %17, %19, %cst_23 {dimension_numbers = #tpu.dot_dimension_numbers<[1], [0], [0], [1], [0, 0, 1, 1], [], []>} : vector<64x128xbf16>, vector<128x128xbf16>, vector<64x128xf32> -> vector<64x128xf32>
    %21 = arith.addf %14, %20 : vector<64x128xf32>
    %c0_24 = arith.constant 0 : index
    %c2_25 = arith.constant 2 : index
    %c0_26 = arith.constant 0 : index
    %c0_27 = arith.constant 0 : index
    %c0_28 = arith.constant 0 : index
    %22 = vector.load %arg1[%c0_24, %c2_25, %c0_26, %c0_27, %c0_28] : memref<1x4x9x9x128xbf16, #tpu.memory_space<vmem>>, vector<1x1x8x8x128xbf16>
    %23 = vector.shape_cast %22 : vector<1x1x8x8x128xbf16> to vector<8x8x128xbf16>
    %24 = vector.shape_cast %23 : vector<8x8x128xbf16> to vector<64x128xbf16>
    %c3 = arith.constant 3 : index
    %c0_29 = arith.constant 0 : index
    %c0_30 = arith.constant 0 : index
    %25 = vector.load %arg2[%c3, %c0_29, %c0_30] : memref<9x128x128xbf16, #tpu.memory_space<vmem>>, vector<1x128x128xbf16>
    %26 = vector.shape_cast %25 : vector<1x128x128xbf16> to vector<128x128xbf16>
    %cst_31 = arith.constant dense<0.000000e+00> : vector<64x128xf32>
    %27 = tpu.matmul %24, %26, %cst_31 {dimension_numbers = #tpu.dot_dimension_numbers<[1], [0], [0], [1], [0, 0, 1, 1], [], []>} : vector<64x128xbf16>, vector<128x128xbf16>, vector<64x128xf32> -> vector<64x128xf32>
    %28 = arith.addf %21, %27 : vector<64x128xf32>
    %c0_32 = arith.constant 0 : index
    %c3_33 = arith.constant 3 : index
    %c0_34 = arith.constant 0 : index
    %c0_35 = arith.constant 0 : index
    %c0_36 = arith.constant 0 : index
    %29 = vector.load %arg1[%c0_32, %c3_33, %c0_34, %c0_35, %c0_36] : memref<1x4x9x9x128xbf16, #tpu.memory_space<vmem>>, vector<1x1x8x8x128xbf16>
    %30 = vector.shape_cast %29 : vector<1x1x8x8x128xbf16> to vector<8x8x128xbf16>
    %31 = vector.shape_cast %30 : vector<8x8x128xbf16> to vector<64x128xbf16>
    %c4 = arith.constant 4 : index
    %c0_37 = arith.constant 0 : index
    %c0_38 = arith.constant 0 : index
    %32 = vector.load %arg2[%c4, %c0_37, %c0_38] : memref<9x128x128xbf16, #tpu.memory_space<vmem>>, vector<1x128x128xbf16>
    %33 = vector.shape_cast %32 : vector<1x128x128xbf16> to vector<128x128xbf16>
    %cst_39 = arith.constant dense<0.000000e+00> : vector<64x128xf32>
    %34 = tpu.matmul %31, %33, %cst_39 {dimension_numbers = #tpu.dot_dimension_numbers<[1], [0], [0], [1], [0, 0, 1, 1], [], []>} : vector<64x128xbf16>, vector<128x128xbf16>, vector<64x128xf32> -> vector<64x128xf32>
    %35 = arith.addf %28, %34 : vector<64x128xf32>
    %c0_40 = arith.constant 0 : index
    %c2_41 = arith.constant 2 : index
    %c0_42 = arith.constant 0 : index
    %c1_43 = arith.constant 1 : index
    %c0_44 = arith.constant 0 : index
    %36 = vector.load %arg1[%c0_40, %c2_41, %c0_42, %c1_43, %c0_44] : memref<1x4x9x9x128xbf16, #tpu.memory_space<vmem>>, vector<1x1x8x8x128xbf16>
    %37 = vector.shape_cast %36 : vector<1x1x8x8x128xbf16> to vector<8x8x128xbf16>
    %38 = vector.shape_cast %37 : vector<8x8x128xbf16> to vector<64x128xbf16>
    %c5 = arith.constant 5 : index
    %c0_45 = arith.constant 0 : index
    %c0_46 = arith.constant 0 : index
    %39 = vector.load %arg2[%c5, %c0_45, %c0_46] : memref<9x128x128xbf16, #tpu.memory_space<vmem>>, vector<1x128x128xbf16>
    %40 = vector.shape_cast %39 : vector<1x128x128xbf16> to vector<128x128xbf16>
    %cst_47 = arith.constant dense<0.000000e+00> : vector<64x128xf32>
    %41 = tpu.matmul %38, %40, %cst_47 {dimension_numbers = #tpu.dot_dimension_numbers<[1], [0], [0], [1], [0, 0, 1, 1], [], []>} : vector<64x128xbf16>, vector<128x128xbf16>, vector<64x128xf32> -> vector<64x128xf32>
    %42 = arith.addf %35, %41 : vector<64x128xf32>
    %c0_48 = arith.constant 0 : index
    %c0_49 = arith.constant 0 : index
    %c1_50 = arith.constant 1 : index
    %c0_51 = arith.constant 0 : index
    %c0_52 = arith.constant 0 : index
    %43 = vector.load %arg1[%c0_48, %c0_49, %c1_50, %c0_51, %c0_52] : memref<1x4x9x9x128xbf16, #tpu.memory_space<vmem>>, vector<1x1x8x8x128xbf16>
    %44 = vector.shape_cast %43 : vector<1x1x8x8x128xbf16> to vector<8x8x128xbf16>
    %45 = vector.shape_cast %44 : vector<8x8x128xbf16> to vector<64x128xbf16>
    %c6 = arith.constant 6 : index
    %c0_53 = arith.constant 0 : index
    %c0_54 = arith.constant 0 : index
    %46 = vector.load %arg2[%c6, %c0_53, %c0_54] : memref<9x128x128xbf16, #tpu.memory_space<vmem>>, vector<1x128x128xbf16>
    %47 = vector.shape_cast %46 : vector<1x128x128xbf16> to vector<128x128xbf16>
    %cst_55 = arith.constant dense<0.000000e+00> : vector<64x128xf32>
    %48 = tpu.matmul %45, %47, %cst_55 {dimension_numbers = #tpu.dot_dimension_numbers<[1], [0], [0], [1], [0, 0, 1, 1], [], []>} : vector<64x128xbf16>, vector<128x128xbf16>, vector<64x128xf32> -> vector<64x128xf32>
    %49 = arith.addf %42, %48 : vector<64x128xf32>
    %c0_56 = arith.constant 0 : index
    %c1_57 = arith.constant 1 : index
    %c1_58 = arith.constant 1 : index
    %c0_59 = arith.constant 0 : index
    %c0_60 = arith.constant 0 : index
    %50 = vector.load %arg1[%c0_56, %c1_57, %c1_58, %c0_59, %c0_60] : memref<1x4x9x9x128xbf16, #tpu.memory_space<vmem>>, vector<1x1x8x8x128xbf16>
    %51 = vector.shape_cast %50 : vector<1x1x8x8x128xbf16> to vector<8x8x128xbf16>
    %52 = vector.shape_cast %51 : vector<8x8x128xbf16> to vector<64x128xbf16>
    %c7 = arith.constant 7 : index
    %c0_61 = arith.constant 0 : index
    %c0_62 = arith.constant 0 : index
    %53 = vector.load %arg2[%c7, %c0_61, %c0_62] : memref<9x128x128xbf16, #tpu.memory_space<vmem>>, vector<1x128x128xbf16>
    %54 = vector.shape_cast %53 : vector<1x128x128xbf16> to vector<128x128xbf16>
    %cst_63 = arith.constant dense<0.000000e+00> : vector<64x128xf32>
    %55 = tpu.matmul %52, %54, %cst_63 {dimension_numbers = #tpu.dot_dimension_numbers<[1], [0], [0], [1], [0, 0, 1, 1], [], []>} : vector<64x128xbf16>, vector<128x128xbf16>, vector<64x128xf32> -> vector<64x128xf32>
    %56 = arith.addf %49, %55 : vector<64x128xf32>
    %c0_64 = arith.constant 0 : index
    %c0_65 = arith.constant 0 : index
    %c1_66 = arith.constant 1 : index
    %c1_67 = arith.constant 1 : index
    %c0_68 = arith.constant 0 : index
    %57 = vector.load %arg1[%c0_64, %c0_65, %c1_66, %c1_67, %c0_68] : memref<1x4x9x9x128xbf16, #tpu.memory_space<vmem>>, vector<1x1x8x8x128xbf16>
    %58 = vector.shape_cast %57 : vector<1x1x8x8x128xbf16> to vector<8x8x128xbf16>
    %59 = vector.shape_cast %58 : vector<8x8x128xbf16> to vector<64x128xbf16>
    %c8 = arith.constant 8 : index
    %c0_69 = arith.constant 0 : index
    %c0_70 = arith.constant 0 : index
    %60 = vector.load %arg2[%c8, %c0_69, %c0_70] : memref<9x128x128xbf16, #tpu.memory_space<vmem>>, vector<1x128x128xbf16>
    %61 = vector.shape_cast %60 : vector<1x128x128xbf16> to vector<128x128xbf16>
    %cst_71 = arith.constant dense<0.000000e+00> : vector<64x128xf32>
    %62 = tpu.matmul %59, %61, %cst_71 {dimension_numbers = #tpu.dot_dimension_numbers<[1], [0], [0], [1], [0, 0, 1, 1], [], []>} : vector<64x128xbf16>, vector<128x128xbf16>, vector<64x128xf32> -> vector<64x128xf32>
    %63 = arith.addf %56, %62 : vector<64x128xf32>
    %c0_72 = arith.constant 0 : index
    %c0_73 = arith.constant 0 : index
    %64 = vector.load %arg3[%c0_72, %c0_73] : memref<1x128xf32, #tpu.memory_space<vmem>>, vector<1x128xf32>
    %65 = vector.broadcast %64 : vector<1x128xf32> to vector<64x128xf32>
    %66 = arith.addf %63, %65 : vector<64x128xf32>
    %cst_74 = arith.constant 0.000000e+00 : f32
    %67 = vector.broadcast %cst_74 : f32 to vector<64x128xf32>
    %68 = arith.maximumf %66, %67 : vector<64x128xf32>
    %69 = arith.truncf %68 : vector<64x128xf32> to vector<64x128xbf16>
    %c0_75 = arith.constant 0 : index
    %c0_76 = arith.constant 0 : index
    %c0_77 = arith.constant 0 : index
    %70 = vector.load %arg4[%c0_75, %c0_76, %c0_77] : memref<1x64x128xbf16, #tpu.memory_space<vmem>>, vector<1x64x128xbf16>
    %71 = vector.shape_cast %70 : vector<1x64x128xbf16> to vector<64x128xbf16>
    %72 = vector.shape_cast %69 : vector<64x128xbf16> to vector<1x64x128xbf16>
    tpu.vector_store %arg4[%c0_75, %c0_76, %c0_77], %72 {strides = array<i32>} : memref<1x64x128xbf16, #tpu.memory_space<vmem>>, vector<1x64x128xbf16>,
    return
  }
  func.func @transform_0(%arg0: i32) -> (i32, i32, i32, i32, i32) {
    %c0_i32 = arith.constant 0 : i32
    %c0_i32_0 = arith.constant 0 : i32
    %c0_i32_1 = arith.constant 0 : i32
    %c0_i32_2 = arith.constant 0 : i32
    %c0_i32_3 = arith.constant 0 : i32
    return %arg0, %c0_i32, %c0_i32_0, %c0_i32_1, %c0_i32_2 : i32, i32, i32, i32, i32
  }
  func.func @transform_1(%arg0: i32) -> (i32, i32, i32) {
    %c0_i32 = arith.constant 0 : i32
    %c0_i32_0 = arith.constant 0 : i32
    %c0_i32_1 = arith.constant 0 : i32
    %c0_i32_2 = arith.constant 0 : i32
    return %c0_i32, %c0_i32_0, %c0_i32_1 : i32, i32, i32
  }
  func.func @transform_2(%arg0: i32) -> (i32, i32) {
    %c0_i32 = arith.constant 0 : i32
    %c0_i32_0 = arith.constant 0 : i32
    %c0_i32_1 = arith.constant 0 : i32
    return %c0_i32, %c0_i32_0 : i32, i32
  }
  func.func @transform_3(%arg0: i32) -> (i32, i32, i32) {
    %c0_i32 = arith.constant 0 : i32
    %c0_i32_0 = arith.constant 0 : i32
    %c0_i32_1 = arith.constant 0 : i32
    return %arg0, %c0_i32, %c0_i32_0 : i32, i32, i32
  }
}

module attributes {stable_mosaic.version = 11 : i64} {
  func.func @_conv3_downsample_kernel(%arg0: i32, %arg1: memref<32x128xbf16, #tpu.memory_space<vmem>>, %arg2: memref<128x128xbf16, #tpu.memory_space<vmem>>, %arg3: memref<1x128xf32, #tpu.memory_space<vmem>>, %arg4: memref<32x128xbf16, #tpu.memory_space<vmem>>, %arg5: memref<128x128xbf16, #tpu.memory_space<vmem>>, %arg6: memref<1x128xf32, #tpu.memory_space<vmem>>, %arg7: memref<32x128xf32, #tpu.memory_space<vmem>>) attributes {dimension_semantics = [#tpu.dimension_semantics<parallel>], iteration_bounds = array<i64: 4>, scalar_prefetch = 0 : i64, scratch_operands = 0 : i64, tpu.core_type = #tpu.core_type<tc>, window_params = [{transform_indices = @transform_0, window_bounds = array<i64: 32, 128>}, {pipeline_mode = #tpu.pipeline_mode<synchronous>, transform_indices = @transform_1, window_bounds = array<i64: 128, 128>}, {pipeline_mode = #tpu.pipeline_mode<synchronous>, transform_indices = @transform_2, window_bounds = array<i64: 1, 128>}, {transform_indices = @transform_3, window_bounds = array<i64: 32, 128>}, {pipeline_mode = #tpu.pipeline_mode<synchronous>, transform_indices = @transform_4, window_bounds = array<i64: 128, 128>}, {pipeline_mode = #tpu.pipeline_mode<synchronous>, transform_indices = @transform_5, window_bounds = array<i64: 1, 128>}, {transform_indices = @transform_6, window_bounds = array<i64: 32, 128>}]} {
    %c0 = arith.constant 0 : index
    %c0_0 = arith.constant 0 : index
    %0 = vector.load %arg1[%c0, %c0_0] : memref<32x128xbf16, #tpu.memory_space<vmem>>, vector<32x128xbf16>
    %c0_1 = arith.constant 0 : index
    %c0_2 = arith.constant 0 : index
    %1 = vector.load %arg2[%c0_1, %c0_2] : memref<128x128xbf16, #tpu.memory_space<vmem>>, vector<128x128xbf16>
    %cst = arith.constant dense<0.000000e+00> : vector<32x128xf32>
    %2 = tpu.matmul %0, %1, %cst {dimension_numbers = #tpu.dot_dimension_numbers<[1], [0], [0], [1], [0, 0, 1, 1], [], []>} : vector<32x128xbf16>, vector<128x128xbf16>, vector<32x128xf32> -> vector<32x128xf32>
    %c0_3 = arith.constant 0 : index
    %c0_4 = arith.constant 0 : index
    %3 = vector.load %arg3[%c0_3, %c0_4] : memref<1x128xf32, #tpu.memory_space<vmem>>, vector<1x128xf32>
    %4 = vector.broadcast %3 : vector<1x128xf32> to vector<32x128xf32>
    %5 = arith.addf %2, %4 : vector<32x128xf32>
    %c0_5 = arith.constant 0 : index
    %c0_6 = arith.constant 0 : index
    %6 = vector.load %arg4[%c0_5, %c0_6] : memref<32x128xbf16, #tpu.memory_space<vmem>>, vector<32x128xbf16>
    %c0_7 = arith.constant 0 : index
    %c0_8 = arith.constant 0 : index
    %7 = vector.load %arg5[%c0_7, %c0_8] : memref<128x128xbf16, #tpu.memory_space<vmem>>, vector<128x128xbf16>
    %cst_9 = arith.constant dense<0.000000e+00> : vector<32x128xf32>
    %8 = tpu.matmul %6, %7, %cst_9 {dimension_numbers = #tpu.dot_dimension_numbers<[1], [0], [0], [1], [0, 0, 1, 1], [], []>} : vector<32x128xbf16>, vector<128x128xbf16>, vector<32x128xf32> -> vector<32x128xf32>
    %c0_10 = arith.constant 0 : index
    %c0_11 = arith.constant 0 : index
    %9 = vector.load %arg6[%c0_10, %c0_11] : memref<1x128xf32, #tpu.memory_space<vmem>>, vector<1x128xf32>
    %10 = vector.broadcast %9 : vector<1x128xf32> to vector<32x128xf32>
    %11 = arith.addf %8, %10 : vector<32x128xf32>
    %12 = arith.addf %5, %11 : vector<32x128xf32>
    %cst_12 = arith.constant 0.000000e+00 : f32
    %13 = vector.broadcast %cst_12 : f32 to vector<32x128xf32>
    %14 = arith.maximumf %12, %13 : vector<32x128xf32>
    %c0_13 = arith.constant 0 : index
    %c0_14 = arith.constant 0 : index
    %15 = vector.load %arg7[%c0_13, %c0_14] : memref<32x128xf32, #tpu.memory_space<vmem>>, vector<32x128xf32>
    tpu.vector_store %arg7[%c0_13, %c0_14], %14 {strides = array<i32>} : memref<32x128xf32, #tpu.memory_space<vmem>>, vector<32x128xf32>,
    return
  }
  func.func @transform_0(%arg0: i32) -> (i32, i32) {
    %c0_i32 = arith.constant 0 : i32
    %c0_i32_0 = arith.constant 0 : i32
    return %arg0, %c0_i32 : i32, i32
  }
  func.func @transform_1(%arg0: i32) -> (i32, i32) {
    %c0_i32 = arith.constant 0 : i32
    %c0_i32_0 = arith.constant 0 : i32
    %c0_i32_1 = arith.constant 0 : i32
    return %c0_i32, %c0_i32_0 : i32, i32
  }
  func.func @transform_2(%arg0: i32) -> (i32, i32) {
    %c0_i32 = arith.constant 0 : i32
    %c0_i32_0 = arith.constant 0 : i32
    %c0_i32_1 = arith.constant 0 : i32
    return %c0_i32, %c0_i32_0 : i32, i32
  }
  func.func @transform_3(%arg0: i32) -> (i32, i32) {
    %c0_i32 = arith.constant 0 : i32
    %c0_i32_0 = arith.constant 0 : i32
    return %arg0, %c0_i32 : i32, i32
  }
  func.func @transform_4(%arg0: i32) -> (i32, i32) {
    %c0_i32 = arith.constant 0 : i32
    %c0_i32_0 = arith.constant 0 : i32
    %c0_i32_1 = arith.constant 0 : i32
    return %c0_i32, %c0_i32_0 : i32, i32
  }
  func.func @transform_5(%arg0: i32) -> (i32, i32) {
    %c0_i32 = arith.constant 0 : i32
    %c0_i32_0 = arith.constant 0 : i32
    %c0_i32_1 = arith.constant 0 : i32
    return %c0_i32, %c0_i32_0 : i32, i32
  }
  func.func @transform_6(%arg0: i32) -> (i32, i32) {
    %c0_i32 = arith.constant 0 : i32
    %c0_i32_0 = arith.constant 0 : i32
    return %arg0, %c0_i32 : i32, i32
  }
}

</mosaic_0001>

<llo_original>
// kernel: bottleneck_forward.3
$region0: #{bottleneck_forward.3}
  #allocation0 [shape = 'u32[]', space=smem, size = 0x4, offset = 0x4, fixed_abs, tag = 'smem constant byte address 0x4 - core index']
  #allocation1 [shape = 'u32[144,128]{1,0:T(1,128)}', space=vmem, size = 0x12000, scoped, tag = 'internal scratch']
  %s0 = inlined_call_operand.vmem [shape: bf16[512,128], index: 0, kind: input, shape index: {}]
  %s1 = inlined_call_operand.vmem [shape: bf16[128,128], index: 1, kind: input, shape index: {}]
  %s2 = inlined_call_operand.vmem [shape: f32[1,128], index: 2, kind: input, shape index: {}]
  %s3 = inlined_call_operand.vmem [shape: bf16[512,128], index: 3, kind: output, shape index: {}]
  %s4 = sld [smem:[#allocation0]]
  $region45: #{bottleneck_forward.3} parent=0
    _
  %s6 = ssub.s32 1, %s4
  %s7 = scalar_select 0, %s6, %s4
  loop: start=0, step=1, limit=6
  $region2: #{bottleneck_forward.3} parent=0 // loop_pre_header
    _
  $region3: #{bottleneck_forward.3} parent=0 // loop_header
    %s9 = sphi 0, %s13
    %p10 = scmp.ge.s32.totalorder %s9, 6
    %s19 = sphi 0, %s21
    %s22 = sphi 0, %s19
    %s23 = sphi 0, %s22
    %s39 = sphi 0, %s23
    %s43 = sphi 0, %s43
    %s45 = sphi 0, %s43
    %s46 = sphi 0, %s45
    %s60 = sphi 0, %s46
    %s64 = sphi 0, %s64
    %s66 = sphi 0, %s64
    %s67 = sphi 0, %s66
    %s81 = sphi 0, %s67
    %s87 = sphi 0, %s89
    %s90 = sphi 0, %s87
    %s91 = sphi 0, %s90
    %s107 = sphi 0, %s91
  $region4: #{bottleneck_forward.3} parent=0 // loop_header_branch
    %12 = sbr.rel (%p10) target = $region8
  $region5: #{bottleneck_forward.3} parent=0 // loop_body
    %s14 = ssub.s32 %s9, 1
    %s15 = ssub.s32 %s9, 2
    %s16 = sadd.s32 %s9, 1
    %s17 = ssub.s32 %s9, %s16
    %p18 = scmp.eq.s32.totalorder %s17, 0
    %s20 = sadd.s32 %s19, 1
    %s21 = scalar_select %p18, %s19, %s20
    %p24 = pneg %p18
    %p25 = scmp.eq.s32.totalorder %s9, 3
    %p26 = por %p24, %p25
    %p27 = scmp.ne.s32.totalorder %s19, %s22
    %p28 = scmp.eq.s32.totalorder %s9, 0
    %p29 = por %p27, %p28
    %p30 = scmp.ne.s32.totalorder %s19, %s22
    %p31 = scmp.eq.s32.totalorder %s14, 3
    %p32 = por %p30, %p31
    %p33 = scmp.ne.s32.totalorder %s22, %s23
    %p34 = scmp.eq.s32.totalorder %s14, 0
    %p35 = por %p33, %p34
    %p36 = scmp.ne.s32.totalorder %s22, %s23
    %p37 = scmp.eq.s32.totalorder %s15, 3
    %p38 = por %p36, %p37
    %p40 = scmp.ne.s32.totalorder %s23, %s39
    %p41 = scmp.eq.s32.totalorder %s15, 0
    %p42 = por %p40, %p41
    %s44 = sadd.s32 %s43, 1
    %p47 = scmp.eq.s32.totalorder %s9, 3
    %p48 = scmp.ne.s32.totalorder %s43, %s45
    %p49 = scmp.eq.s32.totalorder %s9, 0
    %p50 = por %p48, %p49
    %p51 = scmp.ne.s32.totalorder %s43, %s45
    %p52 = scmp.eq.s32.totalorder %s14, 3
    %p53 = por %p51, %p52
    %p54 = scmp.ne.s32.totalorder %s45, %s46
    %p55 = scmp.eq.s32.totalorder %s14, 0
    %p56 = por %p54, %p55
    %p57 = scmp.ne.s32.totalorder %s45, %s46
    %p58 = scmp.eq.s32.totalorder %s15, 3
    %p59 = por %p57, %p58
    %p61 = scmp.ne.s32.totalorder %s46, %s60
    %p62 = scmp.eq.s32.totalorder %s15, 0
    %p63 = por %p61, %p62
    %s65 = sadd.s32 %s64, 1
    %p68 = scmp.eq.s32.totalorder %s9, 3
    %p69 = scmp.ne.s32.totalorder %s64, %s66
    %p70 = scmp.eq.s32.totalorder %s9, 0
    %p71 = por %p69, %p70
    %p72 = scmp.ne.s32.totalorder %s64, %s66
    %p73 = scmp.eq.s32.totalorder %s14, 3
    %p74 = por %p72, %p73
    %p75 = scmp.ne.s32.totalorder %s66, %s67
    %p76 = scmp.eq.s32.totalorder %s14, 0
    %p77 = por %p75, %p76
    %p78 = scmp.ne.s32.totalorder %s66, %s67
    %p79 = scmp.eq.s32.totalorder %s15, 3
    %p80 = por %p78, %p79
    %p82 = scmp.ne.s32.totalorder %s67, %s81
    %p83 = scmp.eq.s32.totalorder %s15, 0
    %p84 = por %p82, %p83
    %s85 = ssub.s32 %s9, %s16
    %p86 = scmp.eq.s32.totalorder %s85, 0
    %s88 = sadd.s32 %s87, 1
    %s89 = scalar_select %p86, %s87, %s88
    %p92 = pneg %p86
    %p93 = scmp.eq.s32.totalorder %s9, 3
    %p94 = por %p92, %p93
    %p95 = scmp.ne.s32.totalorder %s87, %s90
    %p96 = scmp.eq.s32.totalorder %s9, 0
    %p97 = por %p95, %p96
    %p98 = scmp.ne.s32.totalorder %s87, %s90
    %p99 = scmp.eq.s32.totalorder %s14, 3
    %p100 = por %p98, %p99
    %p101 = scmp.ne.s32.totalorder %s90, %s91
    %p102 = scmp.eq.s32.totalorder %s14, 0
    %p103 = por %p101, %p102
    %p104 = scmp.ne.s32.totalorder %s90, %s91
    %p105 = scmp.eq.s32.totalorder %s15, 3
    %p106 = por %p104, %p105
    %p108 = scmp.ne.s32.totalorder %s91, %s107
    %p109 = scmp.eq.s32.totalorder %s15, 0
    %p110 = por %p108, %p109
    %p111 = scmp.le.s32.totalorder 1, %s9
    %p112 = scmp.lt.s32.totalorder %s9, 5
    %p113 = pnand %p111, %p112
    %p114 = pneg %p113
    // Predicated region
    $region9: #{bottleneck_forward.3} parent=5 // pred_check
      _
    $region10: #{bottleneck_forward.3} parent=5 // pred_check_branch
      %116 = sbr.rel (%p113) target = $region12
    $region11: #{bottleneck_forward.3} parent=5 // pred_region
      %s117 = ssub.s32 %s9, 1
      // Predicated region
      $region13: #{bottleneck_forward.3} parent=11 // pred_check
        %p118 = pneg %p56
      $region14: #{bottleneck_forward.3} parent=11 // pred_check_branch
        %120 = sbr.rel (%p118) target = $region16
      $region15: #{bottleneck_forward.3} parent=11 // pred_region
        _
      $region16: #{bottleneck_forward.3} parent=11 // pred_fallthru
        _
      // Predicated region
      $region17: #{bottleneck_forward.3} parent=11 // pred_check
        %p121 = pneg %p77
      $region18: #{bottleneck_forward.3} parent=11 // pred_check_branch
        %123 = sbr.rel (%p121) target = $region20
      $region19: #{bottleneck_forward.3} parent=11 // pred_region
        _
      $region20: #{bottleneck_forward.3} parent=11 // pred_fallthru
        _
    $region12: #{bottleneck_forward.3} parent=5 // pred_fallthru
      _
    %p124 = scmp.lt.s32.totalorder %s9, 4
    // Predicated region
    $region21: #{bottleneck_forward.3} parent=5 // pred_check
      %p125 = pneg %p124
    $region22: #{bottleneck_forward.3} parent=5 // pred_check_branch
      %127 = sbr.rel (%p125) target = $region24
    $region23: #{bottleneck_forward.3} parent=5 // pred_region
      // Predicated region
      $region25: #{bottleneck_forward.3} parent=23 // pred_check
        %p128 = pneg %p29
      $region26: #{bottleneck_forward.3} parent=23 // pred_check_branch
        %130 = sbr.rel (%p128) target = $region28
      $region27: #{bottleneck_forward.3} parent=23 // pred_region
        %s131 = smul.u32 16, %s9
        %p132 = scmp.lt.s32.totalorder %s131, 63
        %s133 = scalar_select %p132, %s131, 63
        %s134 = smul.addr %s133, 4
        %s135 = scalar_lea.vmem %s0, %s134
        %s136 = smul.u32 16, %s9
      $region28: #{bottleneck_forward.3} parent=23 // pred_fallthru
        _
    $region24: #{bottleneck_forward.3} parent=5 // pred_fallthru
      _
    %p137 = scmp.le.s32.totalorder 1, %s9
    %p138 = scmp.lt.s32.totalorder %s9, 5
    %p139 = pnand %p137, %p138
    %p140 = pneg %p139
    // Predicated region
    $region29: #{bottleneck_forward.3} parent=5 // pred_check
      _
    $region30: #{bottleneck_forward.3} parent=5 // pred_check_branch
      %142 = sbr.rel (%p139) target = $region32
    $region31: #{bottleneck_forward.3} parent=5 // pred_region
      %s143 = ssub.s32 %s9, 1
      %s144 = smul.u32 16, %s14
      %p145 = scmp.lt.s32.totalorder %s144, 63
      %s146 = scalar_select %p145, %s144, 63
      %s147 = smul.addr %s146, 4
      %s148 = scalar_lea.vmem %s0, %s147
      %p149 = pneg %p35
      %p150 = pneg %p32
      %p151 = pneg %p56
      %p152 = pneg %p53
      %p153 = pneg %p77
      %p154 = pneg %p74
      %p155 = pneg %p103
      %p156 = pneg %p100
      %s157 = smul.u32 16, %s14
      %p158 = scmp.lt.s32.totalorder %s157, 63
      %s159 = scalar_select %p158, %s157, 63
      %s160 = smul.addr %s159, 4
      %s161 = scalar_lea.vmem %s3, %s160
      %s162 = smul.u32 16, %s14
      %p163 = scmp.lt.s32.totalorder %s162, 63
      %s164 = scalar_select %p163, %s162, 63
      %s165 = smul.addr %s164, 4
      %s166 = scalar_lea.vmem %s0, %s165
      %s167 = smul.u32 16, %s14
      %s168 = smul.u32 16, %s14
      %p169 = scmp.lt.s32.totalorder %s168, 63
      %s170 = scalar_select %p169, %s168, 63
      %s171 = smul.addr %s170, 4
      %s172 = scalar_lea.vmem %s3, %s171
      %s173 = smul.u32 16, %s14
      %v175 = vld [vmem:[%s166] sm:$0xf]
      %v176 = vld [vmem:[%s166 + $0x4] sm:$0xf]
      %v177 = vld [vmem:[%s166 + $0x8] sm:$0xf]
      %v178 = vld [vmem:[%s166 + $0xc] sm:$0xf]
      %v179 = vld [vmem:[%s166 + $0x10] sm:$0xf]
      %v180 = vld [vmem:[%s166 + $0x14] sm:$0xf]
      %v181 = vld [vmem:[%s166 + $0x18] sm:$0xf]
      %v182 = vld [vmem:[%s166 + $0x1c] sm:$0xf]
      %v183 = vld [vmem:[%s166 + $0x20] sm:$0xf]
      %v184 = vld [vmem:[%s166 + $0x24] sm:$0xf]
      %v185 = vld [vmem:[%s166 + $0x28] sm:$0xf]
      %v186 = vld [vmem:[%s166 + $0x2c] sm:$0xf]
      %v187 = vld [vmem:[%s166 + $0x30] sm:$0xf]
      %v188 = vld [vmem:[%s166 + $0x34] sm:$0xf]
      %v189 = vld [vmem:[%s166 + $0x38] sm:$0xf]
      %v190 = vld [vmem:[%s166 + $0x3c] sm:$0xf]
      %v191 = vld [vmem:[%s1] sm:$0xf]
      %v192 = vld [vmem:[%s1 + $0x4] sm:$0xf]
      %v193 = vld [vmem:[%s1 + $0x8] sm:$0xf]
      %v194 = vld [vmem:[%s1 + $0xc] sm:$0xf]
      %v195 = vld [vmem:[%s1 + $0x10] sm:$0xf]
      %v196 = vld [vmem:[%s1 + $0x14] sm:$0xf]
      %v197 = vld [vmem:[%s1 + $0x18] sm:$0xf]
      %v198 = vld [vmem:[%s1 + $0x1c] sm:$0xf]
      %v199 = vld [vmem:[%s1 + $0x20] sm:$0xf]
      %v200 = vld [vmem:[%s1 + $0x24] sm:$0xf]
      %v201 = vld [vmem:[%s1 + $0x28] sm:$0xf]
      %v202 = vld [vmem:[%s1 + $0x2c] sm:$0xf]
      %v203 = vld [vmem:[%s1 + $0x30] sm:$0xf]
      %v204 = vld [vmem:[%s1 + $0x34] sm:$0xf]
      %v205 = vld [vmem:[%s1 + $0x38] sm:$0xf]
      %v206 = vld [vmem:[%s1 + $0x3c] sm:$0xf]
      %v207 = vld [vmem:[%s2] sm:$0x1]
      %v209 = vlaneseq
      %v210 = vshrl.u32 %v209, 7
      %v211 = vsub.s32 0, %v210
      %v212 = vrot.slane %v207, %v211
      %v230 = vunpack.c.l.b16 %v175
      %v231 = vunpack.c.l.b16 %v176
      %v232 = vunpack.c.l.b16 %v177
      %v233 = vunpack.c.l.b16 %v178
      %v234 = vunpack.c.l.b16 %v179
      %v235 = vunpack.c.l.b16 %v180
      %v236 = vunpack.c.l.b16 %v181
      %v237 = vunpack.c.l.b16 %v182
      %v238 = vunpack.c.l.b16 %v183
      %v239 = vunpack.c.l.b16 %v184
      %v240 = vunpack.c.l.b16 %v185
      %v241 = vunpack.c.l.b16 %v186
      %v242 = vunpack.c.l.b16 %v187
      %v243 = vunpack.c.l.b16 %v188
      %v244 = vunpack.c.l.b16 %v189
      %v245 = vunpack.c.l.b16 %v190
      %v246 = vpack.c.b16 %v231, %v230
      %v247 = vpack.c.b16 %v233, %v232
      %v248 = vpack.c.b16 %v235, %v234
      %v249 = vpack.c.b16 %v237, %v236
      %v250 = vpack.c.b16 %v239, %v238
      %v251 = vpack.c.b16 %v241, %v240
      %v252 = vpack.c.b16 %v243, %v242
      %v253 = vpack.c.b16 %v245, %v244
      %v278 = vunpack.c.l.b16 %v191
      %v279 = vunpack.c.l.b16 %v192
      %v280 = vunpack.c.l.b16 %v193
      %v281 = vunpack.c.l.b16 %v194
      %v282 = vunpack.c.l.b16 %v195
      %v283 = vunpack.c.l.b16 %v196
      %v284 = vunpack.c.l.b16 %v197
      %v285 = vunpack.c.l.b16 %v198
      %v286 = vunpack.c.l.b16 %v199
      %v287 = vunpack.c.l.b16 %v200
      %v288 = vunpack.c.l.b16 %v201
      %v289 = vunpack.c.l.b16 %v202
      %v290 = vunpack.c.l.b16 %v203
      %v291 = vunpack.c.l.b16 %v204
      %v292 = vunpack.c.l.b16 %v205
      %v293 = vunpack.c.l.b16 %v206
      %v294 = vpack.c.b16 %v279, %v278
      %v295 = vpack.c.b16 %v281, %v280
      %v296 = vpack.c.b16 %v283, %v282
      %v297 = vpack.c.b16 %v285, %v284
      %v298 = vpack.c.b16 %v287, %v286
      %v299 = vpack.c.b16 %v289, %v288
      %v300 = vpack.c.b16 %v291, %v290
      %v301 = vpack.c.b16 %v293, %v292
      %310 = vmatprep.subr.bf16.mxu0 0
      %311 = vmatpush1.bf16.msra.mxu0 %v301
      %312 = vmatprep.subr.bf16.mxu0 0
      %313 = vmatpush1.bf16.msra.mxu0 %v300
      %314 = vmatprep.subr.bf16.mxu0 0
      %315 = vmatpush1.bf16.msra.mxu0 %v299
      %316 = vmatprep.subr.bf16.mxu0 0
      %317 = vmatpush1.bf16.msra.mxu0 %v298
      %318 = vmatprep.subr.bf16.mxu0 0
      %319 = vmatpush1.bf16.msra.mxu0 %v297
      %320 = vmatprep.subr.bf16.mxu0 0
      %321 = vmatpush1.bf16.msra.mxu0 %v296
      %322 = vmatprep.subr.bf16.mxu0 0
      %323 = vmatpush1.bf16.msra.mxu0 %v295
      %324 = vmatprep.subr.bf16.mxu0 0
      %325 = vmatpush1.bf16.msra.mxu0 %v294
      %326 = vmatprep.subr.bf16.mxu0 0
      %327 = vmatpush2.bf16.msra.mxu0 0
      %328 = vmatprep.subr.bf16.mxu0 0
      %329 = vmatpush2.bf16.msra.mxu0 0
      %330 = vmatprep.subr.bf16.mxu0 0
      %331 = vmatpush2.bf16.msra.mxu0 0
      %332 = vmatprep.subr.bf16.mxu0 0
      %333 = vmatpush2.bf16.msra.mxu0 0
      %334 = vmatprep.subr.bf16.mxu0 0
      %335 = vmatpush2.bf16.msra.mxu0 0
      %336 = vmatprep.subr.bf16.mxu0 0
      %337 = vmatpush2.bf16.msra.mxu0 0
      %338 = vmatprep.subr.bf16.mxu0 0
      %339 = vmatpush2.bf16.msra.mxu0 0
      %340 = vmatprep.subr.bf16.mxu0 0
      %341 = vmatpush2.bf16.msra.mxu0 0
      %342 = vmatprep.mubr.bf16.mxu0 0
      %343 = vmatmul.mubr.bf16.gmra.mxu0 %v246
      %v344 = vpop.f32.mrf.mxu0
      %v345 = vadd.f32 %v212, %v344
      %v346 = vpop.f32.mrf.mxu0
      %v347 = vpop.f32.mrf.mxu0
      %v348 = vadd.f32 %v212, %v347
      %v349 = vpop.f32.mrf.mxu0
      %350 = vmatprep.mubr.bf16.mxu0 0
      %351 = vmatmul.mubr.bf16.gmra.mxu0 %v247
      %v352 = vpop.f32.mrf.mxu0
      %v353 = vadd.f32 %v212, %v352
      %v354 = vpop.f32.mrf.mxu0
      %v355 = vpop.f32.mrf.mxu0
      %v356 = vadd.f32 %v212, %v355
      %v357 = vpop.f32.mrf.mxu0
      %358 = vmatprep.mubr.bf16.mxu0 0
      %359 = vmatmul.mubr.bf16.gmra.mxu0 %v248
      %v360 = vpop.f32.mrf.mxu0
      %v361 = vadd.f32 %v212, %v360
      %v362 = vpop.f32.mrf.mxu0
      %v363 = vpop.f32.mrf.mxu0
      %v364 = vadd.f32 %v212, %v363
      %v365 = vpop.f32.mrf.mxu0
      %366 = vmatprep.mubr.bf16.mxu0 0
      %367 = vmatmul.mubr.bf16.gmra.mxu0 %v249
      %v368 = vpop.f32.mrf.mxu0
      %v369 = vadd.f32 %v212, %v368
      %v370 = vpop.f32.mrf.mxu0
      %v371 = vpop.f32.mrf.mxu0
      %v372 = vadd.f32 %v212, %v371
      %v373 = vpop.f32.mrf.mxu0
      %374 = vmatprep.mubr.bf16.mxu0 0
      %375 = vmatmul.mubr.bf16.gmra.mxu0 %v250
      %v376 = vpop.f32.mrf.mxu0
      %v377 = vadd.f32 %v212, %v376
      %v378 = vpop.f32.mrf.mxu0
      %v379 = vpop.f32.mrf.mxu0
      %v380 = vadd.f32 %v212, %v379
      %v381 = vpop.f32.mrf.mxu0
      %382 = vmatprep.mubr.bf16.mxu0 0
      %383 = vmatmul.mubr.bf16.gmra.mxu0 %v251
      %v384 = vpop.f32.mrf.mxu0
      %v385 = vadd.f32 %v212, %v384
      %v386 = vpop.f32.mrf.mxu0
      %v387 = vpop.f32.mrf.mxu0
      %v388 = vadd.f32 %v212, %v387
      %v389 = vpop.f32.mrf.mxu0
      %390 = vmatprep.mubr.bf16.mxu0 0
      %391 = vmatmul.mubr.bf16.gmra.mxu0 %v252
      %v392 = vpop.f32.mrf.mxu0
      %v393 = vadd.f32 %v212, %v392
      %v394 = vpop.f32.mrf.mxu0
      %v395 = vpop.f32.mrf.mxu0
      %v396 = vadd.f32 %v212, %v395
      %v397 = vpop.f32.mrf.mxu0
      %398 = vmatprep.mubr.bf16.mxu0 0
      %399 = vmatmul.mubr.bf16.gmra.mxu0 %v253
      %v400 = vpop.f32.mrf.mxu0
      %v401 = vadd.f32 %v212, %v400
      %v402 = vpop.f32.mrf.mxu0
      %v403 = vpop.f32.mrf.mxu0
      %v404 = vadd.f32 %v212, %v403
      %v405 = vpop.f32.mrf.mxu0
      %406 = vdwg.mxu0
      %v407 = vmax.f32 %v345, 0.0
      %v408 = vmax.f32 %v348, 0.0
      %v409 = vmax.f32 %v353, 0.0
      %v410 = vmax.f32 %v356, 0.0
      %v411 = vmax.f32 %v361, 0.0
      %v412 = vmax.f32 %v364, 0.0
      %v413 = vmax.f32 %v369, 0.0
      %v414 = vmax.f32 %v372, 0.0
      %v415 = vmax.f32 %v377, 0.0
      %v416 = vmax.f32 %v380, 0.0
      %v417 = vmax.f32 %v385, 0.0
      %v418 = vmax.f32 %v388, 0.0
      %v419 = vmax.f32 %v393, 0.0
      %v420 = vmax.f32 %v396, 0.0
      %v421 = vmax.f32 %v401, 0.0
      %v422 = vmax.f32 %v404, 0.0
      %v423 = vpack.c.bf16 %v408, %v407
      %v424 = vpack.c.bf16 %v410, %v409
      %v425 = vpack.c.bf16 %v412, %v411
      %v426 = vpack.c.bf16 %v414, %v413
      %v427 = vpack.c.bf16 %v416, %v415
      %v428 = vpack.c.bf16 %v418, %v417
      %v429 = vpack.c.bf16 %v420, %v419
      %v430 = vpack.c.bf16 %v422, %v421
      %v439 = vunpack.c.l.b16 %v423
      %v440 = vunpack.c.h.b16 %v423
      %v441 = vunpack.c.l.b16 %v424
      %v442 = vunpack.c.h.b16 %v424
      %v443 = vunpack.c.l.b16 %v425
      %v444 = vunpack.c.h.b16 %v425
      %v445 = vunpack.c.l.b16 %v426
      %v446 = vunpack.c.h.b16 %v426
      %v447 = vunpack.c.l.b16 %v427
      %v448 = vunpack.c.h.b16 %v427
      %v449 = vunpack.c.l.b16 %v428
      %v450 = vunpack.c.h.b16 %v428
      %v451 = vunpack.c.l.b16 %v429
      %v452 = vunpack.c.h.b16 %v429
      %v453 = vunpack.c.l.b16 %v430
      %v454 = vunpack.c.h.b16 %v430
      %v455 = vpack.c.b16 %v439, %v439
      %v456 = vpack.c.b16 %v440, %v440
      %v457 = vpack.c.b16 %v441, %v441
      %v458 = vpack.c.b16 %v442, %v442
      %v459 = vpack.c.b16 %v443, %v443
      %v460 = vpack.c.b16 %v444, %v444
      %v461 = vpack.c.b16 %v445, %v445
      %v462 = vpack.c.b16 %v446, %v446
      %v463 = vpack.c.b16 %v447, %v447
      %v464 = vpack.c.b16 %v448, %v448
      %v465 = vpack.c.b16 %v449, %v449
      %v466 = vpack.c.b16 %v450, %v450
      %v467 = vpack.c.b16 %v451, %v451
      %v468 = vpack.c.b16 %v452, %v452
      %v469 = vpack.c.b16 %v453, %v453
      %v470 = vpack.c.b16 %v454, %v454
      %487 = vst [vmem:[%s172] sm:$0xf] %v455
      %488 = vst [vmem:[%s172 + $0x4] sm:$0xf] %v456
      %489 = vst [vmem:[%s172 + $0x8] sm:$0xf] %v457
      %490 = vst [vmem:[%s172 + $0xc] sm:$0xf] %v458
      %491 = vst [vmem:[%s172 + $0x10] sm:$0xf] %v459
      %492 = vst [vmem:[%s172 + $0x14] sm:$0xf] %v460
      %493 = vst [vmem:[%s172 + $0x18] sm:$0xf] %v461
      %494 = vst [vmem:[%s172 + $0x1c] sm:$0xf] %v462
      %495 = vst [vmem:[%s172 + $0x20] sm:$0xf] %v463
      %496 = vst [vmem:[%s172 + $0x24] sm:$0xf] %v464
      %497 = vst [vmem:[%s172 + $0x28] sm:$0xf] %v465
      %498 = vst [vmem:[%s172 + $0x2c] sm:$0xf] %v466
      %499 = vst [vmem:[%s172 + $0x30] sm:$0xf] %v467
      %500 = vst [vmem:[%s172 + $0x34] sm:$0xf] %v468
      %501 = vst [vmem:[%s172 + $0x38] sm:$0xf] %v469
      %502 = vst [vmem:[%s172 + $0x3c] sm:$0xf] %v470
      %s503 = smul.u32 16, %s14
      %p504 = scmp.lt.s32.totalorder %s503, 63
      %s505 = scalar_select %p504, %s503, 63
      %s506 = smul.addr %s505, 4
      %s507 = scalar_lea.vmem %s3, %s506
      // Predicated region
      $region33: #{bottleneck_forward.3} parent=31 // pred_check
        %p508 = pneg %p100
      $region34: #{bottleneck_forward.3} parent=31 // pred_check_branch
        %510 = sbr.rel (%p508) target = $region36
      $region35: #{bottleneck_forward.3} parent=31 // pred_region
        %s511 = smul.u32 16, %s14
      $region36: #{bottleneck_forward.3} parent=31 // pred_fallthru
        _
    $region32: #{bottleneck_forward.3} parent=5 // pred_fallthru
      _
    %p512 = scmp.le.s32.totalorder 2, %s9
    // Predicated region
    $region37: #{bottleneck_forward.3} parent=5 // pred_check
      %p513 = pneg %p512
    $region38: #{bottleneck_forward.3} parent=5 // pred_check_branch
      %515 = sbr.rel (%p513) target = $region40
    $region39: #{bottleneck_forward.3} parent=5 // pred_region
      %s516 = ssub.s32 %s9, 2
      // Predicated region
      $region41: #{bottleneck_forward.3} parent=39 // pred_check
        %p517 = pneg %p106
      $region42: #{bottleneck_forward.3} parent=39 // pred_check_branch
        %519 = sbr.rel (%p517) target = $region44
      $region43: #{bottleneck_forward.3} parent=39 // pred_region
        %s520 = smul.u32 16, %s15
        %p521 = scmp.lt.s32.totalorder %s520, 63
        %s522 = scalar_select %p521, %s520, 63
        %s523 = smul.addr %s522, 4
        %s524 = scalar_lea.vmem %s3, %s523
      $region44: #{bottleneck_forward.3} parent=39 // pred_fallthru
        _
    $region40: #{bottleneck_forward.3} parent=5 // pred_fallthru
      _
  $region6: #{bottleneck_forward.3} parent=0 // loop_footer
    %s13 = sadd.s32 1, %s9
  $region7: #{bottleneck_forward.3} parent=0 // loop_footer_branch
    %8 = sbr.rel target = $region3
  $region8: #{bottleneck_forward.3} parent=0 // loop_exit
    _

// kernel: bottleneck_forward.4
$region0: #{bottleneck_forward.4}
  #allocation0 [shape = 'u32[]', space=smem, size = 0x4, offset = 0x4, fixed_abs, tag = 'smem constant byte address 0x4 - core index']
  #allocation1 [shape = 'u32[144,128]{1,0:T(1,128)}', space=vmem, size = 0x12000, scoped, tag = 'internal scratch']
  %s0 = inlined_call_operand.vmem [shape: bf16[2,4,9,9,128], index: 0, kind: input, shape index: {}]
  %s1 = inlined_call_operand.vmem [shape: bf16[9,128,128], index: 1, kind: input, shape index: {}]
  %s2 = inlined_call_operand.vmem [shape: f32[1,128], index: 2, kind: input, shape index: {}]
  %s3 = inlined_call_operand.vmem [shape: bf16[2,64,128], index: 3, kind: output, shape index: {}]
  %s4 = sld [smem:[#allocation0]]
  $region45: #{bottleneck_forward.4} parent=0
    _
  %s6 = ssub.s32 1, %s4
  %s7 = scalar_select 0, %s6, %s4
  loop: start=0, step=1, limit=4
  $region2: #{bottleneck_forward.4} parent=0 // loop_pre_header
    _
  $region3: #{bottleneck_forward.4} parent=0 // loop_header
    %s9 = sphi 0, %s13
    %p10 = scmp.ge.s32.totalorder %s9, 4
    %s19 = sphi 0, %s21
    %s22 = sphi 0, %s19
    %s23 = sphi 0, %s22
    %s39 = sphi 0, %s23
    %s43 = sphi 0, %s43
    %s45 = sphi 0, %s43
    %s46 = sphi 0, %s45
    %s60 = sphi 0, %s46
    %s64 = sphi 0, %s64
    %s66 = sphi 0, %s64
    %s67 = sphi 0, %s66
    %s81 = sphi 0, %s67
    %s87 = sphi 0, %s89
    %s90 = sphi 0, %s87
    %s91 = sphi 0, %s90
    %s107 = sphi 0, %s91
  $region4: #{bottleneck_forward.4} parent=0 // loop_header_branch
    %12 = sbr.rel (%p10) target = $region8
  $region5: #{bottleneck_forward.4} parent=0 // loop_body
    %s14 = ssub.s32 %s9, 1
    %s15 = ssub.s32 %s9, 2
    %s16 = sadd.s32 %s9, 1
    %s17 = ssub.s32 %s9, %s16
    %p18 = scmp.eq.s32.totalorder %s17, 0
    %s20 = sadd.s32 %s19, 1
    %s21 = scalar_select %p18, %s19, %s20
    %p24 = pneg %p18
    %p25 = scmp.eq.s32.totalorder %s9, 1
    %p26 = por %p24, %p25
    %p27 = scmp.ne.s32.totalorder %s19, %s22
    %p28 = scmp.eq.s32.totalorder %s9, 0
    %p29 = por %p27, %p28
    %p30 = scmp.ne.s32.totalorder %s19, %s22
    %p31 = scmp.eq.s32.totalorder %s14, 1
    %p32 = por %p30, %p31
    %p33 = scmp.ne.s32.totalorder %s22, %s23
    %p34 = scmp.eq.s32.totalorder %s14, 0
    %p35 = por %p33, %p34
    %p36 = scmp.ne.s32.totalorder %s22, %s23
    %p37 = scmp.eq.s32.totalorder %s15, 1
    %p38 = por %p36, %p37
    %p40 = scmp.ne.s32.totalorder %s23, %s39
    %p41 = scmp.eq.s32.totalorder %s15, 0
    %p42 = por %p40, %p41
    %s44 = sadd.s32 %s43, 1
    %p47 = scmp.eq.s32.totalorder %s9, 1
    %p48 = scmp.ne.s32.totalorder %s43, %s45
    %p49 = scmp.eq.s32.totalorder %s9, 0
    %p50 = por %p48, %p49
    %p51 = scmp.ne.s32.totalorder %s43, %s45
    %p52 = scmp.eq.s32.totalorder %s14, 1
    %p53 = por %p51, %p52
    %p54 = scmp.ne.s32.totalorder %s45, %s46
    %p55 = scmp.eq.s32.totalorder %s14, 0
    %p56 = por %p54, %p55
    %p57 = scmp.ne.s32.totalorder %s45, %s46
    %p58 = scmp.eq.s32.totalorder %s15, 1
    %p59 = por %p57, %p58
    %p61 = scmp.ne.s32.totalorder %s46, %s60
    %p62 = scmp.eq.s32.totalorder %s15, 0
    %p63 = por %p61, %p62
    %s65 = sadd.s32 %s64, 1
    %p68 = scmp.eq.s32.totalorder %s9, 1
    %p69 = scmp.ne.s32.totalorder %s64, %s66
    %p70 = scmp.eq.s32.totalorder %s9, 0
    %p71 = por %p69, %p70
    %p72 = scmp.ne.s32.totalorder %s64, %s66
    %p73 = scmp.eq.s32.totalorder %s14, 1
    %p74 = por %p72, %p73
    %p75 = scmp.ne.s32.totalorder %s66, %s67
    %p76 = scmp.eq.s32.totalorder %s14, 0
    %p77 = por %p75, %p76
    %p78 = scmp.ne.s32.totalorder %s66, %s67
    %p79 = scmp.eq.s32.totalorder %s15, 1
    %p80 = por %p78, %p79
    %p82 = scmp.ne.s32.totalorder %s67, %s81
    %p83 = scmp.eq.s32.totalorder %s15, 0
    %p84 = por %p82, %p83
    %s85 = ssub.s32 %s9, %s16
    %p86 = scmp.eq.s32.totalorder %s85, 0
    %s88 = sadd.s32 %s87, 1
    %s89 = scalar_select %p86, %s87, %s88
    %p92 = pneg %p86
    %p93 = scmp.eq.s32.totalorder %s9, 1
    %p94 = por %p92, %p93
    %p95 = scmp.ne.s32.totalorder %s87, %s90
    %p96 = scmp.eq.s32.totalorder %s9, 0
    %p97 = por %p95, %p96
    %p98 = scmp.ne.s32.totalorder %s87, %s90
    %p99 = scmp.eq.s32.totalorder %s14, 1
    %p100 = por %p98, %p99
    %p101 = scmp.ne.s32.totalorder %s90, %s91
    %p102 = scmp.eq.s32.totalorder %s14, 0
    %p103 = por %p101, %p102
    %p104 = scmp.ne.s32.totalorder %s90, %s91
    %p105 = scmp.eq.s32.totalorder %s15, 1
    %p106 = por %p104, %p105
    %p108 = scmp.ne.s32.totalorder %s91, %s107
    %p109 = scmp.eq.s32.totalorder %s15, 0
    %p110 = por %p108, %p109
    %p111 = scmp.le.s32.totalorder 1, %s9
    %p112 = scmp.lt.s32.totalorder %s9, 3
    %p113 = pnand %p111, %p112
    %p114 = pneg %p113
    // Predicated region
    $region9: #{bottleneck_forward.4} parent=5 // pred_check
      _
    $region10: #{bottleneck_forward.4} parent=5 // pred_check_branch
      %116 = sbr.rel (%p113) target = $region12
    $region11: #{bottleneck_forward.4} parent=5 // pred_region
      %s117 = ssub.s32 %s9, 1
      // Predicated region
      $region13: #{bottleneck_forward.4} parent=11 // pred_check
        %p118 = pneg %p56
      $region14: #{bottleneck_forward.4} parent=11 // pred_check_branch
        %120 = sbr.rel (%p118) target = $region16
      $region15: #{bottleneck_forward.4} parent=11 // pred_region
        _
      $region16: #{bottleneck_forward.4} parent=11 // pred_fallthru
        _
      // Predicated region
      $region17: #{bottleneck_forward.4} parent=11 // pred_check
        %p121 = pneg %p77
      $region18: #{bottleneck_forward.4} parent=11 // pred_check_branch
        %123 = sbr.rel (%p121) target = $region20
      $region19: #{bottleneck_forward.4} parent=11 // pred_region
        _
      $region20: #{bottleneck_forward.4} parent=11 // pred_fallthru
        _
    $region12: #{bottleneck_forward.4} parent=5 // pred_fallthru
      _
    %p124 = scmp.lt.s32.totalorder %s9, 2
    // Predicated region
    $region21: #{bottleneck_forward.4} parent=5 // pred_check
      %p125 = pneg %p124
    $region22: #{bottleneck_forward.4} parent=5 // pred_check_branch
      %127 = sbr.rel (%p125) target = $region24
    $region23: #{bottleneck_forward.4} parent=5 // pred_region
      // Predicated region
      $region25: #{bottleneck_forward.4} parent=23 // pred_check
        %p128 = pneg %p29
      $region26: #{bottleneck_forward.4} parent=23 // pred_check_branch
        %130 = sbr.rel (%p128) target = $region28
      $region27: #{bottleneck_forward.4} parent=23 // pred_region
        %p131 = scmp.lt.s32.totalorder %s9, 1
        %s132 = scalar_select %p131, %s9, 1
        %s133 = smul.addr %s132, 72
        %s134 = smul.addr %s133, 4
        %s135 = scalar_lea.vmem %s0, %s134
      $region28: #{bottleneck_forward.4} parent=23 // pred_fallthru
        _
    $region24: #{bottleneck_forward.4} parent=5 // pred_fallthru
      _
    %p136 = scmp.le.s32.totalorder 1, %s9
    %p137 = scmp.lt.s32.totalorder %s9, 3
    %p138 = pnand %p136, %p137
    %p139 = pneg %p138
    // Predicated region
    $region29: #{bottleneck_forward.4} parent=5 // pred_check
      _
    $region30: #{bottleneck_forward.4} parent=5 // pred_check_branch
      %141 = sbr.rel (%p138) target = $region32
    $region31: #{bottleneck_forward.4} parent=5 // pred_region
      %s142 = ssub.s32 %s9, 1
      %p143 = scmp.lt.s32.totalorder %s14, 1
      %s144 = scalar_select %p143, %s14, 1
      %s145 = smul.addr %s144, 72
      %s146 = smul.addr %s145, 4
      %s147 = scalar_lea.vmem %s0, %s146
      %p148 = pneg %p35
      %p149 = pneg %p32
      %p150 = pneg %p56
      %p151 = pneg %p53
      %p152 = pneg %p77
      %p153 = pneg %p74
      %p154 = pneg %p103
      %p155 = pneg %p100
      %p156 = scmp.lt.s32.totalorder %s14, 1
      %s157 = scalar_select %p156, %s14, 1
      %s158 = smul.addr %s157, 8
      %s159 = smul.addr %s158, 4
      %s160 = scalar_lea.vmem %s3, %s159
      %p161 = scmp.lt.s32.totalorder %s14, 1
      %s162 = scalar_select %p161, %s14, 1
      %s163 = smul.addr %s162, 72
      %s164 = smul.addr %s163, 4
      %s165 = scalar_lea.vmem %s0, %s164
      %p166 = scmp.lt.s32.totalorder %s14, 1
      %s167 = scalar_select %p166, %s14, 1
      %s168 = smul.addr %s167, 8
      %s169 = smul.addr %s168, 4
      %s170 = scalar_lea.vmem %s3, %s169
      %v172 = vld [vmem:[%s165] sm:$0xf]
      %v173 = vld [vmem:[%s165 + $0x8] sm:$0xf]
      %v174 = vld [vmem:[%s165 + $0x10] sm:$0xf]
      %v175 = vld [vmem:[%s165 + $0x18] sm:$0xf]
      %v176 = vld [vmem:[%s165 + $0x20] sm:$0xf]
      %v177 = vld [vmem:[%s165 + $0x28] sm:$0xf]
      %v178 = vld [vmem:[%s165 + $0x30] sm:$0xf]
      %v179 = vld [vmem:[%s165 + $0x38] sm:$0xf]
      %v180 = vld [vmem:[%s1] sm:$0xf]
      %v181 = vld [vmem:[%s1 + $0x4] sm:$0xf]
      %v182 = vld [vmem:[%s1 + $0x8] sm:$0xf]
      %v183 = vld [vmem:[%s1 + $0xc] sm:$0xf]
      %v184 = vld [vmem:[%s1 + $0x10] sm:$0xf]
      %v185 = vld [vmem:[%s1 + $0x14] sm:$0xf]
      %v186 = vld [vmem:[%s1 + $0x18] sm:$0xf]
      %v187 = vld [vmem:[%s1 + $0x1c] sm:$0xf]
      %v188 = vld [vmem:[%s1 + $0x20] sm:$0xf]
      %v189 = vld [vmem:[%s1 + $0x24] sm:$0xf]
      %v190 = vld [vmem:[%s1 + $0x28] sm:$0xf]
      %v191 = vld [vmem:[%s1 + $0x2c] sm:$0xf]
      %v192 = vld [vmem:[%s1 + $0x30] sm:$0xf]
      %v193 = vld [vmem:[%s1 + $0x34] sm:$0xf]
      %v194 = vld [vmem:[%s1 + $0x38] sm:$0xf]
      %v195 = vld [vmem:[%s1 + $0x3c] sm:$0xf]
      %s196 = scalar_lea.vmem %s165, 72
      %v197 = vld [vmem:[%s196] sm:$0xf]
      %v198 = vld [vmem:[%s196 + $0x8] sm:$0xf]
      %v199 = vld [vmem:[%s196 + $0x10] sm:$0xf]
      %v200 = vld [vmem:[%s196 + $0x18] sm:$0xf]
      %v201 = vld [vmem:[%s196 + $0x20] sm:$0xf]
      %v202 = vld [vmem:[%s196 + $0x28] sm:$0xf]
      %v203 = vld [vmem:[%s196 + $0x30] sm:$0xf]
      %v204 = vld [vmem:[%s196 + $0x38] sm:$0xf]
      %s205 = scalar_lea.vmem %s1, 64
      %v206 = vld [vmem:[%s205] sm:$0xf]
      %v207 = vld [vmem:[%s205 + $0x4] sm:$0xf]
      %v208 = vld [vmem:[%s205 + $0x8] sm:$0xf]
      %v209 = vld [vmem:[%s205 + $0xc] sm:$0xf]
      %v210 = vld [vmem:[%s205 + $0x10] sm:$0xf]
      %v211 = vld [vmem:[%s205 + $0x14] sm:$0xf]
      %v212 = vld [vmem:[%s205 + $0x18] sm:$0xf]
      %v213 = vld [vmem:[%s205 + $0x1c] sm:$0xf]
      %v214 = vld [vmem:[%s205 + $0x20] sm:$0xf]
      %v215 = vld [vmem:[%s205 + $0x24] sm:$0xf]
      %v216 = vld [vmem:[%s205 + $0x28] sm:$0xf]
      %v217 = vld [vmem:[%s205 + $0x2c] sm:$0xf]
      %v218 = vld [vmem:[%s205 + $0x30] sm:$0xf]
      %v219 = vld [vmem:[%s205 + $0x34] sm:$0xf]
      %v220 = vld [vmem:[%s205 + $0x38] sm:$0xf]
      %v221 = vld [vmem:[%s205 + $0x3c] sm:$0xf]
      %v230 = vunpack.c.l.b16 %v197
      %v231 = vunpack.c.l.b16 %v198
      %v232 = vunpack.c.l.b16 %v199
      %v233 = vunpack.c.l.b16 %v200
      %v234 = vunpack.c.l.b16 %v201
      %v235 = vunpack.c.l.b16 %v202
      %v236 = vunpack.c.l.b16 %v203
      %v237 = vunpack.c.l.b16 %v204
      %v238 = vpack.c.b16 %v231, %v230
      %v239 = vpack.c.b16 %v233, %v232
      %v240 = vpack.c.b16 %v235, %v234
      %v241 = vpack.c.b16 %v237, %v236
      %v262 = vunpack.c.l.b16 %v206
      %v263 = vunpack.c.l.b16 %v207
      %v264 = vunpack.c.l.b16 %v208
      %v265 = vunpack.c.l.b16 %v209
      %v266 = vunpack.c.l.b16 %v210
      %v267 = vunpack.c.l.b16 %v211
      %v268 = vunpack.c.l.b16 %v212
      %v269 = vunpack.c.l.b16 %v213
      %v270 = vunpack.c.l.b16 %v214
      %v271 = vunpack.c.l.b16 %v215
      %v272 = vunpack.c.l.b16 %v216
      %v273 = vunpack.c.l.b16 %v217
      %v274 = vunpack.c.l.b16 %v218
      %v275 = vunpack.c.l.b16 %v219
      %v276 = vunpack.c.l.b16 %v220
      %v277 = vunpack.c.l.b16 %v221
      %v278 = vpack.c.b16 %v263, %v262
      %v279 = vpack.c.b16 %v265, %v264
      %v280 = vpack.c.b16 %v267, %v266
      %v281 = vpack.c.b16 %v269, %v268
      %v282 = vpack.c.b16 %v271, %v270
      %v283 = vpack.c.b16 %v273, %v272
      %v284 = vpack.c.b16 %v275, %v274
      %v285 = vpack.c.b16 %v277, %v276
      %294 = vmatprep.subr.bf16.mxu0 0
      %295 = vmatpush1.bf16.msra.mxu0 %v285
      %296 = vmatprep.subr.bf16.mxu0 0
      %297 = vmatpush1.bf16.msra.mxu0 %v284
      %298 = vmatprep.subr.bf16.mxu0 0
      %299 = vmatpush1.bf16.msra.mxu0 %v283
      %300 = vmatprep.subr.bf16.mxu0 0
      %301 = vmatpush1.bf16.msra.mxu0 %v282
      %302 = vmatprep.subr.bf16.mxu0 0
      %303 = vmatpush1.bf16.msra.mxu0 %v281
      %304 = vmatprep.subr.bf16.mxu0 0
      %305 = vmatpush1.bf16.msra.mxu0 %v280
      %306 = vmatprep.subr.bf16.mxu0 0
      %307 = vmatpush1.bf16.msra.mxu0 %v279
      %308 = vmatprep.subr.bf16.mxu0 0
      %309 = vmatpush1.bf16.msra.mxu0 %v278
      %310 = vmatprep.subr.bf16.mxu0 0
      %311 = vmatpush2.bf16.msra.mxu0 0
      %312 = vmatprep.subr.bf16.mxu0 0
      %313 = vmatpush2.bf16.msra.mxu0 0
      %314 = vmatprep.subr.bf16.mxu0 0
      %315 = vmatpush2.bf16.msra.mxu0 0
      %316 = vmatprep.subr.bf16.mxu0 0
      %317 = vmatpush2.bf16.msra.mxu0 0
      %318 = vmatprep.subr.bf16.mxu0 0
      %319 = vmatpush2.bf16.msra.mxu0 0
      %320 = vmatprep.subr.bf16.mxu0 0
      %321 = vmatpush2.bf16.msra.mxu0 0
      %322 = vmatprep.subr.bf16.mxu0 0
      %323 = vmatpush2.bf16.msra.mxu0 0
      %324 = vmatprep.subr.bf16.mxu0 0
      %325 = vmatpush2.bf16.msra.mxu0 0
      %326 = vmatprep.mubr.bf16.mxu0 0
      %327 = vmatmul.mubr.bf16.gmra.mxu0 %v238
      %v328 = vpop.f32.mrf.mxu0
      %v329 = vadd.f32 0.0, %v328
      %v330 = vpop.f32.mrf.mxu0
      %v331 = vpop.f32.mrf.mxu0
      %v332 = vadd.f32 0.0, %v331
      %v333 = vpop.f32.mrf.mxu0
      %334 = vmatprep.mubr.bf16.mxu0 0
      %335 = vmatmul.mubr.bf16.gmra.mxu0 %v239
      %v336 = vpop.f32.mrf.mxu0
      %v337 = vadd.f32 0.0, %v336
      %v338 = vpop.f32.mrf.mxu0
      %v339 = vpop.f32.mrf.mxu0
      %v340 = vadd.f32 0.0, %v339
      %v341 = vpop.f32.mrf.mxu0
      %342 = vmatprep.mubr.bf16.mxu0 0
      %343 = vmatmul.mubr.bf16.gmra.mxu0 %v240
      %v344 = vpop.f32.mrf.mxu0
      %v345 = vadd.f32 0.0, %v344
      %v346 = vpop.f32.mrf.mxu0
      %v347 = vpop.f32.mrf.mxu0
      %v348 = vadd.f32 0.0, %v347
      %v349 = vpop.f32.mrf.mxu0
      %350 = vmatprep.mubr.bf16.mxu0 0
      %351 = vmatmul.mubr.bf16.gmra.mxu0 %v241
      %v352 = vpop.f32.mrf.mxu0
      %v353 = vadd.f32 0.0, %v352
      %v354 = vpop.f32.mrf.mxu0
      %v355 = vpop.f32.mrf.mxu0
      %v356 = vadd.f32 0.0, %v355
      %v357 = vpop.f32.mrf.mxu0
      %358 = vdwg.mxu0
      %v367 = vunpack.c.l.b16 %v172
      %v368 = vunpack.c.l.b16 %v173
      %v369 = vunpack.c.l.b16 %v174
      %v370 = vunpack.c.l.b16 %v175
      %v371 = vunpack.c.l.b16 %v176
      %v372 = vunpack.c.l.b16 %v177
      %v373 = vunpack.c.l.b16 %v178
      %v374 = vunpack.c.l.b16 %v179
      %v375 = vpack.c.b16 %v368, %v367
      %v376 = vpack.c.b16 %v370, %v369
      %v377 = vpack.c.b16 %v372, %v371
      %v378 = vpack.c.b16 %v374, %v373
      %v399 = vunpack.c.l.b16 %v180
      %v400 = vunpack.c.l.b16 %v181
      %v401 = vunpack.c.l.b16 %v182
      %v402 = vunpack.c.l.b16 %v183
      %v403 = vunpack.c.l.b16 %v184
      %v404 = vunpack.c.l.b16 %v185
      %v405 = vunpack.c.l.b16 %v186
      %v406 = vunpack.c.l.b16 %v187
      %v407 = vunpack.c.l.b16 %v188
      %v408 = vunpack.c.l.b16 %v189
      %v409 = vunpack.c.l.b16 %v190
      %v410 = vunpack.c.l.b16 %v191
      %v411 = vunpack.c.l.b16 %v192
      %v412 = vunpack.c.l.b16 %v193
      %v413 = vunpack.c.l.b16 %v194
      %v414 = vunpack.c.l.b16 %v195
      %v415 = vpack.c.b16 %v400, %v399
      %v416 = vpack.c.b16 %v402, %v401
      %v417 = vpack.c.b16 %v404, %v403
      %v418 = vpack.c.b16 %v406, %v405
      %v419 = vpack.c.b16 %v408, %v407
      %v420 = vpack.c.b16 %v410, %v409
      %v421 = vpack.c.b16 %v412, %v411
      %v422 = vpack.c.b16 %v414, %v413
      %431 = vmatprep.subr.bf16.mxu0 0
      %432 = vmatpush1.bf16.msra.mxu0 %v422
      %433 = vmatprep.subr.bf16.mxu0 0
      %434 = vmatpush1.bf16.msra.mxu0 %v421
      %435 = vmatprep.subr.bf16.mxu0 0
      %436 = vmatpush1.bf16.msra.mxu0 %v420
      %437 = vmatprep.subr.bf16.mxu0 0
      %438 = vmatpush1.bf16.msra.mxu0 %v419
      %439 = vmatprep.subr.bf16.mxu0 0
      %440 = vmatpush1.bf16.msra.mxu0 %v418
      %441 = vmatprep.subr.bf16.mxu0 0
      %442 = vmatpush1.bf16.msra.mxu0 %v417
      %443 = vmatprep.subr.bf16.mxu0 0
      %444 = vmatpush1.bf16.msra.mxu0 %v416
      %445 = vmatprep.subr.bf16.mxu0 0
      %446 = vmatpush1.bf16.msra.mxu0 %v415
      %447 = vmatprep.subr.bf16.mxu0 0
      %448 = vmatpush2.bf16.msra.mxu0 0
      %449 = vmatprep.subr.bf16.mxu0 0
      %450 = vmatpush2.bf16.msra.mxu0 0
      %451 = vmatprep.subr.bf16.mxu0 0
      %452 = vmatpush2.bf16.msra.mxu0 0
      %453 = vmatprep.subr.bf16.mxu0 0
      %454 = vmatpush2.bf16.msra.mxu0 0
      %455 = vmatprep.subr.bf16.mxu0 0
      %456 = vmatpush2.bf16.msra.mxu0 0
      %457 = vmatprep.subr.bf16.mxu0 0
      %458 = vmatpush2.bf16.msra.mxu0 0
      %459 = vmatprep.subr.bf16.mxu0 0
      %460 = vmatpush2.bf16.msra.mxu0 0
      %461 = vmatprep.subr.bf16.mxu0 0
      %462 = vmatpush2.bf16.msra.mxu0 0
      %463 = vmatprep.mubr.bf16.mxu0 0
      %464 = vmatmul.mubr.bf16.gmra.mxu0 %v375
      %v465 = vpop.f32.mrf.mxu0
      %v466 = vadd.f32 %v329, %v465
      %v467 = vpop.f32.mrf.mxu0
      %v468 = vpop.f32.mrf.mxu0
      %v469 = vadd.f32 %v332, %v468
      %v470 = vpop.f32.mrf.mxu0
      %471 = vmatprep.mubr.bf16.mxu0 0
      %472 = vmatmul.mubr.bf16.gmra.mxu0 %v376
      %v473 = vpop.f32.mrf.mxu0
      %v474 = vadd.f32 %v337, %v473
      %v475 = vpop.f32.mrf.mxu0
      %v476 = vpop.f32.mrf.mxu0
      %v477 = vadd.f32 %v340, %v476
      %v478 = vpop.f32.mrf.mxu0
      %479 = vmatprep.mubr.bf16.mxu0 0
      %480 = vmatmul.mubr.bf16.gmra.mxu0 %v377
      %v481 = vpop.f32.mrf.mxu0
      %v482 = vadd.f32 %v345, %v481
      %v483 = vpop.f32.mrf.mxu0
      %v484 = vpop.f32.mrf.mxu0
      %v485 = vadd.f32 %v348, %v484
      %v486 = vpop.f32.mrf.mxu0
      %487 = vmatprep.mubr.bf16.mxu0 0
      %488 = vmatmul.mubr.bf16.gmra.mxu0 %v378
      %v489 = vpop.f32.mrf.mxu0
      %v490 = vadd.f32 %v353, %v489
      %v491 = vpop.f32.mrf.mxu0
      %v492 = vpop.f32.mrf.mxu0
      %v493 = vadd.f32 %v356, %v492
      %v494 = vpop.f32.mrf.mxu0
      %495 = vdwg.mxu0
      %v496 = vld [vmem:[%s165] sm:$0xf]
      %v497 = vld [vmem:[%s165 + $0x4] sm:$0x1]
      %v498 = vld [vmem:[%s165 + $0x8] sm:$0xf]
      %v499 = vld [vmem:[%s165 + $0xc] sm:$0x1]
      %v500 = vld [vmem:[%s165 + $0x10] sm:$0xf]
      %v501 = vld [vmem:[%s165 + $0x14] sm:$0x1]
      %v502 = vld [vmem:[%s165 + $0x18] sm:$0xf]
      %v503 = vld [vmem:[%s165 + $0x1c] sm:$0x1]
      %v504 = vld [vmem:[%s165 + $0x20] sm:$0xf]
      %v505 = vld [vmem:[%s165 + $0x24] sm:$0x1]
      %v506 = vld [vmem:[%s165 + $0x28] sm:$0xf]
      %v507 = vld [vmem:[%s165 + $0x2c] sm:$0x1]
      %v508 = vld [vmem:[%s165 + $0x30] sm:$0xf]
      %v509 = vld [vmem:[%s165 + $0x34] sm:$0x1]
      %v510 = vld [vmem:[%s165 + $0x38] sm:$0xf]
      %v511 = vld [vmem:[%s165 + $0x3c] sm:$0x1]
      %vm512 = vsmask.f32 3328
      %vm513 = vsmask.f32 7440
      %vm514 = vmor %vm512, %vm513
      %v516 = vshrl.u32 %v496, 16
      %v518 = vrot.slane %v516, 4
      %v519 = vshll.u32 %v496, 16
      %v521 = vrot.slane %v519, 5
      %v522 = vor.u32 %v518, %v521
      %v523 = vrot.slane %v522, 4
      %v525 = vshll.u32 %v497, 16
      %v527 = vrot.slane %v525, 5
      %v528 = vsel %vm514, %v523, %v527
      %v530 = vshrl.u32 %v498, 16
      %v532 = vrot.slane %v530, 4
      %v533 = vshll.u32 %v498, 16
      %v535 = vrot.slane %v533, 5
      %v536 = vor.u32 %v532, %v535
      %v537 = vrot.slane %v536, 4
      %v539 = vshll.u32 %v499, 16
      %v541 = vrot.slane %v539, 5
      %v542 = vsel %vm514, %v537, %v541
      %v544 = vshrl.u32 %v500, 16
      %v546 = vrot.slane %v544, 4
      %v547 = vshll.u32 %v500, 16
      %v549 = vrot.slane %v547, 5
      %v550 = vor.u32 %v546, %v549
      %v551 = vrot.slane %v550, 4
      %v553 = vshll.u32 %v501, 16
      %v555 = vrot.slane %v553, 5
      %v556 = vsel %vm514, %v551, %v555
      %v558 = vshrl.u32 %v502, 16
      %v560 = vrot.slane %v558, 4
      %v561 = vshll.u32 %v502, 16
      %v563 = vrot.slane %v561, 5
      %v564 = vor.u32 %v560, %v563
      %v565 = vrot.slane %v564, 4
      %v567 = vshll.u32 %v503, 16
      %v569 = vrot.slane %v567, 5
      %v570 = vsel %vm514, %v565, %v569
      %v572 = vshrl.u32 %v504, 16
      %v574 = vrot.slane %v572, 4
      %v575 = vshll.u32 %v504, 16
      %v577 = vrot.slane %v575, 5
      %v578 = vor.u32 %v574, %v577
      %v579 = vrot.slane %v578, 4
      %v581 = vshll.u32 %v505, 16
      %v583 = vrot.slane %v581, 5
      %v584 = vsel %vm514, %v579, %v583
      %v586 = vshrl.u32 %v506, 16
      %v588 = vrot.slane %v586, 4
      %v589 = vshll.u32 %v506, 16
      %v591 = vrot.slane %v589, 5
      %v592 = vor.u32 %v588, %v591
      %v593 = vrot.slane %v592, 4
      %v595 = vshll.u32 %v507, 16
      %v597 = vrot.slane %v595, 5
      %v598 = vsel %vm514, %v593, %v597
      %v600 = vshrl.u32 %v508, 16
      %v602 = vrot.slane %v600, 4
      %v603 = vshll.u32 %v508, 16
      %v605 = vrot.slane %v603, 5
      %v606 = vor.u32 %v602, %v605
      %v607 = vrot.slane %v606, 4
      %v609 = vshll.u32 %v509, 16
      %v611 = vrot.slane %v609, 5
      %v612 = vsel %vm514, %v607, %v611
      %v614 = vshrl.u32 %v510, 16
      %v616 = vrot.slane %v614, 4
      %v617 = vshll.u32 %v510, 16
      %v619 = vrot.slane %v617, 5
      %v620 = vor.u32 %v616, %v619
      %v621 = vrot.slane %v620, 4
      %v623 = vshll.u32 %v511, 16
      %v625 = vrot.slane %v623, 5
      %v626 = vsel %vm514, %v621, %v625
      %s627 = scalar_lea.vmem %s1, 128
      %v628 = vld [vmem:[%s627] sm:$0xf]
      %v629 = vld [vmem:[%s627 + $0x4] sm:$0xf]
      %v630 = vld [vmem:[%s627 + $0x8] sm:$0xf]
      %v631 = vld [vmem:[%s627 + $0xc] sm:$0xf]
      %v632 = vld [vmem:[%s627 + $0x10] sm:$0xf]
      %v633 = vld [vmem:[%s627 + $0x14] sm:$0xf]
      %v634 = vld [vmem:[%s627 + $0x18] sm:$0xf]
      %v635 = vld [vmem:[%s627 + $0x1c] sm:$0xf]
      %v636 = vld [vmem:[%s627 + $0x20] sm:$0xf]
      %v637 = vld [vmem:[%s627 + $0x24] sm:$0xf]
      %v638 = vld [vmem:[%s627 + $0x28] sm:$0xf]
      %v639 = vld [vmem:[%s627 + $0x2c] sm:$0xf]
      %v640 = vld [vmem:[%s627 + $0x30] sm:$0xf]
      %v641 = vld [vmem:[%s627 + $0x34] sm:$0xf]
      %v642 = vld [vmem:[%s627 + $0x38] sm:$0xf]
      %v643 = vld [vmem:[%s627 + $0x3c] sm:$0xf]
      %v644 = vunpack.c.l.b16 %v528
      %v645 = vunpack.c.l.b16 %v542
      %v646 = vunpack.c.l.b16 %v556
      %v647 = vunpack.c.l.b16 %v570
      %v648 = vunpack.c.l.b16 %v584
      %v649 = vunpack.c.l.b16 %v598
      %v650 = vunpack.c.l.b16 %v612
      %v651 = vunpack.c.l.b16 %v626
      %v652 = vpack.c.b16 %v645, %v644
      %v653 = vpack.c.b16 %v647, %v646
      %v654 = vpack.c.b16 %v649, %v648
      %v655 = vpack.c.b16 %v651, %v650
      %v676 = vunpack.c.l.b16 %v628
      %v677 = vunpack.c.l.b16 %v629
      %v678 = vunpack.c.l.b16 %v630
      %v679 = vunpack.c.l.b16 %v631
      %v680 = vunpack.c.l.b16 %v632
      %v681 = vunpack.c.l.b16 %v633
      %v682 = vunpack.c.l.b16 %v634
      %v683 = vunpack.c.l.b16 %v635
      %v684 = vunpack.c.l.b16 %v636
      %v685 = vunpack.c.l.b16 %v637
      %v686 = vunpack.c.l.b16 %v638
      %v687 = vunpack.c.l.b16 %v639
      %v688 = vunpack.c.l.b16 %v640
      %v689 = vunpack.c.l.b16 %v641
      %v690 = vunpack.c.l.b16 %v642
      %v691 = vunpack.c.l.b16 %v643
      %v692 = vpack.c.b16 %v677, %v676
      %v693 = vpack.c.b16 %v679, %v678
      %v694 = vpack.c.b16 %v681, %v680
      %v695 = vpack.c.b16 %v683, %v682
      %v696 = vpack.c.b16 %v685, %v684
      %v697 = vpack.c.b16 %v687, %v686
      %v698 = vpack.c.b16 %v689, %v688
      %v699 = vpack.c.b16 %v691, %v690
      %708 = vmatprep.subr.bf16.mxu0 0
      %709 = vmatpush1.bf16.msra.mxu0 %v699
      %710 = vmatprep.subr.bf16.mxu0 0
      %711 = vmatpush1.bf16.msra.mxu0 %v698
      %712 = vmatprep.subr.bf16.mxu0 0
      %713 = vmatpush1.bf16.msra.mxu0 %v697
      %714 = vmatprep.subr.bf16.mxu0 0
      %715 = vmatpush1.bf16.msra.mxu0 %v696
      %716 = vmatprep.subr.bf16.mxu0 0
      %717 = vmatpush1.bf16.msra.mxu0 %v695
      %718 = vmatprep.subr.bf16.mxu0 0
      %719 = vmatpush1.bf16.msra.mxu0 %v694
      %720 = vmatprep.subr.bf16.mxu0 0
      %721 = vmatpush1.bf16.msra.mxu0 %v693
      %722 = vmatprep.subr.bf16.mxu0 0
      %723 = vmatpush1.bf16.msra.mxu0 %v692
      %724 = vmatprep.subr.bf16.mxu0 0
      %725 = vmatpush2.bf16.msra.mxu0 0
      %726 = vmatprep.subr.bf16.mxu0 0
      %727 = vmatpush2.bf16.msra.mxu0 0
      %728 = vmatprep.subr.bf16.mxu0 0
      %729 = vmatpush2.bf16.msra.mxu0 0
      %730 = vmatprep.subr.bf16.mxu0 0
      %731 = vmatpush2.bf16.msra.mxu0 0
      %732 = vmatprep.subr.bf16.mxu0 0
      %733 = vmatpush2.bf16.msra.mxu0 0
      %734 = vmatprep.subr.bf16.mxu0 0
      %735 = vmatpush2.bf16.msra.mxu0 0
      %736 = vmatprep.subr.bf16.mxu0 0
      %737 = vmatpush2.bf16.msra.mxu0 0
      %738 = vmatprep.subr.bf16.mxu0 0
      %739 = vmatpush2.bf16.msra.mxu0 0
      %740 = vmatprep.mubr.bf16.mxu0 0
      %741 = vmatmul.mubr.bf16.gmra.mxu0 %v652
      %v742 = vpop.f32.mrf.mxu0
      %v743 = vadd.f32 0.0, %v742
      %v744 = vpop.f32.mrf.mxu0
      %v745 = vpop.f32.mrf.mxu0
      %v746 = vadd.f32 0.0, %v745
      %v747 = vpop.f32.mrf.mxu0
      %748 = vmatprep.mubr.bf16.mxu0 0
      %749 = vmatmul.mubr.bf16.gmra.mxu0 %v653
      %v750 = vpop.f32.mrf.mxu0
      %v751 = vadd.f32 0.0, %v750
      %v752 = vpop.f32.mrf.mxu0
      %v753 = vpop.f32.mrf.mxu0
      %v754 = vadd.f32 0.0, %v753
      %v755 = vpop.f32.mrf.mxu0
      %756 = vmatprep.mubr.bf16.mxu0 0
      %757 = vmatmul.mubr.bf16.gmra.mxu0 %v654
      %v758 = vpop.f32.mrf.mxu0
      %v759 = vadd.f32 0.0, %v758
      %v760 = vpop.f32.mrf.mxu0
      %v761 = vpop.f32.mrf.mxu0
      %v762 = vadd.f32 0.0, %v761
      %v763 = vpop.f32.mrf.mxu0
      %764 = vmatprep.mubr.bf16.mxu0 0
      %765 = vmatmul.mubr.bf16.gmra.mxu0 %v655
      %v766 = vpop.f32.mrf.mxu0
      %v767 = vadd.f32 0.0, %v766
      %v768 = vpop.f32.mrf.mxu0
      %v769 = vpop.f32.mrf.mxu0
      %v770 = vadd.f32 0.0, %v769
      %v771 = vpop.f32.mrf.mxu0
      %772 = vdwg.mxu0
      %v773 = vadd.f32 %v466, %v743
      %v774 = vadd.f32 %v469, %v746
      %v775 = vadd.f32 %v474, %v751
      %v776 = vadd.f32 %v477, %v754
      %v777 = vadd.f32 %v482, %v759
      %v778 = vadd.f32 %v485, %v762
      %v779 = vadd.f32 %v490, %v767
      %v780 = vadd.f32 %v493, %v770
      %s781 = scalar_lea.vmem %s165, 144
      %v782 = vld [vmem:[%s781] sm:$0xf]
      %v783 = vld [vmem:[%s781 + $0x8] sm:$0xf]
      %v784 = vld [vmem:[%s781 + $0x10] sm:$0xf]
      %v785 = vld [vmem:[%s781 + $0x18] sm:$0xf]
      %v786 = vld [vmem:[%s781 + $0x20] sm:$0xf]
      %v787 = vld [vmem:[%s781 + $0x28] sm:$0xf]
      %v788 = vld [vmem:[%s781 + $0x30] sm:$0xf]
      %v789 = vld [vmem:[%s781 + $0x38] sm:$0xf]
      %s790 = scalar_lea.vmem %s1, 192
      %v791 = vld [vmem:[%s790] sm:$0xf]
      %v792 = vld [vmem:[%s790 + $0x4] sm:$0xf]
      %v793 = vld [vmem:[%s790 + $0x8] sm:$0xf]
      %v794 = vld [vmem:[%s790 + $0xc] sm:$0xf]
      %v795 = vld [vmem:[%s790 + $0x10] sm:$0xf]
      %v796 = vld [vmem:[%s790 + $0x14] sm:$0xf]
      %v797 = vld [vmem:[%s790 + $0x18] sm:$0xf]
      %v798 = vld [vmem:[%s790 + $0x1c] sm:$0xf]
      %v799 = vld [vmem:[%s790 + $0x20] sm:$0xf]
      %v800 = vld [vmem:[%s790 + $0x24] sm:$0xf]
      %v801 = vld [vmem:[%s790 + $0x28] sm:$0xf]
      %v802 = vld [vmem:[%s790 + $0x2c] sm:$0xf]
      %v803 = vld [vmem:[%s790 + $0x30] sm:$0xf]
      %v804 = vld [vmem:[%s790 + $0x34] sm:$0xf]
      %v805 = vld [vmem:[%s790 + $0x38] sm:$0xf]
      %v806 = vld [vmem:[%s790 + $0x3c] sm:$0xf]
      %v815 = vunpack.c.l.b16 %v782
      %v816 = vunpack.c.l.b16 %v783
      %v817 = vunpack.c.l.b16 %v784
      %v818 = vunpack.c.l.b16 %v785
      %v819 = vunpack.c.l.b16 %v786
      %v820 = vunpack.c.l.b16 %v787
      %v821 = vunpack.c.l.b16 %v788
      %v822 = vunpack.c.l.b16 %v789
      %v823 = vpack.c.b16 %v816, %v815
      %v824 = vpack.c.b16 %v818, %v817
      %v825 = vpack.c.b16 %v820, %v819
      %v826 = vpack.c.b16 %v822, %v821
      %v847 = vunpack.c.l.b16 %v791
      %v848 = vunpack.c.l.b16 %v792
      %v849 = vunpack.c.l.b16 %v793
      %v850 = vunpack.c.l.b16 %v794
      %v851 = vunpack.c.l.b16 %v795
      %v852 = vunpack.c.l.b16 %v796
      %v853 = vunpack.c.l.b16 %v797
      %v854 = vunpack.c.l.b16 %v798
      %v855 = vunpack.c.l.b16 %v799
      %v856 = vunpack.c.l.b16 %v800
      %v857 = vunpack.c.l.b16 %v801
      %v858 = vunpack.c.l.b16 %v802
      %v859 = vunpack.c.l.b16 %v803
      %v860 = vunpack.c.l.b16 %v804
      %v861 = vunpack.c.l.b16 %v805
      %v862 = vunpack.c.l.b16 %v806
      %v863 = vpack.c.b16 %v848, %v847
      %v864 = vpack.c.b16 %v850, %v849
      %v865 = vpack.c.b16 %v852, %v851
      %v866 = vpack.c.b16 %v854, %v853
      %v867 = vpack.c.b16 %v856, %v855
      %v868 = vpack.c.b16 %v858, %v857
      %v869 = vpack.c.b16 %v860, %v859
      %v870 = vpack.c.b16 %v862, %v861
      %879 = vmatprep.subr.bf16.mxu0 0
      %880 = vmatpush1.bf16.msra.mxu0 %v870
      %881 = vmatprep.subr.bf16.mxu0 0
      %882 = vmatpush1.bf16.msra.mxu0 %v869
      %883 = vmatprep.subr.bf16.mxu0 0
      %884 = vmatpush1.bf16.msra.mxu0 %v868
      %885 = vmatprep.subr.bf16.mxu0 0
      %886 = vmatpush1.bf16.msra.mxu0 %v867
      %887 = vmatprep.subr.bf16.mxu0 0
      %888 = vmatpush1.bf16.msra.mxu0 %v866
      %889 = vmatprep.subr.bf16.mxu0 0
      %890 = vmatpush1.bf16.msra.mxu0 %v865
      %891 = vmatprep.subr.bf16.mxu0 0
      %892 = vmatpush1.bf16.msra.mxu0 %v864
      %893 = vmatprep.subr.bf16.mxu0 0
      %894 = vmatpush1.bf16.msra.mxu0 %v863
      %895 = vmatprep.subr.bf16.mxu0 0
      %896 = vmatpush2.bf16.msra.mxu0 0
      %897 = vmatprep.subr.bf16.mxu0 0
      %898 = vmatpush2.bf16.msra.mxu0 0
      %899 = vmatprep.subr.bf16.mxu0 0
      %900 = vmatpush2.bf16.msra.mxu0 0
      %901 = vmatprep.subr.bf16.mxu0 0
      %902 = vmatpush2.bf16.msra.mxu0 0
      %903 = vmatprep.subr.bf16.mxu0 0
      %904 = vmatpush2.bf16.msra.mxu0 0
      %905 = vmatprep.subr.bf16.mxu0 0
      %906 = vmatpush2.bf16.msra.mxu0 0
      %907 = vmatprep.subr.bf16.mxu0 0
      %908 = vmatpush2.bf16.msra.mxu0 0
      %909 = vmatprep.subr.bf16.mxu0 0
      %910 = vmatpush2.bf16.msra.mxu0 0
      %911 = vmatprep.mubr.bf16.mxu0 0
      %912 = vmatmul.mubr.bf16.gmra.mxu0 %v823
      %v913 = vpop.f32.mrf.mxu0
      %v914 = vadd.f32 0.0, %v913
      %v915 = vpop.f32.mrf.mxu0
      %v916 = vpop.f32.mrf.mxu0
      %v917 = vadd.f32 0.0, %v916
      %v918 = vpop.f32.mrf.mxu0
      %919 = vmatprep.mubr.bf16.mxu0 0
      %920 = vmatmul.mubr.bf16.gmra.mxu0 %v824
      %v921 = vpop.f32.mrf.mxu0
      %v922 = vadd.f32 0.0, %v921
      %v923 = vpop.f32.mrf.mxu0
      %v924 = vpop.f32.mrf.mxu0
      %v925 = vadd.f32 0.0, %v924
      %v926 = vpop.f32.mrf.mxu0
      %927 = vmatprep.mubr.bf16.mxu0 0
      %928 = vmatmul.mubr.bf16.gmra.mxu0 %v825
      %v929 = vpop.f32.mrf.mxu0
      %v930 = vadd.f32 0.0, %v929
      %v931 = vpop.f32.mrf.mxu0
      %v932 = vpop.f32.mrf.mxu0
      %v933 = vadd.f32 0.0, %v932
      %v934 = vpop.f32.mrf.mxu0
      %935 = vmatprep.mubr.bf16.mxu0 0
      %936 = vmatmul.mubr.bf16.gmra.mxu0 %v826
      %v937 = vpop.f32.mrf.mxu0
      %v938 = vadd.f32 0.0, %v937
      %v939 = vpop.f32.mrf.mxu0
      %v940 = vpop.f32.mrf.mxu0
      %v941 = vadd.f32 0.0, %v940
      %v942 = vpop.f32.mrf.mxu0
      %943 = vdwg.mxu0
      %v944 = vadd.f32 %v773, %v914
      %v945 = vadd.f32 %v774, %v917
      %v946 = vadd.f32 %v775, %v922
      %v947 = vadd.f32 %v776, %v925
      %v948 = vadd.f32 %v777, %v930
      %v949 = vadd.f32 %v778, %v933
      %v950 = vadd.f32 %v779, %v938
      %v951 = vadd.f32 %v780, %v941
      %s952 = scalar_lea.vmem %s165, 216
      %v953 = vld [vmem:[%s952] sm:$0xf]
      %v954 = vld [vmem:[%s952 + $0x8] sm:$0xf]
      %v955 = vld [vmem:[%s952 + $0x10] sm:$0xf]
      %v956 = vld [vmem:[%s952 + $0x18] sm:$0xf]
      %v957 = vld [vmem:[%s952 + $0x20] sm:$0xf]
      %v958 = vld [vmem:[%s952 + $0x28] sm:$0xf]
      %v959 = vld [vmem:[%s952 + $0x30] sm:$0xf]
      %v960 = vld [vmem:[%s952 + $0x38] sm:$0xf]
      %s961 = scalar_lea.vmem %s1, 256
      %v962 = vld [vmem:[%s961] sm:$0xf]
      %v963 = vld [vmem:[%s961 + $0x4] sm:$0xf]
      %v964 = vld [vmem:[%s961 + $0x8] sm:$0xf]
      %v965 = vld [vmem:[%s961 + $0xc] sm:$0xf]
      %v966 = vld [vmem:[%s961 + $0x10] sm:$0xf]
      %v967 = vld [vmem:[%s961 + $0x14] sm:$0xf]
      %v968 = vld [vmem:[%s961 + $0x18] sm:$0xf]
      %v969 = vld [vmem:[%s961 + $0x1c] sm:$0xf]
      %v970 = vld [vmem:[%s961 + $0x20] sm:$0xf]
      %v971 = vld [vmem:[%s961 + $0x24] sm:$0xf]
      %v972 = vld [vmem:[%s961 + $0x28] sm:$0xf]
      %v973 = vld [vmem:[%s961 + $0x2c] sm:$0xf]
      %v974 = vld [vmem:[%s961 + $0x30] sm:$0xf]
      %v975 = vld [vmem:[%s961 + $0x34] sm:$0xf]
      %v976 = vld [vmem:[%s961 + $0x38] sm:$0xf]
      %v977 = vld [vmem:[%s961 + $0x3c] sm:$0xf]
      %v986 = vunpack.c.l.b16 %v953
      %v987 = vunpack.c.l.b16 %v954
      %v988 = vunpack.c.l.b16 %v955
      %v989 = vunpack.c.l.b16 %v956
      %v990 = vunpack.c.l.b16 %v957
      %v991 = vunpack.c.l.b16 %v958
      %v992 = vunpack.c.l.b16 %v959
      %v993 = vunpack.c.l.b16 %v960
      %v994 = vpack.c.b16 %v987, %v986
      %v995 = vpack.c.b16 %v989, %v988
      %v996 = vpack.c.b16 %v991, %v990
      %v997 = vpack.c.b16 %v993, %v992
      %v1018 = vunpack.c.l.b16 %v962
      %v1019 = vunpack.c.l.b16 %v963
      %v1020 = vunpack.c.l.b16 %v964
      %v1021 = vunpack.c.l.b16 %v965
      %v1022 = vunpack.c.l.b16 %v966
      %v1023 = vunpack.c.l.b16 %v967
      %v1024 = vunpack.c.l.b16 %v968
      %v1025 = vunpack.c.l.b16 %v969
      %v1026 = vunpack.c.l.b16 %v970
      %v1027 = vunpack.c.l.b16 %v971
      %v1028 = vunpack.c.l.b16 %v972
      %v1029 = vunpack.c.l.b16 %v973
      %v1030 = vunpack.c.l.b16 %v974
      %v1031 = vunpack.c.l.b16 %v975
      %v1032 = vunpack.c.l.b16 %v976
      %v1033 = vunpack.c.l.b16 %v977
      %v1034 = vpack.c.b16 %v1019, %v1018
      %v1035 = vpack.c.b16 %v1021, %v1020
      %v1036 = vpack.c.b16 %v1023, %v1022
      %v1037 = vpack.c.b16 %v1025, %v1024
      %v1038 = vpack.c.b16 %v1027, %v1026
      %v1039 = vpack.c.b16 %v1029, %v1028
      %v1040 = vpack.c.b16 %v1031, %v1030
      %v1041 = vpack.c.b16 %v1033, %v1032
      %1050 = vmatprep.subr.bf16.mxu0 0
      %1051 = vmatpush1.bf16.msra.mxu0 %v1041
      %1052 = vmatprep.subr.bf16.mxu0 0
      %1053 = vmatpush1.bf16.msra.mxu0 %v1040
      %1054 = vmatprep.subr.bf16.mxu0 0
      %1055 = vmatpush1.bf16.msra.mxu0 %v1039
      %1056 = vmatprep.subr.bf16.mxu0 0
      %1057 = vmatpush1.bf16.msra.mxu0 %v1038
      %1058 = vmatprep.subr.bf16.mxu0 0
      %1059 = vmatpush1.bf16.msra.mxu0 %v1037
      %1060 = vmatprep.subr.bf16.mxu0 0
      %1061 = vmatpush1.bf16.msra.mxu0 %v1036
      %1062 = vmatprep.subr.bf16.mxu0 0
      %1063 = vmatpush1.bf16.msra.mxu0 %v1035
      %1064 = vmatprep.subr.bf16.mxu0 0
      %1065 = vmatpush1.bf16.msra.mxu0 %v1034
      %1066 = vmatprep.subr.bf16.mxu0 0
      %1067 = vmatpush2.bf16.msra.mxu0 0
      %1068 = vmatprep.subr.bf16.mxu0 0
      %1069 = vmatpush2.bf16.msra.mxu0 0
      %1070 = vmatprep.subr.bf16.mxu0 0
      %1071 = vmatpush2.bf16.msra.mxu0 0
      %1072 = vmatprep.subr.bf16.mxu0 0
      %1073 = vmatpush2.bf16.msra.mxu0 0
      %1074 = vmatprep.subr.bf16.mxu0 0
      %1075 = vmatpush2.bf16.msra.mxu0 0
      %1076 = vmatprep.subr.bf16.mxu0 0
      %1077 = vmatpush2.bf16.msra.mxu0 0
      %1078 = vmatprep.subr.bf16.mxu0 0
      %1079 = vmatpush2.bf16.msra.mxu0 0
      %1080 = vmatprep.subr.bf16.mxu0 0
      %1081 = vmatpush2.bf16.msra.mxu0 0
      %1082 = vmatprep.mubr.bf16.mxu0 0
      %1083 = vmatmul.mubr.bf16.gmra.mxu0 %v994
      %v1084 = vpop.f32.mrf.mxu0
      %v1085 = vadd.f32 0.0, %v1084
      %v1086 = vpop.f32.mrf.mxu0
      %v1087 = vpop.f32.mrf.mxu0
      %v1088 = vadd.f32 0.0, %v1087
      %v1089 = vpop.f32.mrf.mxu0
      %1090 = vmatprep.mubr.bf16.mxu0 0
      %1091 = vmatmul.mubr.bf16.gmra.mxu0 %v995
      %v1092 = vpop.f32.mrf.mxu0
      %v1093 = vadd.f32 0.0, %v1092
      %v1094 = vpop.f32.mrf.mxu0
      %v1095 = vpop.f32.mrf.mxu0
      %v1096 = vadd.f32 0.0, %v1095
      %v1097 = vpop.f32.mrf.mxu0
      %1098 = vmatprep.mubr.bf16.mxu0 0
      %1099 = vmatmul.mubr.bf16.gmra.mxu0 %v996
      %v1100 = vpop.f32.mrf.mxu0
      %v1101 = vadd.f32 0.0, %v1100
      %v1102 = vpop.f32.mrf.mxu0
      %v1103 = vpop.f32.mrf.mxu0
      %v1104 = vadd.f32 0.0, %v1103
      %v1105 = vpop.f32.mrf.mxu0
      %1106 = vmatprep.mubr.bf16.mxu0 0
      %1107 = vmatmul.mubr.bf16.gmra.mxu0 %v997
      %v1108 = vpop.f32.mrf.mxu0
      %v1109 = vadd.f32 0.0, %v1108
      %v1110 = vpop.f32.mrf.mxu0
      %v1111 = vpop.f32.mrf.mxu0
      %v1112 = vadd.f32 0.0, %v1111
      %v1113 = vpop.f32.mrf.mxu0
      %1114 = vdwg.mxu0
      %v1115 = vadd.f32 %v944, %v1085
      %v1116 = vadd.f32 %v945, %v1088
      %v1117 = vadd.f32 %v946, %v1093
      %v1118 = vadd.f32 %v947, %v1096
      %v1119 = vadd.f32 %v948, %v1101
      %v1120 = vadd.f32 %v949, %v1104
      %v1121 = vadd.f32 %v950, %v1109
      %v1122 = vadd.f32 %v951, %v1112
      %v1123 = vld [vmem:[%s781] sm:$0xf]
      %v1124 = vld [vmem:[%s781 + $0x4] sm:$0x1]
      %v1125 = vld [vmem:[%s781 + $0x8] sm:$0xf]
      %v1126 = vld [vmem:[%s781 + $0xc] sm:$0x1]
      %v1127 = vld [vmem:[%s781 + $0x10] sm:$0xf]
      %v1128 = vld [vmem:[%s781 + $0x14] sm:$0x1]
      %v1129 = vld [vmem:[%s781 + $0x18] sm:$0xf]
      %v1130 = vld [vmem:[%s781 + $0x1c] sm:$0x1]
      %v1131 = vld [vmem:[%s781 + $0x20] sm:$0xf]
      %v1132 = vld [vmem:[%s781 + $0x24] sm:$0x1]
      %v1133 = vld [vmem:[%s781 + $0x28] sm:$0xf]
      %v1134 = vld [vmem:[%s781 + $0x2c] sm:$0x1]
      %v1135 = vld [vmem:[%s781 + $0x30] sm:$0xf]
      %v1136 = vld [vmem:[%s781 + $0x34] sm:$0x1]
      %v1137 = vld [vmem:[%s781 + $0x38] sm:$0xf]
      %v1138 = vld [vmem:[%s781 + $0x3c] sm:$0x1]
      %v1140 = vshrl.u32 %v1123, 16
      %v1142 = vrot.slane %v1140, 4
      %v1143 = vshll.u32 %v1123, 16
      %v1145 = vrot.slane %v1143, 5
      %v1146 = vor.u32 %v1142, %v1145
      %v1147 = vrot.slane %v1146, 4
      %v1149 = vshll.u32 %v1124, 16
      %v1151 = vrot.slane %v1149, 5
      %v1152 = vsel %vm514, %v1147, %v1151
      %v1154 = vshrl.u32 %v1125, 16
      %v1156 = vrot.slane %v1154, 4
      %v1157 = vshll.u32 %v1125, 16
      %v1159 = vrot.slane %v1157, 5
      %v1160 = vor.u32 %v1156, %v1159
      %v1161 = vrot.slane %v1160, 4
      %v1163 = vshll.u32 %v1126, 16
      %v1165 = vrot.slane %v1163, 5
      %v1166 = vsel %vm514, %v1161, %v1165
      %v1168 = vshrl.u32 %v1127, 16
      %v1170 = vrot.slane %v1168, 4
      %v1171 = vshll.u32 %v1127, 16
      %v1173 = vrot.slane %v1171, 5
      %v1174 = vor.u32 %v1170, %v1173
      %v1175 = vrot.slane %v1174, 4
      %v1177 = vshll.u32 %v1128, 16
      %v1179 = vrot.slane %v1177, 5
      %v1180 = vsel %vm514, %v1175, %v1179
      %v1182 = vshrl.u32 %v1129, 16
      %v1184 = vrot.slane %v1182, 4
      %v1185 = vshll.u32 %v1129, 16
      %v1187 = vrot.slane %v1185, 5
      %v1188 = vor.u32 %v1184, %v1187
      %v1189 = vrot.slane %v1188, 4
      %v1191 = vshll.u32 %v1130, 16
      %v1193 = vrot.slane %v1191, 5
      %v1194 = vsel %vm514, %v1189, %v1193
      %v1196 = vshrl.u32 %v1131, 16
      %v1198 = vrot.slane %v1196, 4
      %v1199 = vshll.u32 %v1131, 16
      %v1201 = vrot.slane %v1199, 5
      %v1202 = vor.u32 %v1198, %v1201
      %v1203 = vrot.slane %v1202, 4
      %v1205 = vshll.u32 %v1132, 16
      %v1207 = vrot.slane %v1205, 5
      %v1208 = vsel %vm514, %v1203, %v1207
      %v1210 = vshrl.u32 %v1133, 16
      %v1212 = vrot.slane %v1210, 4
      %v1213 = vshll.u32 %v1133, 16
      %v1215 = vrot.slane %v1213, 5
      %v1216 = vor.u32 %v1212, %v1215
      %v1217 = vrot.slane %v1216, 4
      %v1219 = vshll.u32 %v1134, 16
      %v1221 = vrot.slane %v1219, 5
      %v1222 = vsel %vm514, %v1217, %v1221
      %v1224 = vshrl.u32 %v1135, 16
      %v1226 = vrot.slane %v1224, 4
      %v1227 = vshll.u32 %v1135, 16
      %v1229 = vrot.slane %v1227, 5
      %v1230 = vor.u32 %v1226, %v1229
      %v1231 = vrot.slane %v1230, 4
      %v1233 = vshll.u32 %v1136, 16
      %v1235 = vrot.slane %v1233, 5
      %v1236 = vsel %vm514, %v1231, %v1235
      %v1238 = vshrl.u32 %v1137, 16
      %v1240 = vrot.slane %v1238, 4
      %v1241 = vshll.u32 %v1137, 16
      %v1243 = vrot.slane %v1241, 5
      %v1244 = vor.u32 %v1240, %v1243
      %v1245 = vrot.slane %v1244, 4
      %v1247 = vshll.u32 %v1138, 16
      %v1249 = vrot.slane %v1247, 5
      %v1250 = vsel %vm514, %v1245, %v1249
      %s1251 = scalar_lea.vmem %s1, 320
      %v1252 = vld [vmem:[%s1251] sm:$0xf]
      %v1253 = vld [vmem:[%s1251 + $0x4] sm:$0xf]
      %v1254 = vld [vmem:[%s1251 + $0x8] sm:$0xf]
      %v1255 = vld [vmem:[%s1251 + $0xc] sm:$0xf]
      %v1256 = vld [vmem:[%s1251 + $0x10] sm:$0xf]
      %v1257 = vld [vmem:[%s1251 + $0x14] sm:$0xf]
      %v1258 = vld [vmem:[%s1251 + $0x18] sm:$0xf]
      %v1259 = vld [vmem:[%s1251 + $0x1c] sm:$0xf]
      %v1260 = vld [vmem:[%s1251 + $0x20] sm:$0xf]
      %v1261 = vld [vmem:[%s1251 + $0x24] sm:$0xf]
      %v1262 = vld [vmem:[%s1251 + $0x28] sm:$0xf]
      %v1263 = vld [vmem:[%s1251 + $0x2c] sm:$0xf]
      %v1264 = vld [vmem:[%s1251 + $0x30] sm:$0xf]
      %v1265 = vld [vmem:[%s1251 + $0x34] sm:$0xf]
      %v1266 = vld [vmem:[%s1251 + $0x38] sm:$0xf]
      %v1267 = vld [vmem:[%s1251 + $0x3c] sm:$0xf]
      %v1268 = vunpack.c.l.b16 %v1152
      %v1269 = vunpack.c.l.b16 %v1166
      %v1270 = vunpack.c.l.b16 %v1180
      %v1271 = vunpack.c.l.b16 %v1194
      %v1272 = vunpack.c.l.b16 %v1208
      %v1273 = vunpack.c.l.b16 %v1222
      %v1274 = vunpack.c.l.b16 %v1236
      %v1275 = vunpack.c.l.b16 %v1250
      %v1276 = vpack.c.b16 %v1269, %v1268
      %v1277 = vpack.c.b16 %v1271, %v1270
      %v1278 = vpack.c.b16 %v1273, %v1272
      %v1279 = vpack.c.b16 %v1275, %v1274
      %v1300 = vunpack.c.l.b16 %v1252
      %v1301 = vunpack.c.l.b16 %v1253
      %v1302 = vunpack.c.l.b16 %v1254
      %v1303 = vunpack.c.l.b16 %v1255
      %v1304 = vunpack.c.l.b16 %v1256
      %v1305 = vunpack.c.l.b16 %v1257
      %v1306 = vunpack.c.l.b16 %v1258
      %v1307 = vunpack.c.l.b16 %v1259
      %v1308 = vunpack.c.l.b16 %v1260
      %v1309 = vunpack.c.l.b16 %v1261
      %v1310 = vunpack.c.l.b16 %v1262
      %v1311 = vunpack.c.l.b16 %v1263
      %v1312 = vunpack.c.l.b16 %v1264
      %v1313 = vunpack.c.l.b16 %v1265
      %v1314 = vunpack.c.l.b16 %v1266
      %v1315 = vunpack.c.l.b16 %v1267
      %v1316 = vpack.c.b16 %v1301, %v1300
      %v1317 = vpack.c.b16 %v1303, %v1302
      %v1318 = vpack.c.b16 %v1305, %v1304
      %v1319 = vpack.c.b16 %v1307, %v1306
      %v1320 = vpack.c.b16 %v1309, %v1308
      %v1321 = vpack.c.b16 %v1311, %v1310
      %v1322 = vpack.c.b16 %v1313, %v1312
      %v1323 = vpack.c.b16 %v1315, %v1314
      %1332 = vmatprep.subr.bf16.mxu0 0
      %1333 = vmatpush1.bf16.msra.mxu0 %v1323
      %1334 = vmatprep.subr.bf16.mxu0 0
      %1335 = vmatpush1.bf16.msra.mxu0 %v1322
      %1336 = vmatprep.subr.bf16.mxu0 0
      %1337 = vmatpush1.bf16.msra.mxu0 %v1321
      %1338 = vmatprep.subr.bf16.mxu0 0
      %1339 = vmatpush1.bf16.msra.mxu0 %v1320
      %1340 = vmatprep.subr.bf16.mxu0 0
      %1341 = vmatpush1.bf16.msra.mxu0 %v1319
      %1342 = vmatprep.subr.bf16.mxu0 0
      %1343 = vmatpush1.bf16.msra.mxu0 %v1318
      %1344 = vmatprep.subr.bf16.mxu0 0
      %1345 = vmatpush1.bf16.msra.mxu0 %v1317
      %1346 = vmatprep.subr.bf16.mxu0 0
      %1347 = vmatpush1.bf16.msra.mxu0 %v1316
      %1348 = vmatprep.subr.bf16.mxu0 0
      %1349 = vmatpush2.bf16.msra.mxu0 0
      %1350 = vmatprep.subr.bf16.mxu0 0
      %1351 = vmatpush2.bf16.msra.mxu0 0
      %1352 = vmatprep.subr.bf16.mxu0 0
      %1353 = vmatpush2.bf16.msra.mxu0 0
      %1354 = vmatprep.subr.bf16.mxu0 0
      %1355 = vmatpush2.bf16.msra.mxu0 0
      %1356 = vmatprep.subr.bf16.mxu0 0
      %1357 = vmatpush2.bf16.msra.mxu0 0
      %1358 = vmatprep.subr.bf16.mxu0 0
      %1359 = vmatpush2.bf16.msra.mxu0 0
      %1360 = vmatprep.subr.bf16.mxu0 0
      %1361 = vmatpush2.bf16.msra.mxu0 0
      %1362 = vmatprep.subr.bf16.mxu0 0
      %1363 = vmatpush2.bf16.msra.mxu0 0
      %1364 = vmatprep.mubr.bf16.mxu0 0
      %1365 = vmatmul.mubr.bf16.gmra.mxu0 %v1276
      %v1366 = vpop.f32.mrf.mxu0
      %v1367 = vadd.f32 0.0, %v1366
      %v1368 = vpop.f32.mrf.mxu0
      %v1369 = vpop.f32.mrf.mxu0
      %v1370 = vadd.f32 0.0, %v1369
      %v1371 = vpop.f32.mrf.mxu0
      %1372 = vmatprep.mubr.bf16.mxu0 0
      %1373 = vmatmul.mubr.bf16.gmra.mxu0 %v1277
      %v1374 = vpop.f32.mrf.mxu0
      %v1375 = vadd.f32 0.0, %v1374
      %v1376 = vpop.f32.mrf.mxu0
      %v1377 = vpop.f32.mrf.mxu0
      %v1378 = vadd.f32 0.0, %v1377
      %v1379 = vpop.f32.mrf.mxu0
      %1380 = vmatprep.mubr.bf16.mxu0 0
      %1381 = vmatmul.mubr.bf16.gmra.mxu0 %v1278
      %v1382 = vpop.f32.mrf.mxu0
      %v1383 = vadd.f32 0.0, %v1382
      %v1384 = vpop.f32.mrf.mxu0
      %v1385 = vpop.f32.mrf.mxu0
      %v1386 = vadd.f32 0.0, %v1385
      %v1387 = vpop.f32.mrf.mxu0
      %1388 = vmatprep.mubr.bf16.mxu0 0
      %1389 = vmatmul.mubr.bf16.gmra.mxu0 %v1279
      %v1390 = vpop.f32.mrf.mxu0
      %v1391 = vadd.f32 0.0, %v1390
      %v1392 = vpop.f32.mrf.mxu0
      %v1393 = vpop.f32.mrf.mxu0
      %v1394 = vadd.f32 0.0, %v1393
      %v1395 = vpop.f32.mrf.mxu0
      %1396 = vdwg.mxu0
      %v1397 = vadd.f32 %v1115, %v1367
      %v1398 = vadd.f32 %v1116, %v1370
      %v1399 = vadd.f32 %v1117, %v1375
      %v1400 = vadd.f32 %v1118, %v1378
      %v1401 = vadd.f32 %v1119, %v1383
      %v1402 = vadd.f32 %v1120, %v1386
      %v1403 = vadd.f32 %v1121, %v1391
      %v1404 = vadd.f32 %v1122, %v1394
      %s1405 = scalar_lea.vmem %s165, 8
      %v1406 = vld [vmem:[%s1405] sm:$0xf]
      %v1407 = vld [vmem:[%s1405 + $0x8] sm:$0xf]
      %v1408 = vld [vmem:[%s1405 + $0x10] sm:$0xf]
      %v1409 = vld [vmem:[%s1405 + $0x18] sm:$0xf]
      %v1410 = vld [vmem:[%s1405 + $0x20] sm:$0xf]
      %v1411 = vld [vmem:[%s1405 + $0x28] sm:$0xf]
      %v1412 = vld [vmem:[%s1405 + $0x30] sm:$0xf]
      %v1413 = vld [vmem:[%s1405 + $0x38] sm:$0xf]
      %s1414 = scalar_lea.vmem %s1, 384
      %v1415 = vld [vmem:[%s1414] sm:$0xf]
      %v1416 = vld [vmem:[%s1414 + $0x4] sm:$0xf]
      %v1417 = vld [vmem:[%s1414 + $0x8] sm:$0xf]
      %v1418 = vld [vmem:[%s1414 + $0xc] sm:$0xf]
      %v1419 = vld [vmem:[%s1414 + $0x10] sm:$0xf]
      %v1420 = vld [vmem:[%s1414 + $0x14] sm:$0xf]
      %v1421 = vld [vmem:[%s1414 + $0x18] sm:$0xf]
      %v1422 = vld [vmem:[%s1414 + $0x1c] sm:$0xf]
      %v1423 = vld [vmem:[%s1414 + $0x20] sm:$0xf]
      %v1424 = vld [vmem:[%s1414 + $0x24] sm:$0xf]
      %v1425 = vld [vmem:[%s1414 + $0x28] sm:$0xf]
      %v1426 = vld [vmem:[%s1414 + $0x2c] sm:$0xf]
      %v1427 = vld [vmem:[%s1414 + $0x30] sm:$0xf]
      %v1428 = vld [vmem:[%s1414 + $0x34] sm:$0xf]
      %v1429 = vld [vmem:[%s1414 + $0x38] sm:$0xf]
      %v1430 = vld [vmem:[%s1414 + $0x3c] sm:$0xf]
      %v1439 = vunpack.c.l.b16 %v1406
      %v1440 = vunpack.c.l.b16 %v1407
      %v1441 = vunpack.c.l.b16 %v1408
      %v1442 = vunpack.c.l.b16 %v1409
      %v1443 = vunpack.c.l.b16 %v1410
      %v1444 = vunpack.c.l.b16 %v1411
      %v1445 = vunpack.c.l.b16 %v1412
      %v1446 = vunpack.c.l.b16 %v1413
      %v1447 = vpack.c.b16 %v1440, %v1439
      %v1448 = vpack.c.b16 %v1442, %v1441
      %v1449 = vpack.c.b16 %v1444, %v1443
      %v1450 = vpack.c.b16 %v1446, %v1445
      %v1471 = vunpack.c.l.b16 %v1415
      %v1472 = vunpack.c.l.b16 %v1416
      %v1473 = vunpack.c.l.b16 %v1417
      %v1474 = vunpack.c.l.b16 %v1418
      %v1475 = vunpack.c.l.b16 %v1419
      %v1476 = vunpack.c.l.b16 %v1420
      %v1477 = vunpack.c.l.b16 %v1421
      %v1478 = vunpack.c.l.b16 %v1422
      %v1479 = vunpack.c.l.b16 %v1423
      %v1480 = vunpack.c.l.b16 %v1424
      %v1481 = vunpack.c.l.b16 %v1425
      %v1482 = vunpack.c.l.b16 %v1426
      %v1483 = vunpack.c.l.b16 %v1427
      %v1484 = vunpack.c.l.b16 %v1428
      %v1485 = vunpack.c.l.b16 %v1429
      %v1486 = vunpack.c.l.b16 %v1430
      %v1487 = vpack.c.b16 %v1472, %v1471
      %v1488 = vpack.c.b16 %v1474, %v1473
      %v1489 = vpack.c.b16 %v1476, %v1475
      %v1490 = vpack.c.b16 %v1478, %v1477
      %v1491 = vpack.c.b16 %v1480, %v1479
      %v1492 = vpack.c.b16 %v1482, %v1481
      %v1493 = vpack.c.b16 %v1484, %v1483
      %v1494 = vpack.c.b16 %v1486, %v1485
      %1503 = vmatprep.subr.bf16.mxu0 0
      %1504 = vmatpush1.bf16.msra.mxu0 %v1494
      %1505 = vmatprep.subr.bf16.mxu0 0
      %1506 = vmatpush1.bf16.msra.mxu0 %v1493
      %1507 = vmatprep.subr.bf16.mxu0 0
      %1508 = vmatpush1.bf16.msra.mxu0 %v1492
      %1509 = vmatprep.subr.bf16.mxu0 0
      %1510 = vmatpush1.bf16.msra.mxu0 %v1491
      %1511 = vmatprep.subr.bf16.mxu0 0
      %1512 = vmatpush1.bf16.msra.mxu0 %v1490
      %1513 = vmatprep.subr.bf16.mxu0 0
      %1514 = vmatpush1.bf16.msra.mxu0 %v1489
      %1515 = vmatprep.subr.bf16.mxu0 0
      %1516 = vmatpush1.bf16.msra.mxu0 %v1488
      %1517 = vmatprep.subr.bf16.mxu0 0
      %1518 = vmatpush1.bf16.msra.mxu0 %v1487
      %1519 = vmatprep.subr.bf16.mxu0 0
      %1520 = vmatpush2.bf16.msra.mxu0 0
      %1521 = vmatprep.subr.bf16.mxu0 0
      %1522 = vmatpush2.bf16.msra.mxu0 0
      %1523 = vmatprep.subr.bf16.mxu0 0
      %1524 = vmatpush2.bf16.msra.mxu0 0
      %1525 = vmatprep.subr.bf16.mxu0 0
      %1526 = vmatpush2.bf16.msra.mxu0 0
      %1527 = vmatprep.subr.bf16.mxu0 0
      %1528 = vmatpush2.bf16.msra.mxu0 0
      %1529 = vmatprep.subr.bf16.mxu0 0
      %1530 = vmatpush2.bf16.msra.mxu0 0
      %1531 = vmatprep.subr.bf16.mxu0 0
      %1532 = vmatpush2.bf16.msra.mxu0 0
      %1533 = vmatprep.subr.bf16.mxu0 0
      %1534 = vmatpush2.bf16.msra.mxu0 0
      %1535 = vmatprep.mubr.bf16.mxu0 0
      %1536 = vmatmul.mubr.bf16.gmra.mxu0 %v1447
      %v1537 = vpop.f32.mrf.mxu0
      %v1538 = vadd.f32 0.0, %v1537
      %v1539 = vpop.f32.mrf.mxu0
      %v1540 = vpop.f32.mrf.mxu0
      %v1541 = vadd.f32 0.0, %v1540
      %v1542 = vpop.f32.mrf.mxu0
      %1543 = vmatprep.mubr.bf16.mxu0 0
      %1544 = vmatmul.mubr.bf16.gmra.mxu0 %v1448
      %v1545 = vpop.f32.mrf.mxu0
      %v1546 = vadd.f32 0.0, %v1545
      %v1547 = vpop.f32.mrf.mxu0
      %v1548 = vpop.f32.mrf.mxu0
      %v1549 = vadd.f32 0.0, %v1548
      %v1550 = vpop.f32.mrf.mxu0
      %1551 = vmatprep.mubr.bf16.mxu0 0
      %1552 = vmatmul.mubr.bf16.gmra.mxu0 %v1449
      %v1553 = vpop.f32.mrf.mxu0
      %v1554 = vadd.f32 0.0, %v1553
      %v1555 = vpop.f32.mrf.mxu0
      %v1556 = vpop.f32.mrf.mxu0
      %v1557 = vadd.f32 0.0, %v1556
      %v1558 = vpop.f32.mrf.mxu0
      %1559 = vmatprep.mubr.bf16.mxu0 0
      %1560 = vmatmul.mubr.bf16.gmra.mxu0 %v1450
      %v1561 = vpop.f32.mrf.mxu0
      %v1562 = vadd.f32 0.0, %v1561
      %v1563 = vpop.f32.mrf.mxu0
      %v1564 = vpop.f32.mrf.mxu0
      %v1565 = vadd.f32 0.0, %v1564
      %v1566 = vpop.f32.mrf.mxu0
      %1567 = vdwg.mxu0
      %v1568 = vadd.f32 %v1397, %v1538
      %v1569 = vadd.f32 %v1398, %v1541
      %v1570 = vadd.f32 %v1399, %v1546
      %v1571 = vadd.f32 %v1400, %v1549
      %v1572 = vadd.f32 %v1401, %v1554
      %v1573 = vadd.f32 %v1402, %v1557
      %v1574 = vadd.f32 %v1403, %v1562
      %v1575 = vadd.f32 %v1404, %v1565
      %s1576 = scalar_lea.vmem %s165, 80
      %v1577 = vld [vmem:[%s1576] sm:$0xf]
      %v1578 = vld [vmem:[%s1576 + $0x8] sm:$0xf]
      %v1579 = vld [vmem:[%s1576 + $0x10] sm:$0xf]
      %v1580 = vld [vmem:[%s1576 + $0x18] sm:$0xf]
      %v1581 = vld [vmem:[%s1576 + $0x20] sm:$0xf]
      %v1582 = vld [vmem:[%s1576 + $0x28] sm:$0xf]
      %v1583 = vld [vmem:[%s1576 + $0x30] sm:$0xf]
      %v1584 = vld [vmem:[%s1576 + $0x38] sm:$0xf]
      %s1585 = scalar_lea.vmem %s1, 448
      %v1586 = vld [vmem:[%s1585] sm:$0xf]
      %v1587 = vld [vmem:[%s1585 + $0x4] sm:$0xf]
      %v1588 = vld [vmem:[%s1585 + $0x8] sm:$0xf]
      %v1589 = vld [vmem:[%s1585 + $0xc] sm:$0xf]
      %v1590 = vld [vmem:[%s1585 + $0x10] sm:$0xf]
      %v1591 = vld [vmem:[%s1585 + $0x14] sm:$0xf]
      %v1592 = vld [vmem:[%s1585 + $0x18] sm:$0xf]
      %v1593 = vld [vmem:[%s1585 + $0x1c] sm:$0xf]
      %v1594 = vld [vmem:[%s1585 + $0x20] sm:$0xf]
      %v1595 = vld [vmem:[%s1585 + $0x24] sm:$0xf]
      %v1596 = vld [vmem:[%s1585 + $0x28] sm:$0xf]
      %v1597 = vld [vmem:[%s1585 + $0x2c] sm:$0xf]
      %v1598 = vld [vmem:[%s1585 + $0x30] sm:$0xf]
      %v1599 = vld [vmem:[%s1585 + $0x34] sm:$0xf]
      %v1600 = vld [vmem:[%s1585 + $0x38] sm:$0xf]
      %v1601 = vld [vmem:[%s1585 + $0x3c] sm:$0xf]
      %v1610 = vunpack.c.l.b16 %v1577
      %v1611 = vunpack.c.l.b16 %v1578
      %v1612 = vunpack.c.l.b16 %v1579
      %v1613 = vunpack.c.l.b16 %v1580
      %v1614 = vunpack.c.l.b16 %v1581
      %v1615 = vunpack.c.l.b16 %v1582
      %v1616 = vunpack.c.l.b16 %v1583
      %v1617 = vunpack.c.l.b16 %v1584
      %v1618 = vpack.c.b16 %v1611, %v1610
      %v1619 = vpack.c.b16 %v1613, %v1612
      %v1620 = vpack.c.b16 %v1615, %v1614
      %v1621 = vpack.c.b16 %v1617, %v1616
      %v1642 = vunpack.c.l.b16 %v1586
      %v1643 = vunpack.c.l.b16 %v1587
      %v1644 = vunpack.c.l.b16 %v1588
      %v1645 = vunpack.c.l.b16 %v1589
      %v1646 = vunpack.c.l.b16 %v1590
      %v1647 = vunpack.c.l.b16 %v1591
      %v1648 = vunpack.c.l.b16 %v1592
      %v1649 = vunpack.c.l.b16 %v1593
      %v1650 = vunpack.c.l.b16 %v1594
      %v1651 = vunpack.c.l.b16 %v1595
      %v1652 = vunpack.c.l.b16 %v1596
      %v1653 = vunpack.c.l.b16 %v1597
      %v1654 = vunpack.c.l.b16 %v1598
      %v1655 = vunpack.c.l.b16 %v1599
      %v1656 = vunpack.c.l.b16 %v1600
      %v1657 = vunpack.c.l.b16 %v1601
      %v1658 = vpack.c.b16 %v1643, %v1642
      %v1659 = vpack.c.b16 %v1645, %v1644
      %v1660 = vpack.c.b16 %v1647, %v1646
      %v1661 = vpack.c.b16 %v1649, %v1648
      %v1662 = vpack.c.b16 %v1651, %v1650
      %v1663 = vpack.c.b16 %v1653, %v1652
      %v1664 = vpack.c.b16 %v1655, %v1654
      %v1665 = vpack.c.b16 %v1657, %v1656
      %1674 = vmatprep.subr.bf16.mxu0 0
      %1675 = vmatpush1.bf16.msra.mxu0 %v1665
      %1676 = vmatprep.subr.bf16.mxu0 0
      %1677 = vmatpush1.bf16.msra.mxu0 %v1664
      %1678 = vmatprep.subr.bf16.mxu0 0
      %1679 = vmatpush1.bf16.msra.mxu0 %v1663
      %1680 = vmatprep.subr.bf16.mxu0 0
      %1681 = vmatpush1.bf16.msra.mxu0 %v1662
      %1682 = vmatprep.subr.bf16.mxu0 0
      %1683 = vmatpush1.bf16.msra.mxu0 %v1661
      %1684 = vmatprep.subr.bf16.mxu0 0
      %1685 = vmatpush1.bf16.msra.mxu0 %v1660
      %1686 = vmatprep.subr.bf16.mxu0 0
      %1687 = vmatpush1.bf16.msra.mxu0 %v1659
      %1688 = vmatprep.subr.bf16.mxu0 0
      %1689 = vmatpush1.bf16.msra.mxu0 %v1658
      %1690 = vmatprep.subr.bf16.mxu0 0
      %1691 = vmatpush2.bf16.msra.mxu0 0
      %1692 = vmatprep.subr.bf16.mxu0 0
      %1693 = vmatpush2.bf16.msra.mxu0 0
      %1694 = vmatprep.subr.bf16.mxu0 0
      %1695 = vmatpush2.bf16.msra.mxu0 0
      %1696 = vmatprep.subr.bf16.mxu0 0
      %1697 = vmatpush2.bf16.msra.mxu0 0
      %1698 = vmatprep.subr.bf16.mxu0 0
      %1699 = vmatpush2.bf16.msra.mxu0 0
      %1700 = vmatprep.subr.bf16.mxu0 0
      %1701 = vmatpush2.bf16.msra.mxu0 0
      %1702 = vmatprep.subr.bf16.mxu0 0
      %1703 = vmatpush2.bf16.msra.mxu0 0
      %1704 = vmatprep.subr.bf16.mxu0 0
      %1705 = vmatpush2.bf16.msra.mxu0 0
      %1706 = vmatprep.mubr.bf16.mxu0 0
      %1707 = vmatmul.mubr.bf16.gmra.mxu0 %v1618
      %v1708 = vpop.f32.mrf.mxu0
      %v1709 = vadd.f32 0.0, %v1708
      %v1710 = vpop.f32.mrf.mxu0
      %v1711 = vpop.f32.mrf.mxu0
      %v1712 = vadd.f32 0.0, %v1711
      %v1713 = vpop.f32.mrf.mxu0
      %1714 = vmatprep.mubr.bf16.mxu0 0
      %1715 = vmatmul.mubr.bf16.gmra.mxu0 %v1619
      %v1716 = vpop.f32.mrf.mxu0
      %v1717 = vadd.f32 0.0, %v1716
      %v1718 = vpop.f32.mrf.mxu0
      %v1719 = vpop.f32.mrf.mxu0
      %v1720 = vadd.f32 0.0, %v1719
      %v1721 = vpop.f32.mrf.mxu0
      %1722 = vmatprep.mubr.bf16.mxu0 0
      %1723 = vmatmul.mubr.bf16.gmra.mxu0 %v1620
      %v1724 = vpop.f32.mrf.mxu0
      %v1725 = vadd.f32 0.0, %v1724
      %v1726 = vpop.f32.mrf.mxu0
      %v1727 = vpop.f32.mrf.mxu0
      %v1728 = vadd.f32 0.0, %v1727
      %v1729 = vpop.f32.mrf.mxu0
      %1730 = vmatprep.mubr.bf16.mxu0 0
      %1731 = vmatmul.mubr.bf16.gmra.mxu0 %v1621
      %v1732 = vpop.f32.mrf.mxu0
      %v1733 = vadd.f32 0.0, %v1732
      %v1734 = vpop.f32.mrf.mxu0
      %v1735 = vpop.f32.mrf.mxu0
      %v1736 = vadd.f32 0.0, %v1735
      %v1737 = vpop.f32.mrf.mxu0
      %1738 = vdwg.mxu0
      %v1739 = vadd.f32 %v1568, %v1709
      %v1740 = vadd.f32 %v1569, %v1712
      %v1741 = vadd.f32 %v1570, %v1717
      %v1742 = vadd.f32 %v1571, %v1720
      %v1743 = vadd.f32 %v1572, %v1725
      %v1744 = vadd.f32 %v1573, %v1728
      %v1745 = vadd.f32 %v1574, %v1733
      %v1746 = vadd.f32 %v1575, %v1736
      %v1747 = vld [vmem:[%s1405] sm:$0xf]
      %v1748 = vld [vmem:[%s1405 + $0x4] sm:$0x1]
      %v1749 = vld [vmem:[%s1405 + $0x8] sm:$0xf]
      %v1750 = vld [vmem:[%s1405 + $0xc] sm:$0x1]
      %v1751 = vld [vmem:[%s1405 + $0x10] sm:$0xf]
      %v1752 = vld [vmem:[%s1405 + $0x14] sm:$0x1]
      %v1753 = vld [vmem:[%s1405 + $0x18] sm:$0xf]
      %v1754 = vld [vmem:[%s1405 + $0x1c] sm:$0x1]
      %v1755 = vld [vmem:[%s1405 + $0x20] sm:$0xf]
      %v1756 = vld [vmem:[%s1405 + $0x24] sm:$0x1]
      %v1757 = vld [vmem:[%s1405 + $0x28] sm:$0xf]
      %v1758 = vld [vmem:[%s1405 + $0x2c] sm:$0x1]
      %v1759 = vld [vmem:[%s1405 + $0x30] sm:$0xf]
      %v1760 = vld [vmem:[%s1405 + $0x34] sm:$0x1]
      %v1761 = vld [vmem:[%s1405 + $0x38] sm:$0xf]
      %v1762 = vld [vmem:[%s1405 + $0x3c] sm:$0x1]
      %v1764 = vshrl.u32 %v1747, 16
      %v1766 = vrot.slane %v1764, 4
      %v1767 = vshll.u32 %v1747, 16
      %v1769 = vrot.slane %v1767, 5
      %v1770 = vor.u32 %v1766, %v1769
      %v1771 = vrot.slane %v1770, 4
      %v1773 = vshll.u32 %v1748, 16
      %v1775 = vrot.slane %v1773, 5
      %v1776 = vsel %vm514, %v1771, %v1775
      %v1778 = vshrl.u32 %v1749, 16
      %v1780 = vrot.slane %v1778, 4
      %v1781 = vshll.u32 %v1749, 16
      %v1783 = vrot.slane %v1781, 5
      %v1784 = vor.u32 %v1780, %v1783
      %v1785 = vrot.slane %v1784, 4
      %v1787 = vshll.u32 %v1750, 16
      %v1789 = vrot.slane %v1787, 5
      %v1790 = vsel %vm514, %v1785, %v1789
      %v1792 = vshrl.u32 %v1751, 16
      %v1794 = vrot.slane %v1792, 4
      %v1795 = vshll.u32 %v1751, 16
      %v1797 = vrot.slane %v1795, 5
      %v1798 = vor.u32 %v1794, %v1797
      %v1799 = vrot.slane %v1798, 4
      %v1801 = vshll.u32 %v1752, 16
      %v1803 = vrot.slane %v1801, 5
      %v1804 = vsel %vm514, %v1799, %v1803
      %v1806 = vshrl.u32 %v1753, 16
      %v1808 = vrot.slane %v1806, 4
      %v1809 = vshll.u32 %v1753, 16
      %v1811 = vrot.slane %v1809, 5
      %v1812 = vor.u32 %v1808, %v1811
      %v1813 = vrot.slane %v1812, 4
      %v1815 = vshll.u32 %v1754, 16
      %v1817 = vrot.slane %v1815, 5
      %v1818 = vsel %vm514, %v1813, %v1817
      %v1820 = vshrl.u32 %v1755, 16
      %v1822 = vrot.slane %v1820, 4
      %v1823 = vshll.u32 %v1755, 16
      %v1825 = vrot.slane %v1823, 5
      %v1826 = vor.u32 %v1822, %v1825
      %v1827 = vrot.slane %v1826, 4
      %v1829 = vshll.u32 %v1756, 16
      %v1831 = vrot.slane %v1829, 5
      %v1832 = vsel %vm514, %v1827, %v1831
      %v1834 = vshrl.u32 %v1757, 16
      %v1836 = vrot.slane %v1834, 4
      %v1837 = vshll.u32 %v1757, 16
      %v1839 = vrot.slane %v1837, 5
      %v1840 = vor.u32 %v1836, %v1839
      %v1841 = vrot.slane %v1840, 4
      %v1843 = vshll.u32 %v1758, 16
      %v1845 = vrot.slane %v1843, 5
      %v1846 = vsel %vm514, %v1841, %v1845
      %v1848 = vshrl.u32 %v1759, 16
      %v1850 = vrot.slane %v1848, 4
      %v1851 = vshll.u32 %v1759, 16
      %v1853 = vrot.slane %v1851, 5
      %v1854 = vor.u32 %v1850, %v1853
      %v1855 = vrot.slane %v1854, 4
      %v1857 = vshll.u32 %v1760, 16
      %v1859 = vrot.slane %v1857, 5
      %v1860 = vsel %vm514, %v1855, %v1859
      %v1862 = vshrl.u32 %v1761, 16
      %v1864 = vrot.slane %v1862, 4
      %v1865 = vshll.u32 %v1761, 16
      %v1867 = vrot.slane %v1865, 5
      %v1868 = vor.u32 %v1864, %v1867
      %v1869 = vrot.slane %v1868, 4
      %v1871 = vshll.u32 %v1762, 16
      %v1873 = vrot.slane %v1871, 5
      %v1874 = vsel %vm514, %v1869, %v1873
      %s1875 = scalar_lea.vmem %s1, 512
      %v1876 = vld [vmem:[%s1875] sm:$0xf]
      %v1877 = vld [vmem:[%s1875 + $0x4] sm:$0xf]
      %v1878 = vld [vmem:[%s1875 + $0x8] sm:$0xf]
      %v1879 = vld [vmem:[%s1875 + $0xc] sm:$0xf]
      %v1880 = vld [vmem:[%s1875 + $0x10] sm:$0xf]
      %v1881 = vld [vmem:[%s1875 + $0x14] sm:$0xf]
      %v1882 = vld [vmem:[%s1875 + $0x18] sm:$0xf]
      %v1883 = vld [vmem:[%s1875 + $0x1c] sm:$0xf]
      %v1884 = vld [vmem:[%s1875 + $0x20] sm:$0xf]
      %v1885 = vld [vmem:[%s1875 + $0x24] sm:$0xf]
      %v1886 = vld [vmem:[%s1875 + $0x28] sm:$0xf]
      %v1887 = vld [vmem:[%s1875 + $0x2c] sm:$0xf]
      %v1888 = vld [vmem:[%s1875 + $0x30] sm:$0xf]
      %v1889 = vld [vmem:[%s1875 + $0x34] sm:$0xf]
      %v1890 = vld [vmem:[%s1875 + $0x38] sm:$0xf]
      %v1891 = vld [vmem:[%s1875 + $0x3c] sm:$0xf]
      %v1892 = vunpack.c.l.b16 %v1776
      %v1893 = vunpack.c.l.b16 %v1790
      %v1894 = vunpack.c.l.b16 %v1804
      %v1895 = vunpack.c.l.b16 %v1818
      %v1896 = vunpack.c.l.b16 %v1832
      %v1897 = vunpack.c.l.b16 %v1846
      %v1898 = vunpack.c.l.b16 %v1860
      %v1899 = vunpack.c.l.b16 %v1874
      %v1900 = vpack.c.b16 %v1893, %v1892
      %v1901 = vpack.c.b16 %v1895, %v1894
      %v1902 = vpack.c.b16 %v1897, %v1896
      %v1903 = vpack.c.b16 %v1899, %v1898
      %v1924 = vunpack.c.l.b16 %v1876
      %v1925 = vunpack.c.l.b16 %v1877
      %v1926 = vunpack.c.l.b16 %v1878
      %v1927 = vunpack.c.l.b16 %v1879
      %v1928 = vunpack.c.l.b16 %v1880
      %v1929 = vunpack.c.l.b16 %v1881
      %v1930 = vunpack.c.l.b16 %v1882
      %v1931 = vunpack.c.l.b16 %v1883
      %v1932 = vunpack.c.l.b16 %v1884
      %v1933 = vunpack.c.l.b16 %v1885
      %v1934 = vunpack.c.l.b16 %v1886
      %v1935 = vunpack.c.l.b16 %v1887
      %v1936 = vunpack.c.l.b16 %v1888
      %v1937 = vunpack.c.l.b16 %v1889
      %v1938 = vunpack.c.l.b16 %v1890
      %v1939 = vunpack.c.l.b16 %v1891
      %v1940 = vpack.c.b16 %v1925, %v1924
      %v1941 = vpack.c.b16 %v1927, %v1926
      %v1942 = vpack.c.b16 %v1929, %v1928
      %v1943 = vpack.c.b16 %v1931, %v1930
      %v1944 = vpack.c.b16 %v1933, %v1932
      %v1945 = vpack.c.b16 %v1935, %v1934
      %v1946 = vpack.c.b16 %v1937, %v1936
      %v1947 = vpack.c.b16 %v1939, %v1938
      %1956 = vmatprep.subr.bf16.mxu0 0
      %1957 = vmatpush1.bf16.msra.mxu0 %v1947
      %1958 = vmatprep.subr.bf16.mxu0 0
      %1959 = vmatpush1.bf16.msra.mxu0 %v1946
      %1960 = vmatprep.subr.bf16.mxu0 0
      %1961 = vmatpush1.bf16.msra.mxu0 %v1945
      %1962 = vmatprep.subr.bf16.mxu0 0
      %1963 = vmatpush1.bf16.msra.mxu0 %v1944
      %1964 = vmatprep.subr.bf16.mxu0 0
      %1965 = vmatpush1.bf16.msra.mxu0 %v1943
      %1966 = vmatprep.subr.bf16.mxu0 0
      %1967 = vmatpush1.bf16.msra.mxu0 %v1942
      %1968 = vmatprep.subr.bf16.mxu0 0
      %1969 = vmatpush1.bf16.msra.mxu0 %v1941
      %1970 = vmatprep.subr.bf16.mxu0 0
      %1971 = vmatpush1.bf16.msra.mxu0 %v1940
      %1972 = vmatprep.subr.bf16.mxu0 0
      %1973 = vmatpush2.bf16.msra.mxu0 0
      %1974 = vmatprep.subr.bf16.mxu0 0
      %1975 = vmatpush2.bf16.msra.mxu0 0
      %1976 = vmatprep.subr.bf16.mxu0 0
      %1977 = vmatpush2.bf16.msra.mxu0 0
      %1978 = vmatprep.subr.bf16.mxu0 0
      %1979 = vmatpush2.bf16.msra.mxu0 0
      %1980 = vmatprep.subr.bf16.mxu0 0
      %1981 = vmatpush2.bf16.msra.mxu0 0
      %1982 = vmatprep.subr.bf16.mxu0 0
      %1983 = vmatpush2.bf16.msra.mxu0 0
      %1984 = vmatprep.subr.bf16.mxu0 0
      %1985 = vmatpush2.bf16.msra.mxu0 0
      %1986 = vmatprep.subr.bf16.mxu0 0
      %1987 = vmatpush2.bf16.msra.mxu0 0
      %1988 = vmatprep.mubr.bf16.mxu0 0
      %1989 = vmatmul.mubr.bf16.gmra.mxu0 %v1900
      %v1990 = vpop.f32.mrf.mxu0
      %v1991 = vadd.f32 0.0, %v1990
      %v1992 = vpop.f32.mrf.mxu0
      %v1993 = vpop.f32.mrf.mxu0
      %v1994 = vadd.f32 0.0, %v1993
      %v1995 = vpop.f32.mrf.mxu0
      %1996 = vmatprep.mubr.bf16.mxu0 0
      %1997 = vmatmul.mubr.bf16.gmra.mxu0 %v1901
      %v1998 = vpop.f32.mrf.mxu0
      %v1999 = vadd.f32 0.0, %v1998
      %v2000 = vpop.f32.mrf.mxu0
      %v2001 = vpop.f32.mrf.mxu0
      %v2002 = vadd.f32 0.0, %v2001
      %v2003 = vpop.f32.mrf.mxu0
      %2004 = vmatprep.mubr.bf16.mxu0 0
      %2005 = vmatmul.mubr.bf16.gmra.mxu0 %v1902
      %v2006 = vpop.f32.mrf.mxu0
      %v2007 = vadd.f32 0.0, %v2006
      %v2008 = vpop.f32.mrf.mxu0
      %v2009 = vpop.f32.mrf.mxu0
      %v2010 = vadd.f32 0.0, %v2009
      %v2011 = vpop.f32.mrf.mxu0
      %2012 = vmatprep.mubr.bf16.mxu0 0
      %2013 = vmatmul.mubr.bf16.gmra.mxu0 %v1903
      %v2014 = vpop.f32.mrf.mxu0
      %v2015 = vadd.f32 0.0, %v2014
      %v2016 = vpop.f32.mrf.mxu0
      %v2017 = vpop.f32.mrf.mxu0
      %v2018 = vadd.f32 0.0, %v2017
      %v2019 = vpop.f32.mrf.mxu0
      %2020 = vdwg.mxu0
      %v2021 = vadd.f32 %v1739, %v1991
      %v2022 = vadd.f32 %v1740, %v1994
      %v2023 = vadd.f32 %v1741, %v1999
      %v2024 = vadd.f32 %v1742, %v2002
      %v2025 = vadd.f32 %v1743, %v2007
      %v2026 = vadd.f32 %v1744, %v2010
      %v2027 = vadd.f32 %v1745, %v2015
      %v2028 = vadd.f32 %v1746, %v2018
      %v2029 = vld [vmem:[%s2] sm:$0x1]
      %v2031 = vlaneseq
      %v2032 = vshrl.u32 %v2031, 7
      %v2033 = vsub.s32 0, %v2032
      %v2034 = vrot.slane %v2029, %v2033
      %v2036 = vadd.f32 %v2021, %v2034
      %v2037 = vadd.f32 %v2022, %v2034
      %v2038 = vadd.f32 %v2023, %v2034
      %v2039 = vadd.f32 %v2024, %v2034
      %v2040 = vadd.f32 %v2025, %v2034
      %v2041 = vadd.f32 %v2026, %v2034
      %v2042 = vadd.f32 %v2027, %v2034
      %v2043 = vadd.f32 %v2028, %v2034
      %v2044 = vmax.f32 %v2036, 0.0
      %v2045 = vmax.f32 %v2037, 0.0
      %v2046 = vmax.f32 %v2038, 0.0
      %v2047 = vmax.f32 %v2039, 0.0
      %v2048 = vmax.f32 %v2040, 0.0
      %v2049 = vmax.f32 %v2041, 0.0
      %v2050 = vmax.f32 %v2042, 0.0
      %v2051 = vmax.f32 %v2043, 0.0
      %v2052 = vpack.c.bf16 %v2045, %v2044
      %v2053 = vpack.c.bf16 %v2047, %v2046
      %v2054 = vpack.c.bf16 %v2049, %v2048
      %v2055 = vpack.c.bf16 %v2051, %v2050
      %v2060 = vunpack.c.l.b16 %v2052
      %v2061 = vunpack.c.h.b16 %v2052
      %v2062 = vunpack.c.l.b16 %v2053
      %v2063 = vunpack.c.h.b16 %v2053
      %v2064 = vunpack.c.l.b16 %v2054
      %v2065 = vunpack.c.h.b16 %v2054
      %v2066 = vunpack.c.l.b16 %v2055
      %v2067 = vunpack.c.h.b16 %v2055
      %v2068 = vpack.c.b16 %v2060, %v2060
      %v2069 = vpack.c.b16 %v2061, %v2061
      %v2070 = vpack.c.b16 %v2062, %v2062
      %v2071 = vpack.c.b16 %v2063, %v2063
      %v2072 = vpack.c.b16 %v2064, %v2064
      %v2073 = vpack.c.b16 %v2065, %v2065
      %v2074 = vpack.c.b16 %v2066, %v2066
      %v2075 = vpack.c.b16 %v2067, %v2067
      %2084 = vst [vmem:[%s170] sm:$0xf] %v2068
      %2085 = vst [vmem:[%s170 + $0x4] sm:$0xf] %v2069
      %2086 = vst [vmem:[%s170 + $0x8] sm:$0xf] %v2070
      %2087 = vst [vmem:[%s170 + $0xc] sm:$0xf] %v2071
      %2088 = vst [vmem:[%s170 + $0x10] sm:$0xf] %v2072
      %2089 = vst [vmem:[%s170 + $0x14] sm:$0xf] %v2073
      %2090 = vst [vmem:[%s170 + $0x18] sm:$0xf] %v2074
      %2091 = vst [vmem:[%s170 + $0x1c] sm:$0xf] %v2075
      %p2092 = scmp.lt.s32.totalorder %s14, 1
      %s2093 = scalar_select %p2092, %s14, 1
      %s2094 = smul.addr %s2093, 8
      %s2095 = smul.addr %s2094, 4
      %s2096 = scalar_lea.vmem %s3, %s2095
      // Predicated region
      $region33: #{bottleneck_forward.4} parent=31 // pred_check
        %p2097 = pneg %p100
      $region34: #{bottleneck_forward.4} parent=31 // pred_check_branch
        %2099 = sbr.rel (%p2097) target = $region36
      $region35: #{bottleneck_forward.4} parent=31 // pred_region
        _
      $region36: #{bottleneck_forward.4} parent=31 // pred_fallthru
        _
    $region32: #{bottleneck_forward.4} parent=5 // pred_fallthru
      _
    %p2100 = scmp.le.s32.totalorder 2, %s9
    // Predicated region
    $region37: #{bottleneck_forward.4} parent=5 // pred_check
      %p2101 = pneg %p2100
    $region38: #{bottleneck_forward.4} parent=5 // pred_check_branch
      %2103 = sbr.rel (%p2101) target = $region40
    $region39: #{bottleneck_forward.4} parent=5 // pred_region
      %s2104 = ssub.s32 %s9, 2
      // Predicated region
      $region41: #{bottleneck_forward.4} parent=39 // pred_check
        %p2105 = pneg %p106
      $region42: #{bottleneck_forward.4} parent=39 // pred_check_branch
        %2107 = sbr.rel (%p2105) target = $region44
      $region43: #{bottleneck_forward.4} parent=39 // pred_region
        %p2108 = scmp.lt.s32.totalorder %s15, 1
        %s2109 = scalar_select %p2108, %s15, 1
        %s2110 = smul.addr %s2109, 8
        %s2111 = smul.addr %s2110, 4
        %s2112 = scalar_lea.vmem %s3, %s2111
      $region44: #{bottleneck_forward.4} parent=39 // pred_fallthru
        _
    $region40: #{bottleneck_forward.4} parent=5 // pred_fallthru
      _
  $region6: #{bottleneck_forward.4} parent=0 // loop_footer
    %s13 = sadd.s32 1, %s9
  $region7: #{bottleneck_forward.4} parent=0 // loop_footer_branch
    %8 = sbr.rel target = $region3
  $region8: #{bottleneck_forward.4} parent=0 // loop_exit
    _

// kernel: bottleneck_forward.5
$region0: #{bottleneck_forward.5}
  #allocation0 [shape = 'u32[]', space=smem, size = 0x4, offset = 0x4, fixed_abs, tag = 'smem constant byte address 0x4 - core index']
  #allocation1 [shape = 'u32[144,128]{1,0:T(1,128)}', space=vmem, size = 0x12000, scoped, tag = 'internal scratch']
  %s0 = inlined_call_operand.vmem [shape: bf16[128,128], index: 0, kind: input, shape index: {}]
  %s1 = inlined_call_operand.vmem [shape: bf16[128,128], index: 1, kind: input, shape index: {}]
  %s2 = inlined_call_operand.vmem [shape: f32[1,128], index: 2, kind: input, shape index: {}]
  %s3 = inlined_call_operand.vmem [shape: bf16[128,128], index: 3, kind: input, shape index: {}]
  %s4 = inlined_call_operand.vmem [shape: bf16[128,128], index: 4, kind: input, shape index: {}]
  %s5 = inlined_call_operand.vmem [shape: f32[1,128], index: 5, kind: input, shape index: {}]
  %s6 = inlined_call_operand.vmem [shape: f32[128,128], index: 6, kind: output, shape index: {}]
  %s7 = sld [smem:[#allocation0]]
  $region57: #{bottleneck_forward.5} parent=0
    _
  %s9 = ssub.s32 1, %s7
  %s10 = scalar_select 0, %s9, %s7
  loop: start=0, step=1, limit=6
  $region2: #{bottleneck_forward.5} parent=0 // loop_pre_header
    _
  $region3: #{bottleneck_forward.5} parent=0 // loop_header
    %s12 = sphi 0, %s16
    %p13 = scmp.ge.s32.totalorder %s12, 6
    %s22 = sphi 0, %s24
    %s25 = sphi 0, %s22
    %s26 = sphi 0, %s25
    %s42 = sphi 0, %s26
    %s46 = sphi 0, %s46
    %s48 = sphi 0, %s46
    %s49 = sphi 0, %s48
    %s63 = sphi 0, %s49
    %s67 = sphi 0, %s67
    %s69 = sphi 0, %s67
    %s70 = sphi 0, %s69
    %s84 = sphi 0, %s70
    %s90 = sphi 0, %s92
    %s93 = sphi 0, %s90
    %s94 = sphi 0, %s93
    %s110 = sphi 0, %s94
    %s114 = sphi 0, %s114
    %s116 = sphi 0, %s114
    %s117 = sphi 0, %s116
    %s131 = sphi 0, %s117
    %s135 = sphi 0, %s135
    %s137 = sphi 0, %s135
    %s138 = sphi 0, %s137
    %s152 = sphi 0, %s138
    %s158 = sphi 0, %s160
    %s161 = sphi 0, %s158
    %s162 = sphi 0, %s161
    %s178 = sphi 0, %s162
  $region4: #{bottleneck_forward.5} parent=0 // loop_header_branch
    %15 = sbr.rel (%p13) target = $region8
  $region5: #{bottleneck_forward.5} parent=0 // loop_body
    %s17 = ssub.s32 %s12, 1
    %s18 = ssub.s32 %s12, 2
    %s19 = sadd.s32 %s12, 1
    %s20 = ssub.s32 %s12, %s19
    %p21 = scmp.eq.s32.totalorder %s20, 0
    %s23 = sadd.s32 %s22, 1
    %s24 = scalar_select %p21, %s22, %s23
    %p27 = pneg %p21
    %p28 = scmp.eq.s32.totalorder %s12, 3
    %p29 = por %p27, %p28
    %p30 = scmp.ne.s32.totalorder %s22, %s25
    %p31 = scmp.eq.s32.totalorder %s12, 0
    %p32 = por %p30, %p31
    %p33 = scmp.ne.s32.totalorder %s22, %s25
    %p34 = scmp.eq.s32.totalorder %s17, 3
    %p35 = por %p33, %p34
    %p36 = scmp.ne.s32.totalorder %s25, %s26
    %p37 = scmp.eq.s32.totalorder %s17, 0
    %p38 = por %p36, %p37
    %p39 = scmp.ne.s32.totalorder %s25, %s26
    %p40 = scmp.eq.s32.totalorder %s18, 3
    %p41 = por %p39, %p40
    %p43 = scmp.ne.s32.totalorder %s26, %s42
    %p44 = scmp.eq.s32.totalorder %s18, 0
    %p45 = por %p43, %p44
    %s47 = sadd.s32 %s46, 1
    %p50 = scmp.eq.s32.totalorder %s12, 3
    %p51 = scmp.ne.s32.totalorder %s46, %s48
    %p52 = scmp.eq.s32.totalorder %s12, 0
    %p53 = por %p51, %p52
    %p54 = scmp.ne.s32.totalorder %s46, %s48
    %p55 = scmp.eq.s32.totalorder %s17, 3
    %p56 = por %p54, %p55
    %p57 = scmp.ne.s32.totalorder %s48, %s49
    %p58 = scmp.eq.s32.totalorder %s17, 0
    %p59 = por %p57, %p58
    %p60 = scmp.ne.s32.totalorder %s48, %s49
    %p61 = scmp.eq.s32.totalorder %s18, 3
    %p62 = por %p60, %p61
    %p64 = scmp.ne.s32.totalorder %s49, %s63
    %p65 = scmp.eq.s32.totalorder %s18, 0
    %p66 = por %p64, %p65
    %s68 = sadd.s32 %s67, 1
    %p71 = scmp.eq.s32.totalorder %s12, 3
    %p72 = scmp.ne.s32.totalorder %s67, %s69
    %p73 = scmp.eq.s32.totalorder %s12, 0
    %p74 = por %p72, %p73
    %p75 = scmp.ne.s32.totalorder %s67, %s69
    %p76 = scmp.eq.s32.totalorder %s17, 3
    %p77 = por %p75, %p76
    %p78 = scmp.ne.s32.totalorder %s69, %s70
    %p79 = scmp.eq.s32.totalorder %s17, 0
    %p80 = por %p78, %p79
    %p81 = scmp.ne.s32.totalorder %s69, %s70
    %p82 = scmp.eq.s32.totalorder %s18, 3
    %p83 = por %p81, %p82
    %p85 = scmp.ne.s32.totalorder %s70, %s84
    %p86 = scmp.eq.s32.totalorder %s18, 0
    %p87 = por %p85, %p86
    %s88 = ssub.s32 %s12, %s19
    %p89 = scmp.eq.s32.totalorder %s88, 0
    %s91 = sadd.s32 %s90, 1
    %s92 = scalar_select %p89, %s90, %s91
    %p95 = pneg %p89
    %p96 = scmp.eq.s32.totalorder %s12, 3
    %p97 = por %p95, %p96
    %p98 = scmp.ne.s32.totalorder %s90, %s93
    %p99 = scmp.eq.s32.totalorder %s12, 0
    %p100 = por %p98, %p99
    %p101 = scmp.ne.s32.totalorder %s90, %s93
    %p102 = scmp.eq.s32.totalorder %s17, 3
    %p103 = por %p101, %p102
    %p104 = scmp.ne.s32.totalorder %s93, %s94
    %p105 = scmp.eq.s32.totalorder %s17, 0
    %p106 = por %p104, %p105
    %p107 = scmp.ne.s32.totalorder %s93, %s94
    %p108 = scmp.eq.s32.totalorder %s18, 3
    %p109 = por %p107, %p108
    %p111 = scmp.ne.s32.totalorder %s94, %s110
    %p112 = scmp.eq.s32.totalorder %s18, 0
    %p113 = por %p111, %p112
    %s115 = sadd.s32 %s114, 1
    %p118 = scmp.eq.s32.totalorder %s12, 3
    %p119 = scmp.ne.s32.totalorder %s114, %s116
    %p120 = scmp.eq.s32.totalorder %s12, 0
    %p121 = por %p119, %p120
    %p122 = scmp.ne.s32.totalorder %s114, %s116
    %p123 = scmp.eq.s32.totalorder %s17, 3
    %p124 = por %p122, %p123
    %p125 = scmp.ne.s32.totalorder %s116, %s117
    %p126 = scmp.eq.s32.totalorder %s17, 0
    %p127 = por %p125, %p126
    %p128 = scmp.ne.s32.totalorder %s116, %s117
    %p129 = scmp.eq.s32.totalorder %s18, 3
    %p130 = por %p128, %p129
    %p132 = scmp.ne.s32.totalorder %s117, %s131
    %p133 = scmp.eq.s32.totalorder %s18, 0
    %p134 = por %p132, %p133
    %s136 = sadd.s32 %s135, 1
    %p139 = scmp.eq.s32.totalorder %s12, 3
    %p140 = scmp.ne.s32.totalorder %s135, %s137
    %p141 = scmp.eq.s32.totalorder %s12, 0
    %p142 = por %p140, %p141
    %p143 = scmp.ne.s32.totalorder %s135, %s137
    %p144 = scmp.eq.s32.totalorder %s17, 3
    %p145 = por %p143, %p144
    %p146 = scmp.ne.s32.totalorder %s137, %s138
    %p147 = scmp.eq.s32.totalorder %s17, 0
    %p148 = por %p146, %p147
    %p149 = scmp.ne.s32.totalorder %s137, %s138
    %p150 = scmp.eq.s32.totalorder %s18, 3
    %p151 = por %p149, %p150
    %p153 = scmp.ne.s32.totalorder %s138, %s152
    %p154 = scmp.eq.s32.totalorder %s18, 0
    %p155 = por %p153, %p154
    %s156 = ssub.s32 %s12, %s19
    %p157 = scmp.eq.s32.totalorder %s156, 0
    %s159 = sadd.s32 %s158, 1
    %s160 = scalar_select %p157, %s158, %s159
    %p163 = pneg %p157
    %p164 = scmp.eq.s32.totalorder %s12, 3
    %p165 = por %p163, %p164
    %p166 = scmp.ne.s32.totalorder %s158, %s161
    %p167 = scmp.eq.s32.totalorder %s12, 0
    %p168 = por %p166, %p167
    %p169 = scmp.ne.s32.totalorder %s158, %s161
    %p170 = scmp.eq.s32.totalorder %s17, 3
    %p171 = por %p169, %p170
    %p172 = scmp.ne.s32.totalorder %s161, %s162
    %p173 = scmp.eq.s32.totalorder %s17, 0
    %p174 = por %p172, %p173
    %p175 = scmp.ne.s32.totalorder %s161, %s162
    %p176 = scmp.eq.s32.totalorder %s18, 3
    %p177 = por %p175, %p176
    %p179 = scmp.ne.s32.totalorder %s162, %s178
    %p180 = scmp.eq.s32.totalorder %s18, 0
    %p181 = por %p179, %p180
    %p182 = scmp.le.s32.totalorder 1, %s12
    %p183 = scmp.lt.s32.totalorder %s12, 5
    %p184 = pnand %p182, %p183
    %p185 = pneg %p184
    // Predicated region
    $region9: #{bottleneck_forward.5} parent=5 // pred_check
      _
    $region10: #{bottleneck_forward.5} parent=5 // pred_check_branch
      %187 = sbr.rel (%p184) target = $region12
    $region11: #{bottleneck_forward.5} parent=5 // pred_region
      %s188 = ssub.s32 %s12, 1
      // Predicated region
      $region13: #{bottleneck_forward.5} parent=11 // pred_check
        %p189 = pneg %p59
      $region14: #{bottleneck_forward.5} parent=11 // pred_check_branch
        %191 = sbr.rel (%p189) target = $region16
      $region15: #{bottleneck_forward.5} parent=11 // pred_region
        _
      $region16: #{bottleneck_forward.5} parent=11 // pred_fallthru
        _
      // Predicated region
      $region17: #{bottleneck_forward.5} parent=11 // pred_check
        %p192 = pneg %p80
      $region18: #{bottleneck_forward.5} parent=11 // pred_check_branch
        %194 = sbr.rel (%p192) target = $region20
      $region19: #{bottleneck_forward.5} parent=11 // pred_region
        _
      $region20: #{bottleneck_forward.5} parent=11 // pred_fallthru
        _
      // Predicated region
      $region21: #{bottleneck_forward.5} parent=11 // pred_check
        %p195 = pneg %p127
      $region22: #{bottleneck_forward.5} parent=11 // pred_check_branch
        %197 = sbr.rel (%p195) target = $region24
      $region23: #{bottleneck_forward.5} parent=11 // pred_region
        _
      $region24: #{bottleneck_forward.5} parent=11 // pred_fallthru
        _
      // Predicated region
      $region25: #{bottleneck_forward.5} parent=11 // pred_check
        %p198 = pneg %p148
      $region26: #{bottleneck_forward.5} parent=11 // pred_check_branch
        %200 = sbr.rel (%p198) target = $region28
      $region27: #{bottleneck_forward.5} parent=11 // pred_region
        _
      $region28: #{bottleneck_forward.5} parent=11 // pred_fallthru
        _
    $region12: #{bottleneck_forward.5} parent=5 // pred_fallthru
      _
    %p201 = scmp.lt.s32.totalorder %s12, 4
    // Predicated region
    $region29: #{bottleneck_forward.5} parent=5 // pred_check
      %p202 = pneg %p201
    $region30: #{bottleneck_forward.5} parent=5 // pred_check_branch
      %204 = sbr.rel (%p202) target = $region32
    $region31: #{bottleneck_forward.5} parent=5 // pred_region
      // Predicated region
      $region33: #{bottleneck_forward.5} parent=31 // pred_check
        %p205 = pneg %p32
      $region34: #{bottleneck_forward.5} parent=31 // pred_check_branch
        %207 = sbr.rel (%p205) target = $region36
      $region35: #{bottleneck_forward.5} parent=31 // pred_region
        %s208 = smul.u32 4, %s12
        %p209 = scmp.lt.s32.totalorder %s208, 15
        %s210 = scalar_select %p209, %s208, 15
        %s211 = smul.addr %s210, 4
        %s212 = scalar_lea.vmem %s0, %s211
        %s213 = smul.u32 4, %s12
      $region36: #{bottleneck_forward.5} parent=31 // pred_fallthru
        _
      // Predicated region
      $region37: #{bottleneck_forward.5} parent=31 // pred_check
        %p214 = pneg %p100
      $region38: #{bottleneck_forward.5} parent=31 // pred_check_branch
        %216 = sbr.rel (%p214) target = $region40
      $region39: #{bottleneck_forward.5} parent=31 // pred_region
        %s217 = smul.u32 4, %s12
        %p218 = scmp.lt.s32.totalorder %s217, 15
        %s219 = scalar_select %p218, %s217, 15
        %s220 = smul.addr %s219, 4
        %s221 = scalar_lea.vmem %s3, %s220
        %s222 = smul.u32 4, %s12
      $region40: #{bottleneck_forward.5} parent=31 // pred_fallthru
        _
    $region32: #{bottleneck_forward.5} parent=5 // pred_fallthru
      _
    %p223 = scmp.le.s32.totalorder 1, %s12
    %p224 = scmp.lt.s32.totalorder %s12, 5
    %p225 = pnand %p223, %p224
    %p226 = pneg %p225
    // Predicated region
    $region41: #{bottleneck_forward.5} parent=5 // pred_check
      _
    $region42: #{bottleneck_forward.5} parent=5 // pred_check_branch
      %228 = sbr.rel (%p225) target = $region44
    $region43: #{bottleneck_forward.5} parent=5 // pred_region
      %s229 = ssub.s32 %s12, 1
      %s230 = smul.u32 4, %s17
      %p231 = scmp.lt.s32.totalorder %s230, 15
      %s232 = scalar_select %p231, %s230, 15
      %s233 = smul.addr %s232, 4
      %s234 = scalar_lea.vmem %s0, %s233
      %p235 = pneg %p38
      %p236 = pneg %p35
      %p237 = pneg %p59
      %p238 = pneg %p56
      %p239 = pneg %p80
      %p240 = pneg %p77
      %s241 = smul.u32 4, %s17
      %p242 = scmp.lt.s32.totalorder %s241, 15
      %s243 = scalar_select %p242, %s241, 15
      %s244 = smul.addr %s243, 4
      %s245 = scalar_lea.vmem %s3, %s244
      %p246 = pneg %p106
      %p247 = pneg %p103
      %p248 = pneg %p127
      %p249 = pneg %p124
      %p250 = pneg %p148
      %p251 = pneg %p145
      %p252 = pneg %p174
      %p253 = pneg %p171
      %s254 = smul.u32 4, %s17
      %p255 = scmp.lt.s32.totalorder %s254, 15
      %s256 = scalar_select %p255, %s254, 15
      %s257 = smul.addr %s256, 8
      %s258 = scalar_lea.vmem %s6, %s257
      %s259 = smul.u32 4, %s17
      %p260 = scmp.lt.s32.totalorder %s259, 15
      %s261 = scalar_select %p260, %s259, 15
      %s262 = smul.addr %s261, 4
      %s263 = scalar_lea.vmem %s0, %s262
      %s264 = smul.u32 4, %s17
      %s265 = smul.u32 4, %s17
      %p266 = scmp.lt.s32.totalorder %s265, 15
      %s267 = scalar_select %p266, %s265, 15
      %s268 = smul.addr %s267, 4
      %s269 = scalar_lea.vmem %s3, %s268
      %s270 = smul.u32 4, %s17
      %s271 = smul.u32 4, %s17
      %p272 = scmp.lt.s32.totalorder %s271, 15
      %s273 = scalar_select %p272, %s271, 15
      %s274 = smul.addr %s273, 8
      %s275 = scalar_lea.vmem %s6, %s274
      %s276 = smul.u32 4, %s17
      %v278 = vld [vmem:[%s263] sm:$0xf]
      %v279 = vld [vmem:[%s263 + $0x4] sm:$0xf]
      %v280 = vld [vmem:[%s263 + $0x8] sm:$0xf]
      %v281 = vld [vmem:[%s263 + $0xc] sm:$0xf]
      %v282 = vld [vmem:[%s1] sm:$0xf]
      %v283 = vld [vmem:[%s1 + $0x4] sm:$0xf]
      %v284 = vld [vmem:[%s1 + $0x8] sm:$0xf]
      %v285 = vld [vmem:[%s1 + $0xc] sm:$0xf]
      %v286 = vld [vmem:[%s1 + $0x10] sm:$0xf]
      %v287 = vld [vmem:[%s1 + $0x14] sm:$0xf]
      %v288 = vld [vmem:[%s1 + $0x18] sm:$0xf]
      %v289 = vld [vmem:[%s1 + $0x1c] sm:$0xf]
      %v290 = vld [vmem:[%s1 + $0x20] sm:$0xf]
      %v291 = vld [vmem:[%s1 + $0x24] sm:$0xf]
      %v292 = vld [vmem:[%s1 + $0x28] sm:$0xf]
      %v293 = vld [vmem:[%s1 + $0x2c] sm:$0xf]
      %v294 = vld [vmem:[%s1 + $0x30] sm:$0xf]
      %v295 = vld [vmem:[%s1 + $0x34] sm:$0xf]
      %v296 = vld [vmem:[%s1 + $0x38] sm:$0xf]
      %v297 = vld [vmem:[%s1 + $0x3c] sm:$0xf]
      %v298 = vld [vmem:[%s2] sm:$0x1]
      %v300 = vlaneseq
      %v301 = vshrl.u32 %v300, 7
      %v302 = vsub.s32 0, %v301
      %v303 = vrot.slane %v298, %v302
      %v309 = vunpack.c.l.b16 %v278
      %v310 = vunpack.c.l.b16 %v279
      %v311 = vunpack.c.l.b16 %v280
      %v312 = vunpack.c.l.b16 %v281
      %v313 = vpack.c.b16 %v310, %v309
      %v314 = vpack.c.b16 %v312, %v311
      %v333 = vunpack.c.l.b16 %v282
      %v334 = vunpack.c.l.b16 %v283
      %v335 = vunpack.c.l.b16 %v284
      %v336 = vunpack.c.l.b16 %v285
      %v337 = vunpack.c.l.b16 %v286
      %v338 = vunpack.c.l.b16 %v287
      %v339 = vunpack.c.l.b16 %v288
      %v340 = vunpack.c.l.b16 %v289
      %v341 = vunpack.c.l.b16 %v290
      %v342 = vunpack.c.l.b16 %v291
      %v343 = vunpack.c.l.b16 %v292
      %v344 = vunpack.c.l.b16 %v293
      %v345 = vunpack.c.l.b16 %v294
      %v346 = vunpack.c.l.b16 %v295
      %v347 = vunpack.c.l.b16 %v296
      %v348 = vunpack.c.l.b16 %v297
      %v349 = vpack.c.b16 %v334, %v333
      %v350 = vpack.c.b16 %v336, %v335
      %v351 = vpack.c.b16 %v338, %v337
      %v352 = vpack.c.b16 %v340, %v339
      %v353 = vpack.c.b16 %v342, %v341
      %v354 = vpack.c.b16 %v344, %v343
      %v355 = vpack.c.b16 %v346, %v345
      %v356 = vpack.c.b16 %v348, %v347
      %365 = vmatprep.subr.bf16.mxu0 0
      %366 = vmatpush1.bf16.msra.mxu0 %v356
      %367 = vmatprep.subr.bf16.mxu0 0
      %368 = vmatpush1.bf16.msra.mxu0 %v355
      %369 = vmatprep.subr.bf16.mxu0 0
      %370 = vmatpush1.bf16.msra.mxu0 %v354
      %371 = vmatprep.subr.bf16.mxu0 0
      %372 = vmatpush1.bf16.msra.mxu0 %v353
      %373 = vmatprep.subr.bf16.mxu0 0
      %374 = vmatpush1.bf16.msra.mxu0 %v352
      %375 = vmatprep.subr.bf16.mxu0 0
      %376 = vmatpush1.bf16.msra.mxu0 %v351
      %377 = vmatprep.subr.bf16.mxu0 0
      %378 = vmatpush1.bf16.msra.mxu0 %v350
      %379 = vmatprep.subr.bf16.mxu0 0
      %380 = vmatpush1.bf16.msra.mxu0 %v349
      %381 = vmatprep.subr.bf16.mxu0 0
      %382 = vmatpush2.bf16.msra.mxu0 0
      %383 = vmatprep.subr.bf16.mxu0 0
      %384 = vmatpush2.bf16.msra.mxu0 0
      %385 = vmatprep.subr.bf16.mxu0 0
      %386 = vmatpush2.bf16.msra.mxu0 0
      %387 = vmatprep.subr.bf16.mxu0 0
      %388 = vmatpush2.bf16.msra.mxu0 0
      %389 = vmatprep.subr.bf16.mxu0 0
      %390 = vmatpush2.bf16.msra.mxu0 0
      %391 = vmatprep.subr.bf16.mxu0 0
      %392 = vmatpush2.bf16.msra.mxu0 0
      %393 = vmatprep.subr.bf16.mxu0 0
      %394 = vmatpush2.bf16.msra.mxu0 0
      %395 = vmatprep.subr.bf16.mxu0 0
      %396 = vmatpush2.bf16.msra.mxu0 0
      %397 = vmatprep.mubr.bf16.mxu0 0
      %398 = vmatmul.mubr.bf16.gmra.mxu0 %v313
      %v399 = vpop.f32.mrf.mxu0
      %v400 = vadd.f32 %v303, %v399
      %v401 = vpop.f32.mrf.mxu0
      %v402 = vpop.f32.mrf.mxu0
      %v403 = vadd.f32 %v303, %v402
      %v404 = vpop.f32.mrf.mxu0
      %405 = vmatprep.mubr.bf16.mxu0 0
      %406 = vmatmul.mubr.bf16.gmra.mxu0 %v314
      %v407 = vpop.f32.mrf.mxu0
      %v408 = vadd.f32 %v303, %v407
      %v409 = vpop.f32.mrf.mxu0
      %v410 = vpop.f32.mrf.mxu0
      %v411 = vadd.f32 %v303, %v410
      %v412 = vpop.f32.mrf.mxu0
      %413 = vdwg.mxu0
      %v414 = vld [vmem:[%s269] sm:$0xf]
      %v415 = vld [vmem:[%s269 + $0x4] sm:$0xf]
      %v416 = vld [vmem:[%s269 + $0x8] sm:$0xf]
      %v417 = vld [vmem:[%s269 + $0xc] sm:$0xf]
      %v418 = vld [vmem:[%s4] sm:$0xf]
      %v419 = vld [vmem:[%s4 + $0x4] sm:$0xf]
      %v420 = vld [vmem:[%s4 + $0x8] sm:$0xf]
      %v421 = vld [vmem:[%s4 + $0xc] sm:$0xf]
      %v422 = vld [vmem:[%s4 + $0x10] sm:$0xf]
      %v423 = vld [vmem:[%s4 + $0x14] sm:$0xf]
      %v424 = vld [vmem:[%s4 + $0x18] sm:$0xf]
      %v425 = vld [vmem:[%s4 + $0x1c] sm:$0xf]
      %v426 = vld [vmem:[%s4 + $0x20] sm:$0xf]
      %v427 = vld [vmem:[%s4 + $0x24] sm:$0xf]
      %v428 = vld [vmem:[%s4 + $0x28] sm:$0xf]
      %v429 = vld [vmem:[%s4 + $0x2c] sm:$0xf]
      %v430 = vld [vmem:[%s4 + $0x30] sm:$0xf]
      %v431 = vld [vmem:[%s4 + $0x34] sm:$0xf]
      %v432 = vld [vmem:[%s4 + $0x38] sm:$0xf]
      %v433 = vld [vmem:[%s4 + $0x3c] sm:$0xf]
      %v434 = vld [vmem:[%s5] sm:$0x1]
      %v436 = vlaneseq
      %v437 = vshrl.u32 %v436, 7
      %v438 = vsub.s32 0, %v437
      %v439 = vrot.slane %v434, %v438
      %v445 = vunpack.c.l.b16 %v414
      %v446 = vunpack.c.l.b16 %v415
      %v447 = vunpack.c.l.b16 %v416
      %v448 = vunpack.c.l.b16 %v417
      %v449 = vpack.c.b16 %v446, %v445
      %v450 = vpack.c.b16 %v448, %v447
      %v469 = vunpack.c.l.b16 %v418
      %v470 = vunpack.c.l.b16 %v419
      %v471 = vunpack.c.l.b16 %v420
      %v472 = vunpack.c.l.b16 %v421
      %v473 = vunpack.c.l.b16 %v422
      %v474 = vunpack.c.l.b16 %v423
      %v475 = vunpack.c.l.b16 %v424
      %v476 = vunpack.c.l.b16 %v425
      %v477 = vunpack.c.l.b16 %v426
      %v478 = vunpack.c.l.b16 %v427
      %v479 = vunpack.c.l.b16 %v428
      %v480 = vunpack.c.l.b16 %v429
      %v481 = vunpack.c.l.b16 %v430
      %v482 = vunpack.c.l.b16 %v431
      %v483 = vunpack.c.l.b16 %v432
      %v484 = vunpack.c.l.b16 %v433
      %v485 = vpack.c.b16 %v470, %v469
      %v486 = vpack.c.b16 %v472, %v471
      %v487 = vpack.c.b16 %v474, %v473
      %v488 = vpack.c.b16 %v476, %v475
      %v489 = vpack.c.b16 %v478, %v477
      %v490 = vpack.c.b16 %v480, %v479
      %v491 = vpack.c.b16 %v482, %v481
      %v492 = vpack.c.b16 %v484, %v483
      %501 = vmatprep.subr.bf16.mxu0 0
      %502 = vmatpush1.bf16.msra.mxu0 %v492
      %503 = vmatprep.subr.bf16.mxu0 0
      %504 = vmatpush1.bf16.msra.mxu0 %v491
      %505 = vmatprep.subr.bf16.mxu0 0
      %506 = vmatpush1.bf16.msra.mxu0 %v490
      %507 = vmatprep.subr.bf16.mxu0 0
      %508 = vmatpush1.bf16.msra.mxu0 %v489
      %509 = vmatprep.subr.bf16.mxu0 0
      %510 = vmatpush1.bf16.msra.mxu0 %v488
      %511 = vmatprep.subr.bf16.mxu0 0
      %512 = vmatpush1.bf16.msra.mxu0 %v487
      %513 = vmatprep.subr.bf16.mxu0 0
      %514 = vmatpush1.bf16.msra.mxu0 %v486
      %515 = vmatprep.subr.bf16.mxu0 0
      %516 = vmatpush1.bf16.msra.mxu0 %v485
      %517 = vmatprep.subr.bf16.mxu0 0
      %518 = vmatpush2.bf16.msra.mxu0 0
      %519 = vmatprep.subr.bf16.mxu0 0
      %520 = vmatpush2.bf16.msra.mxu0 0
      %521 = vmatprep.subr.bf16.mxu0 0
      %522 = vmatpush2.bf16.msra.mxu0 0
      %523 = vmatprep.subr.bf16.mxu0 0
      %524 = vmatpush2.bf16.msra.mxu0 0
      %525 = vmatprep.subr.bf16.mxu0 0
      %526 = vmatpush2.bf16.msra.mxu0 0
      %527 = vmatprep.subr.bf16.mxu0 0
      %528 = vmatpush2.bf16.msra.mxu0 0
      %529 = vmatprep.subr.bf16.mxu0 0
      %530 = vmatpush2.bf16.msra.mxu0 0
      %531 = vmatprep.subr.bf16.mxu0 0
      %532 = vmatpush2.bf16.msra.mxu0 0
      %533 = vmatprep.mubr.bf16.mxu0 0
      %534 = vmatmul.mubr.bf16.gmra.mxu0 %v449
      %v535 = vpop.f32.mrf.mxu0
      %v536 = vadd.f32 %v439, %v535
      %v537 = vpop.f32.mrf.mxu0
      %v538 = vpop.f32.mrf.mxu0
      %v539 = vadd.f32 %v439, %v538
      %v540 = vpop.f32.mrf.mxu0
      %541 = vmatprep.mubr.bf16.mxu0 0
      %542 = vmatmul.mubr.bf16.gmra.mxu0 %v450
      %v543 = vpop.f32.mrf.mxu0
      %v544 = vadd.f32 %v439, %v543
      %v545 = vpop.f32.mrf.mxu0
      %v546 = vpop.f32.mrf.mxu0
      %v547 = vadd.f32 %v439, %v546
      %v548 = vpop.f32.mrf.mxu0
      %549 = vdwg.mxu0
      %v550 = vadd.f32 %v400, %v536
      %v551 = vadd.f32 %v403, %v539
      %v552 = vadd.f32 %v408, %v544
      %v553 = vadd.f32 %v411, %v547
      %v554 = vmax.f32 %v550, 0.0
      %v555 = vmax.f32 %v551, 0.0
      %v556 = vmax.f32 %v552, 0.0
      %v557 = vmax.f32 %v553, 0.0
      %558 = vst [vmem:[%s275] sm:$0xff] %v554
      %559 = vst [vmem:[%s275 + $0x8] sm:$0xff] %v555
      %560 = vst [vmem:[%s275 + $0x10] sm:$0xff] %v556
      %561 = vst [vmem:[%s275 + $0x18] sm:$0xff] %v557
      %s562 = smul.u32 4, %s17
      %p563 = scmp.lt.s32.totalorder %s562, 15
      %s564 = scalar_select %p563, %s562, 15
      %s565 = smul.addr %s564, 8
      %s566 = scalar_lea.vmem %s6, %s565
      // Predicated region
      $region45: #{bottleneck_forward.5} parent=43 // pred_check
        %p567 = pneg %p171
      $region46: #{bottleneck_forward.5} parent=43 // pred_check_branch
        %569 = sbr.rel (%p567) target = $region48
      $region47: #{bottleneck_forward.5} parent=43 // pred_region
        %s570 = smul.u32 4, %s17
      $region48: #{bottleneck_forward.5} parent=43 // pred_fallthru
        _
    $region44: #{bottleneck_forward.5} parent=5 // pred_fallthru
      _
    %p571 = scmp.le.s32.totalorder 2, %s12
    // Predicated region
    $region49: #{bottleneck_forward.5} parent=5 // pred_check
      %p572 = pneg %p571
    $region50: #{bottleneck_forward.5} parent=5 // pred_check_branch
      %574 = sbr.rel (%p572) target = $region52
    $region51: #{bottleneck_forward.5} parent=5 // pred_region
      %s575 = ssub.s32 %s12, 2
      // Predicated region
      $region53: #{bottleneck_forward.5} parent=51 // pred_check
        %p576 = pneg %p177
      $region54: #{bottleneck_forward.5} parent=51 // pred_check_branch
        %578 = sbr.rel (%p576) target = $region56
      $region55: #{bottleneck_forward.5} parent=51 // pred_region
        %s579 = smul.u32 4, %s18
        %p580 = scmp.lt.s32.totalorder %s579, 15
        %s581 = scalar_select %p580, %s579, 15
        %s582 = smul.addr %s581, 8
        %s583 = scalar_lea.vmem %s6, %s582
      $region56: #{bottleneck_forward.5} parent=51 // pred_fallthru
        _
    $region52: #{bottleneck_forward.5} parent=5 // pred_fallthru
      _
  $region6: #{bottleneck_forward.5} parent=0 // loop_footer
    %s16 = sadd.s32 1, %s12
  $region7: #{bottleneck_forward.5} parent=0 // loop_footer_branch
    %11 = sbr.rel target = $region3
  $region8: #{bottleneck_forward.5} parent=0 // loop_exit
    _

</llo_original>
